<compile_context>
chip_gen: v7x
topology: tpu7x:2x2x1
jax: 0.10.0
libtpu: 0.0.40
codegen_flags: <defaults>
</compile_context>

<pallas_src>
import functools
import math

import jax
import jax.numpy as jnp
from jax.experimental import pallas as pl
from jax.experimental.pallas import tpu as pltpu

HIDDEN = 512       # fixed by the module spec (nn.Linear(input_size, 512), ...)
NEG_SLOPE = 0.01   # torch.nn.LeakyReLU() default negative_slope


def _leaky_relu(h):
    # maximum + mul: 2 VALU ops per element (vs cmp/mul/select for where).
    return jnp.maximum(h, NEG_SLOPE * h)


def _round_up(a, b):
    return (a + b - 1) // b * b


# ----------------------------------------------------------------------------
# Kernel: one batch tile of the fused predictor + target MLP.
# ----------------------------------------------------------------------------
def rnd_kernel(x_ref, w1c_ref, b1c_ref,
               pw2_ref, pb2_ref, tw2_ref, tb2_ref,
               w3c_ref, b3_ref, out_ref):
    x = x_ref[...]  # bf16, lane-padded input

    # Layer 1: predictor + target fused -> (TB, 2*HIDDEN); split after act.
    h1 = jnp.dot(x, w1c_ref[...], preferred_element_type=jnp.float32) + b1c_ref[...]
    h1 = _leaky_relu(h1).astype(jnp.bfloat16)
    h1_p = h1[:, :HIDDEN]          # 512-col (4x128) aligned lane slices
    h1_t = h1[:, HIDDEN:]

    # Layer 2 (per branch): the dominant 512x512 matmuls.
    h2_p = jnp.dot(h1_p, pw2_ref[...], preferred_element_type=jnp.float32) + pb2_ref[...]
    h2_p = _leaky_relu(h2_p).astype(jnp.bfloat16)
    h2_t = jnp.dot(h1_t, tw2_ref[...], preferred_element_type=jnp.float32) + tb2_ref[...]
    h2_t = _leaky_relu(h2_t).astype(jnp.bfloat16)

    # Layer 3: single fused dot.  w3c is block-structured:
    #   rows [0,512)   x cols [0,out)       = predictor weights
    #   rows [512,1024) x cols [out,2*out)  = target weights
    h2 = jnp.concatenate([h2_p, h2_t], axis=1)           # (TB, 1024) bf16
    out = jnp.dot(h2, w3c_ref[...], preferred_element_type=jnp.float32) + b3_ref[...]
    out_ref[...] = out.astype(out_ref.dtype)


# ----------------------------------------------------------------------------
# Parameter packing (done once, outside the hot path).
# ----------------------------------------------------------------------------
def pack_rnd_params(params, weight_dtype=jnp.bfloat16):
    """Fuse/pad the 12-tuple of f32 params into kernel-friendly slabs."""
    pw1, pb1, pw2, pb2, pw3, pb3, tw1, tb1, tw2, tb2, tw3, tb3 = params
    input_size = pw1.shape[0]
    output_size = pw3.shape[1]
    in_pad = _round_up(input_size, 128)
    out_pad = _round_up(2 * output_size, 128)

    # Fused, lane/K-padded first layer: (in_pad, 2*HIDDEN), bias (1, 2*HIDDEN).
    w1c = jnp.zeros((in_pad, 2 * HIDDEN), jnp.float32)
    w1c = w1c.at[:input_size, :HIDDEN].set(pw1)
    w1c = w1c.at[:input_size, HIDDEN:].set(tw1)
    b1c = jnp.concatenate([pb1, tb1], axis=1)

    # Fused block-structured last layer: (2*HIDDEN, out_pad).
    w3c = jnp.zeros((2 * HIDDEN, out_pad), jnp.float32)
    w3c = w3c.at[:HIDDEN, :output_size].set(pw3)
    w3c = w3c.at[HIDDEN:, output_size:2 * output_size].set(tw3)
    b3c = jnp.zeros((1, out_pad), jnp.float32)
    b3c = b3c.at[:, :output_size].set(pb3).at[:, output_size:2 * output_size].set(tb3)

    # TODO(synk): optionally store pw2/tw2 as fp8 (e4m3) on v7x for ~2x MXU
    # density on the dominant layer-2 dots (needs downstream precision check).
    packed = (w1c.astype(weight_dtype), b1c.astype(jnp.float32),
              pw2.astype(weight_dtype), pb2.astype(jnp.float32),
              tw2.astype(weight_dtype), tb2.astype(jnp.float32),
              w3c.astype(weight_dtype), b3c.astype(jnp.float32))
    return packed, output_size


# ----------------------------------------------------------------------------
# Host wrapper: batch tiling, padding, pallas_call, output un-packing.
# ----------------------------------------------------------------------------
@functools.partial(jax.jit, static_argnames=("output_size", "block_batch"))
def rnd_forward(x, packed, output_size, block_batch=512):
    (w1c, b1c, pw2, pb2, tw2, tb2, w3c, b3c) = packed
    batch, input_size = x.shape
    in_pad = w1c.shape[0]
    out_pad = w3c.shape[1]

    # --- batch tile selection ------------------------------------------------
    # Near-equal 8-aligned tiles (minimal padding waste); on v7x make sure
    # the grid has >= 2 (even) tiles so both TensorCores get work.
    block_batch = max(8, (block_batch // 8) * 8)     # enforce sublane multiple
    padded8 = _round_up(batch, 8)
    n_tiles = -(-padded8 // block_batch)             # ceil
    if padded8 >= 16:
        n_tiles = max(n_tiles, 2)                    # use both TCs (v7x)
        if n_tiles % 2:
            n_tiles += 1                             # balanced megacore split
    tb = _round_up(-(-batch // n_tiles), 8)
    padded_batch = tb * n_tiles

    # --- input padding + bf16 pre-cast ---------------------------------------
    x = x.astype(jnp.bfloat16)
    pad_rows = padded_batch - batch
    pad_cols = in_pad - input_size
    if pad_rows or pad_cols:
        x = jnp.pad(x, ((0, pad_rows), (0, pad_cols)))

    grid = (n_tiles,)
    tiled = lambda i: (i, 0)    # batch-tiled arrays
    const = lambda i: (0, 0)    # weights/biases: resident in VMEM across steps

    in_specs = [
        pl.BlockSpec((tb, in_pad), tiled),
        pl.BlockSpec((in_pad, 2 * HIDDEN), const),
        pl.BlockSpec((1, 2 * HIDDEN), const),
        pl.BlockSpec((HIDDEN, HIDDEN), const),
        pl.BlockSpec((1, HIDDEN), const),
        pl.BlockSpec((HIDDEN, HIDDEN), const),
        pl.BlockSpec((1, HIDDEN), const),
        pl.BlockSpec((2 * HIDDEN, out_pad), const),
        pl.BlockSpec((1, out_pad), const),
    ]
    out_specs = pl.BlockSpec((tb, out_pad), tiled)
    out_shape = jax.ShapeDtypeStruct((padded_batch, out_pad), jnp.float32)

    # Advisory cost estimate for XLA's scheduler around the custom call.
    flops = 2 * padded_batch * (in_pad * 2 * HIDDEN
                                + 2 * HIDDEN * HIDDEN
                                + 2 * HIDDEN * out_pad)
    bytes_accessed = (padded_batch * in_pad * 2                       # x (bf16)
                      + (in_pad * 2 * HIDDEN + 2 * HIDDEN * HIDDEN
                         + 2 * HIDDEN * out_pad) * 2                  # weights
                      + (2 * HIDDEN + 2 * HIDDEN + out_pad) * 4       # biases
                      + padded_batch * out_pad * 4)                   # out
    cost = pl.CostEstimate(flops=flops, transcendentals=0,
                           bytes_accessed=bytes_accessed)

    packed_out = pl.pallas_call(
        rnd_kernel,
        grid=grid,
        in_specs=in_specs,
        out_specs=out_specs,
        out_shape=out_shape,
        compiler_params=pltpu.CompilerParams(
            dimension_semantics=("parallel",),
            vmem_limit_bytes=32 << 20,
        ),
        cost_estimate=cost,
    )(x, w1c, b1c, pw2, pb2, tw2, tb2, w3c, b3c)

    pred = packed_out[:batch, :output_size]
    targ = packed_out[:batch, output_size:2 * output_size]
    return pred, targ


# ----------------------------------------------------------------------------
# Init + pure-JAX reference (matches the PyTorch module).
# ----------------------------------------------------------------------------
def init_rnd_params(key, input_size, output_size, hidden=HIDDEN):
    """Orthogonal init with gain sqrt(2), zero biases (matches PyTorch init)."""
    ortho = jax.nn.initializers.orthogonal(scale=math.sqrt(2.0), column_axis=-1)
    keys = jax.random.split(key, 6)

    def layer(k, fan_in, fan_out):
        w = ortho(k, (fan_in, fan_out), jnp.float32)   # stored as (in, out)
        b = jnp.zeros((1, fan_out), jnp.float32)
        return w, b

    pw1, pb1 = layer(keys[0], input_size, hidden)
    pw2, pb2 = layer(keys[1], hidden, hidden)
    pw3, pb3 = layer(keys[2], hidden, output_size)
    tw1, tb1 = layer(keys[3], input_size, hidden)
    tw2, tb2 = layer(keys[4], hidden, hidden)
    tw3, tb3 = layer(keys[5], hidden, output_size)
    return (pw1, pb1, pw2, pb2, pw3, pb3, tw1, tb1, tw2, tb2, tw3, tb3)


def _mlp_ref(x, w1, b1, w2, b2, w3, b3):
    h = _leaky_relu(x @ w1 + b1)
    h = _leaky_relu(h @ w2 + b2)
    return h @ w3 + b3


def rnd_forward_ref(x, params):
    pw1, pb1, pw2, pb2, pw3, pb3, tw1, tb1, tw2, tb2, tw3, tb3 = params
    return (_mlp_ref(x, pw1, pb1, pw2, pb2, pw3, pb3),
            _mlp_ref(x, tw1, tb1, tw2, tb2, tw3, tb3))


if __name__ == "__main__":
    input_size = 64
    output_size = 32
    batch = 24           # not a multiple of 16 -> exercises padding + 2-tile grid

    key = jax.random.PRNGKey(0)
    k_x, k_p = jax.random.split(key)
    x = jax.random.normal(k_x, (batch, input_size), dtype=jnp.float32)

    params = init_rnd_params(k_p, input_size, output_size)
    packed, out_size = pack_rnd_params(params)

    pred, targ = rnd_forward(x, packed, output_size=out_size, block_batch=512)
    jax.block_until_ready((pred, targ))

    # Correctness check against a pure-f32 JAX reference (bf16 MXU operands
    # with f32 accumulation -> looser tolerance than a pure-f32 kernel).
    pred_ref, targ_ref = rnd_forward_ref(x, params)
    assert pred.shape == (batch, output_size) and targ.shape == (batch, output_size)
    assert jnp.allclose(pred, pred_ref, atol=1e-1, rtol=5e-2)
    assert jnp.allclose(targ, targ_ref, atol=1e-1, rtol=5e-2)

    print("KERNEL_OK")
</pallas_src>

<mosaic_0001>
module attributes {stable_mosaic.version = 11 : i64} {
  func.func @rnd_kernel(%arg0: i32, %arg1: memref<16x128xbf16, #tpu.memory_space<vmem>>, %arg2: memref<128x1024xbf16, #tpu.memory_space<vmem>>, %arg3: memref<1x1024xf32, #tpu.memory_space<vmem>>, %arg4: memref<512x512xbf16, #tpu.memory_space<vmem>>, %arg5: memref<1x512xf32, #tpu.memory_space<vmem>>, %arg6: memref<512x512xbf16, #tpu.memory_space<vmem>>, %arg7: memref<1x512xf32, #tpu.memory_space<vmem>>, %arg8: memref<1024x128xbf16, #tpu.memory_space<vmem>>, %arg9: memref<1x128xf32, #tpu.memory_space<vmem>>, %arg10: memref<16x128xf32, #tpu.memory_space<vmem>>) attributes {dimension_semantics = [#tpu.dimension_semantics<parallel>], iteration_bounds = array<i64: 2>, scalar_prefetch = 0 : i64, scratch_operands = 0 : i64, tpu.core_type = #tpu.core_type<tc>, window_params = [{transform_indices = @transform_0, window_bounds = array<i64: 16, 128>}, {pipeline_mode = #tpu.pipeline_mode<synchronous>, transform_indices = @transform_1, window_bounds = array<i64: 128, 1024>}, {pipeline_mode = #tpu.pipeline_mode<synchronous>, transform_indices = @transform_2, window_bounds = array<i64: 1, 1024>}, {pipeline_mode = #tpu.pipeline_mode<synchronous>, transform_indices = @transform_3, window_bounds = array<i64: 512, 512>}, {pipeline_mode = #tpu.pipeline_mode<synchronous>, transform_indices = @transform_4, window_bounds = array<i64: 1, 512>}, {pipeline_mode = #tpu.pipeline_mode<synchronous>, transform_indices = @transform_5, window_bounds = array<i64: 512, 512>}, {pipeline_mode = #tpu.pipeline_mode<synchronous>, transform_indices = @transform_6, window_bounds = array<i64: 1, 512>}, {pipeline_mode = #tpu.pipeline_mode<synchronous>, transform_indices = @transform_7, window_bounds = array<i64: 1024, 128>}, {pipeline_mode = #tpu.pipeline_mode<synchronous>, transform_indices = @transform_8, window_bounds = array<i64: 1, 128>}, {transform_indices = @transform_9, window_bounds = array<i64: 16, 128>}]} {
    %c0 = arith.constant 0 : index
    %c0_0 = arith.constant 0 : index
    %0 = vector.load %arg1[%c0, %c0_0] : memref<16x128xbf16, #tpu.memory_space<vmem>>, vector<16x128xbf16>
    %c0_1 = arith.constant 0 : index
    %c0_2 = arith.constant 0 : index
    %1 = vector.load %arg2[%c0_1, %c0_2] : memref<128x1024xbf16, #tpu.memory_space<vmem>>, vector<128x1024xbf16>
    %cst = arith.constant dense<0.000000e+00> : vector<16x1024xf32>
    %2 = tpu.matmul %0, %1, %cst {dimension_numbers = #tpu.dot_dimension_numbers<[1], [0], [0], [1], [0, 0, 1, 1], [], []>} : vector<16x128xbf16>, vector<128x1024xbf16>, vector<16x1024xf32> -> vector<16x1024xf32>
    %c0_3 = arith.constant 0 : index
    %c0_4 = arith.constant 0 : index
    %3 = vector.load %arg3[%c0_3, %c0_4] : memref<1x1024xf32, #tpu.memory_space<vmem>>, vector<1x1024xf32>
    %4 = vector.broadcast %3 : vector<1x1024xf32> to vector<16x1024xf32>
    %5 = arith.addf %2, %4 : vector<16x1024xf32>
    %cst_5 = arith.constant 0.00999999977 : f32
    %6 = vector.broadcast %cst_5 : f32 to vector<16x1024xf32>
    %7 = arith.mulf %6, %5 : vector<16x1024xf32>
    %8 = arith.maximumf %5, %7 : vector<16x1024xf32>
    %9 = arith.truncf %8 : vector<16x1024xf32> to vector<16x1024xbf16>
    %10 = vector.extract_strided_slice %9 {offsets = [0, 0], sizes = [16, 512], strides = [1, 1]} : vector<16x1024xbf16> to vector<16x512xbf16>
    %11 = vector.extract_strided_slice %9 {offsets = [0, 512], sizes = [16, 512], strides = [1, 1]} : vector<16x1024xbf16> to vector<16x512xbf16>
    %c0_6 = arith.constant 0 : index
    %c0_7 = arith.constant 0 : index
    %12 = vector.load %arg4[%c0_6, %c0_7] : memref<512x512xbf16, #tpu.memory_space<vmem>>, vector<512x512xbf16>
    %cst_8 = arith.constant dense<0.000000e+00> : vector<16x512xf32>
    %13 = tpu.matmul %10, %12, %cst_8 {dimension_numbers = #tpu.dot_dimension_numbers<[1], [0], [0], [1], [0, 0, 1, 1], [], []>} : vector<16x512xbf16>, vector<512x512xbf16>, vector<16x512xf32> -> vector<16x512xf32>
    %c0_9 = arith.constant 0 : index
    %c0_10 = arith.constant 0 : index
    %14 = vector.load %arg5[%c0_9, %c0_10] : memref<1x512xf32, #tpu.memory_space<vmem>>, vector<1x512xf32>
    %15 = vector.broadcast %14 : vector<1x512xf32> to vector<16x512xf32>
    %16 = arith.addf %13, %15 : vector<16x512xf32>
    %cst_11 = arith.constant 0.00999999977 : f32
    %17 = vector.broadcast %cst_11 : f32 to vector<16x512xf32>
    %18 = arith.mulf %17, %16 : vector<16x512xf32>
    %19 = arith.maximumf %16, %18 : vector<16x512xf32>
    %20 = arith.truncf %19 : vector<16x512xf32> to vector<16x512xbf16>
    %c0_12 = arith.constant 0 : index
    %c0_13 = arith.constant 0 : index
    %21 = vector.load %arg6[%c0_12, %c0_13] : memref<512x512xbf16, #tpu.memory_space<vmem>>, vector<512x512xbf16>
    %cst_14 = arith.constant dense<0.000000e+00> : vector<16x512xf32>
    %22 = tpu.matmul %11, %21, %cst_14 {dimension_numbers = #tpu.dot_dimension_numbers<[1], [0], [0], [1], [0, 0, 1, 1], [], []>} : vector<16x512xbf16>, vector<512x512xbf16>, vector<16x512xf32> -> vector<16x512xf32>
    %c0_15 = arith.constant 0 : index
    %c0_16 = arith.constant 0 : index
    %23 = vector.load %arg7[%c0_15, %c0_16] : memref<1x512xf32, #tpu.memory_space<vmem>>, vector<1x512xf32>
    %24 = vector.broadcast %23 : vector<1x512xf32> to vector<16x512xf32>
    %25 = arith.addf %22, %24 : vector<16x512xf32>
    %cst_17 = arith.constant 0.00999999977 : f32
    %26 = vector.broadcast %cst_17 : f32 to vector<16x512xf32>
    %27 = arith.mulf %26, %25 : vector<16x512xf32>
    %28 = arith.maximumf %25, %27 : vector<16x512xf32>
    %29 = arith.truncf %28 : vector<16x512xf32> to vector<16x512xbf16>
    %30 = tpu.concatenate %20, %29 in 1 : vector<16x512xbf16>, vector<16x512xbf16> -> vector<16x1024xbf16>
    %c0_18 = arith.constant 0 : index
    %c0_19 = arith.constant 0 : index
    %31 = vector.load %arg8[%c0_18, %c0_19] : memref<1024x128xbf16, #tpu.memory_space<vmem>>, vector<1024x128xbf16>
    %cst_20 = arith.constant dense<0.000000e+00> : vector<16x128xf32>
    %32 = tpu.matmul %30, %31, %cst_20 {dimension_numbers = #tpu.dot_dimension_numbers<[1], [0], [0], [1], [0, 0, 1, 1], [], []>} : vector<16x1024xbf16>, vector<1024x128xbf16>, vector<16x128xf32> -> vector<16x128xf32>
    %c0_21 = arith.constant 0 : index
    %c0_22 = arith.constant 0 : index
    %33 = vector.load %arg9[%c0_21, %c0_22] : memref<1x128xf32, #tpu.memory_space<vmem>>, vector<1x128xf32>
    %34 = vector.broadcast %33 : vector<1x128xf32> to vector<16x128xf32>
    %35 = arith.addf %32, %34 : vector<16x128xf32>
    %c0_23 = arith.constant 0 : index
    %c0_24 = arith.constant 0 : index
    %36 = vector.load %arg10[%c0_23, %c0_24] : memref<16x128xf32, #tpu.memory_space<vmem>>, vector<16x128xf32>
    tpu.vector_store %arg10[%c0_23, %c0_24], %35 {strides = array<i32>} : memref<16x128xf32, #tpu.memory_space<vmem>>, vector<16x128xf32>,
    return
  }
  func.func @transform_0(%arg0: i32) -> (i32, i32) {
    %c0_i32 = arith.constant 0 : i32
    %c0_i32_0 = arith.constant 0 : i32
    return %arg0, %c0_i32 : i32, i32
  }
  func.func @transform_1(%arg0: i32) -> (i32, i32) {
    %c0_i32 = arith.constant 0 : i32
    %c0_i32_0 = arith.constant 0 : i32
    %c0_i32_1 = arith.constant 0 : i32
    return %c0_i32, %c0_i32_0 : i32, i32
  }
  func.func @transform_2(%arg0: i32) -> (i32, i32) {
    %c0_i32 = arith.constant 0 : i32
    %c0_i32_0 = arith.constant 0 : i32
    %c0_i32_1 = arith.constant 0 : i32
    return %c0_i32, %c0_i32_0 : i32, i32
  }
  func.func @transform_3(%arg0: i32) -> (i32, i32) {
    %c0_i32 = arith.constant 0 : i32
    %c0_i32_0 = arith.constant 0 : i32
    %c0_i32_1 = arith.constant 0 : i32
    return %c0_i32, %c0_i32_0 : i32, i32
  }
  func.func @transform_4(%arg0: i32) -> (i32, i32) {
    %c0_i32 = arith.constant 0 : i32
    %c0_i32_0 = arith.constant 0 : i32
    %c0_i32_1 = arith.constant 0 : i32
    return %c0_i32, %c0_i32_0 : i32, i32
  }
  func.func @transform_5(%arg0: i32) -> (i32, i32) {
    %c0_i32 = arith.constant 0 : i32
    %c0_i32_0 = arith.constant 0 : i32
    %c0_i32_1 = arith.constant 0 : i32
    return %c0_i32, %c0_i32_0 : i32, i32
  }
  func.func @transform_6(%arg0: i32) -> (i32, i32) {
    %c0_i32 = arith.constant 0 : i32
    %c0_i32_0 = arith.constant 0 : i32
    %c0_i32_1 = arith.constant 0 : i32
    return %c0_i32, %c0_i32_0 : i32, i32
  }
  func.func @transform_7(%arg0: i32) -> (i32, i32) {
    %c0_i32 = arith.constant 0 : i32
    %c0_i32_0 = arith.constant 0 : i32
    %c0_i32_1 = arith.constant 0 : i32
    return %c0_i32, %c0_i32_0 : i32, i32
  }
  func.func @transform_8(%arg0: i32) -> (i32, i32) {
    %c0_i32 = arith.constant 0 : i32
    %c0_i32_0 = arith.constant 0 : i32
    %c0_i32_1 = arith.constant 0 : i32
    return %c0_i32, %c0_i32_0 : i32, i32
  }
  func.func @transform_9(%arg0: i32) -> (i32, i32) {
    %c0_i32 = arith.constant 0 : i32
    %c0_i32_0 = arith.constant 0 : i32
    return %arg0, %c0_i32 : i32, i32
  }
}

</mosaic_0001>

<llo_original>
// kernel: rnd_forward.1
$region0: #{rnd_forward.1}
  #allocation0 [shape = 'u32[]', space=smem, size = 0x4, offset = 0x4, fixed_abs, tag = 'smem constant byte address 0x4 - core index']
  #allocation1 [shape = 'u32[144,128]{1,0:T(1,128)}', space=vmem, size = 0x12000, scoped, tag = 'internal scratch']
  %s0 = inlined_call_operand.vmem [shape: bf16[32,128], index: 0, kind: input, shape index: {}]
  %s1 = inlined_call_operand.hbm [shape: bf16[128,1024], index: 1, kind: input, shape index: {}]
  %s2 = inlined_call_operand.vmem [shape: f32[1,1024], index: 2, kind: input, shape index: {}]
  %s3 = inlined_call_operand.hbm [shape: bf16[512,512], index: 3, kind: input, shape index: {}]
  %s4 = inlined_call_operand.vmem [shape: f32[1,512], index: 4, kind: input, shape index: {}]
  %s5 = inlined_call_operand.hbm [shape: bf16[512,512], index: 5, kind: input, shape index: {}]
  %s6 = inlined_call_operand.vmem [shape: f32[1,512], index: 6, kind: input, shape index: {}]
  %s7 = inlined_call_operand.hbm [shape: bf16[1024,128], index: 7, kind: input, shape index: {}]
  %s8 = inlined_call_operand.vmem [shape: f32[1,128], index: 8, kind: input, shape index: {}]
  %s9 = inlined_call_operand.vmem [shape: f32[32,128], index: 9, kind: output, shape index: {}]
  %s10 = sld [smem:[#allocation0]]
  $region85: #{rnd_forward.1} parent=0
    _
  %s12 = ssub.s32 1, %s10
  %s13 = scalar_select 0, %s12, %s10
  $region1: #{rnd_forward.1} parent=0
    #allocation2 [shape = 'u8[262144]{0}', space=vmem, size = 0x40000, scoped, tag = 'input window, operand 1, single buffered']
    #allocation3 [shape = 's32[2]{0}', space=sflag, size = 0x8, scoped, tag = 'scoped memory for rnd_forward.1']
    #allocation4 [shape = 'u8[524288]{0}', space=vmem, size = 0x80000, scoped, tag = 'input window, operand 3, single buffered']
    #allocation5 [shape = 's32[1]{0}', space=sflag, size = 0x4, scoped, tag = 'scoped memory for rnd_forward.1']
    #allocation6 [shape = 'u8[524288]{0}', space=vmem, size = 0x80000, scoped, tag = 'input window, operand 5, single buffered']
    #allocation7 [shape = 'u8[262144]{0}', space=vmem, size = 0x40000, scoped, tag = 'input window, operand 7, single buffered']
    #allocation8 [shape = 's32[1]{0}', space=sflag, size = 0x4, scoped, tag = 'scoped memory for rnd_forward.1']
    %14 = vsyncpa [#allocation3], 0
    %15 = vsyncpa [#allocation5], 0
    %16 = vsyncpa [#allocation8], 0
    loop: start=0, step=1, limit=4
    $region2: #{rnd_forward.1} parent=1 // loop_pre_header
      _
    $region3: #{rnd_forward.1} parent=1 // loop_header
      %s18 = sphi 0, %s22
      %p19 = scmp.ge.s32.totalorder %s18, 4
      %s28 = sphi 0, %s30
      %s31 = sphi 0, %s28
      %s32 = sphi 0, %s31
      %s48 = sphi 0, %s32
      %s52 = sphi 0, %s52
      %s54 = sphi 0, %s52
      %s55 = sphi 0, %s54
      %s69 = sphi 0, %s55
      %s73 = sphi 0, %s73
      %s75 = sphi 0, %s73
      %s76 = sphi 0, %s75
      %s90 = sphi 0, %s76
      %s94 = sphi 0, %s94
      %s96 = sphi 0, %s94
      %s97 = sphi 0, %s96
      %s111 = sphi 0, %s97
      %s115 = sphi 0, %s115
      %s117 = sphi 0, %s115
      %s118 = sphi 0, %s117
      %s132 = sphi 0, %s118
      %s136 = sphi 0, %s136
      %s138 = sphi 0, %s136
      %s139 = sphi 0, %s138
      %s153 = sphi 0, %s139
      %s157 = sphi 0, %s157
      %s159 = sphi 0, %s157
      %s160 = sphi 0, %s159
      %s174 = sphi 0, %s160
      %s178 = sphi 0, %s178
      %s180 = sphi 0, %s178
      %s181 = sphi 0, %s180
      %s195 = sphi 0, %s181
      %s199 = sphi 0, %s199
      %s201 = sphi 0, %s199
      %s202 = sphi 0, %s201
      %s216 = sphi 0, %s202
      %s222 = sphi 0, %s224
      %s225 = sphi 0, %s222
      %s226 = sphi 0, %s225
      %s242 = sphi 0, %s226
    $region4: #{rnd_forward.1} parent=1 // loop_header_branch
      %21 = sbr.rel (%p19) target = $region8
    $region5: #{rnd_forward.1} parent=1 // loop_body
      %s23 = ssub.s32 %s18, 1
      %s24 = ssub.s32 %s18, 2
      %s25 = sadd.s32 %s18, 1
      %s26 = ssub.s32 %s18, %s25
      %p27 = scmp.eq.s32.totalorder %s26, 0
      %s29 = sadd.s32 %s28, 1
      %s30 = scalar_select %p27, %s28, %s29
      %p33 = pneg %p27
      %p34 = scmp.eq.s32.totalorder %s18, 1
      %p35 = por %p33, %p34
      %p36 = scmp.ne.s32.totalorder %s28, %s31
      %p37 = scmp.eq.s32.totalorder %s18, 0
      %p38 = por %p36, %p37
      %p39 = scmp.ne.s32.totalorder %s28, %s31
      %p40 = scmp.eq.s32.totalorder %s23, 1
      %p41 = por %p39, %p40
      %p42 = scmp.ne.s32.totalorder %s31, %s32
      %p43 = scmp.eq.s32.totalorder %s23, 0
      %p44 = por %p42, %p43
      %p45 = scmp.ne.s32.totalorder %s31, %s32
      %p46 = scmp.eq.s32.totalorder %s24, 1
      %p47 = por %p45, %p46
      %p49 = scmp.ne.s32.totalorder %s32, %s48
      %p50 = scmp.eq.s32.totalorder %s24, 0
      %p51 = por %p49, %p50
      %s53 = sadd.s32 %s52, 1
      %p56 = scmp.eq.s32.totalorder %s18, 1
      %p57 = scmp.ne.s32.totalorder %s52, %s54
      %p58 = scmp.eq.s32.totalorder %s18, 0
      %p59 = por %p57, %p58
      %p60 = scmp.ne.s32.totalorder %s52, %s54
      %p61 = scmp.eq.s32.totalorder %s23, 1
      %p62 = por %p60, %p61
      %p63 = scmp.ne.s32.totalorder %s54, %s55
      %p64 = scmp.eq.s32.totalorder %s23, 0
      %p65 = por %p63, %p64
      %p66 = scmp.ne.s32.totalorder %s54, %s55
      %p67 = scmp.eq.s32.totalorder %s24, 1
      %p68 = por %p66, %p67
      %p70 = scmp.ne.s32.totalorder %s55, %s69
      %p71 = scmp.eq.s32.totalorder %s24, 0
      %p72 = por %p70, %p71
      %s74 = sadd.s32 %s73, 1
      %p77 = scmp.eq.s32.totalorder %s18, 1
      %p78 = scmp.ne.s32.totalorder %s73, %s75
      %p79 = scmp.eq.s32.totalorder %s18, 0
      %p80 = por %p78, %p79
      %p81 = scmp.ne.s32.totalorder %s73, %s75
      %p82 = scmp.eq.s32.totalorder %s23, 1
      %p83 = por %p81, %p82
      %p84 = scmp.ne.s32.totalorder %s75, %s76
      %p85 = scmp.eq.s32.totalorder %s23, 0
      %p86 = por %p84, %p85
      %p87 = scmp.ne.s32.totalorder %s75, %s76
      %p88 = scmp.eq.s32.totalorder %s24, 1
      %p89 = por %p87, %p88
      %p91 = scmp.ne.s32.totalorder %s76, %s90
      %p92 = scmp.eq.s32.totalorder %s24, 0
      %p93 = por %p91, %p92
      %s95 = sadd.s32 %s94, 1
      %p98 = scmp.eq.s32.totalorder %s18, 1
      %p99 = scmp.ne.s32.totalorder %s94, %s96
      %p100 = scmp.eq.s32.totalorder %s18, 0
      %p101 = por %p99, %p100
      %p102 = scmp.ne.s32.totalorder %s94, %s96
      %p103 = scmp.eq.s32.totalorder %s23, 1
      %p104 = por %p102, %p103
      %p105 = scmp.ne.s32.totalorder %s96, %s97
      %p106 = scmp.eq.s32.totalorder %s23, 0
      %p107 = por %p105, %p106
      %p108 = scmp.ne.s32.totalorder %s96, %s97
      %p109 = scmp.eq.s32.totalorder %s24, 1
      %p110 = por %p108, %p109
      %p112 = scmp.ne.s32.totalorder %s97, %s111
      %p113 = scmp.eq.s32.totalorder %s24, 0
      %p114 = por %p112, %p113
      %s116 = sadd.s32 %s115, 1
      %p119 = scmp.eq.s32.totalorder %s18, 1
      %p120 = scmp.ne.s32.totalorder %s115, %s117
      %p121 = scmp.eq.s32.totalorder %s18, 0
      %p122 = por %p120, %p121
      %p123 = scmp.ne.s32.totalorder %s115, %s117
      %p124 = scmp.eq.s32.totalorder %s23, 1
      %p125 = por %p123, %p124
      %p126 = scmp.ne.s32.totalorder %s117, %s118
      %p127 = scmp.eq.s32.totalorder %s23, 0
      %p128 = por %p126, %p127
      %p129 = scmp.ne.s32.totalorder %s117, %s118
      %p130 = scmp.eq.s32.totalorder %s24, 1
      %p131 = por %p129, %p130
      %p133 = scmp.ne.s32.totalorder %s118, %s132
      %p134 = scmp.eq.s32.totalorder %s24, 0
      %p135 = por %p133, %p134
      %s137 = sadd.s32 %s136, 1
      %p140 = scmp.eq.s32.totalorder %s18, 1
      %p141 = scmp.ne.s32.totalorder %s136, %s138
      %p142 = scmp.eq.s32.totalorder %s18, 0
      %p143 = por %p141, %p142
      %p144 = scmp.ne.s32.totalorder %s136, %s138
      %p145 = scmp.eq.s32.totalorder %s23, 1
      %p146 = por %p144, %p145
      %p147 = scmp.ne.s32.totalorder %s138, %s139
      %p148 = scmp.eq.s32.totalorder %s23, 0
      %p149 = por %p147, %p148
      %p150 = scmp.ne.s32.totalorder %s138, %s139
      %p151 = scmp.eq.s32.totalorder %s24, 1
      %p152 = por %p150, %p151
      %p154 = scmp.ne.s32.totalorder %s139, %s153
      %p155 = scmp.eq.s32.totalorder %s24, 0
      %p156 = por %p154, %p155
      %s158 = sadd.s32 %s157, 1
      %p161 = scmp.eq.s32.totalorder %s18, 1
      %p162 = scmp.ne.s32.totalorder %s157, %s159
      %p163 = scmp.eq.s32.totalorder %s18, 0
      %p164 = por %p162, %p163
      %p165 = scmp.ne.s32.totalorder %s157, %s159
      %p166 = scmp.eq.s32.totalorder %s23, 1
      %p167 = por %p165, %p166
      %p168 = scmp.ne.s32.totalorder %s159, %s160
      %p169 = scmp.eq.s32.totalorder %s23, 0
      %p170 = por %p168, %p169
      %p171 = scmp.ne.s32.totalorder %s159, %s160
      %p172 = scmp.eq.s32.totalorder %s24, 1
      %p173 = por %p171, %p172
      %p175 = scmp.ne.s32.totalorder %s160, %s174
      %p176 = scmp.eq.s32.totalorder %s24, 0
      %p177 = por %p175, %p176
      %s179 = sadd.s32 %s178, 1
      %p182 = scmp.eq.s32.totalorder %s18, 1
      %p183 = scmp.ne.s32.totalorder %s178, %s180
      %p184 = scmp.eq.s32.totalorder %s18, 0
      %p185 = por %p183, %p184
      %p186 = scmp.ne.s32.totalorder %s178, %s180
      %p187 = scmp.eq.s32.totalorder %s23, 1
      %p188 = por %p186, %p187
      %p189 = scmp.ne.s32.totalorder %s180, %s181
      %p190 = scmp.eq.s32.totalorder %s23, 0
      %p191 = por %p189, %p190
      %p192 = scmp.ne.s32.totalorder %s180, %s181
      %p193 = scmp.eq.s32.totalorder %s24, 1
      %p194 = por %p192, %p193
      %p196 = scmp.ne.s32.totalorder %s181, %s195
      %p197 = scmp.eq.s32.totalorder %s24, 0
      %p198 = por %p196, %p197
      %s200 = sadd.s32 %s199, 1
      %p203 = scmp.eq.s32.totalorder %s18, 1
      %p204 = scmp.ne.s32.totalorder %s199, %s201
      %p205 = scmp.eq.s32.totalorder %s18, 0
      %p206 = por %p204, %p205
      %p207 = scmp.ne.s32.totalorder %s199, %s201
      %p208 = scmp.eq.s32.totalorder %s23, 1
      %p209 = por %p207, %p208
      %p210 = scmp.ne.s32.totalorder %s201, %s202
      %p211 = scmp.eq.s32.totalorder %s23, 0
      %p212 = por %p210, %p211
      %p213 = scmp.ne.s32.totalorder %s201, %s202
      %p214 = scmp.eq.s32.totalorder %s24, 1
      %p215 = por %p213, %p214
      %p217 = scmp.ne.s32.totalorder %s202, %s216
      %p218 = scmp.eq.s32.totalorder %s24, 0
      %p219 = por %p217, %p218
      %s220 = ssub.s32 %s18, %s25
      %p221 = scmp.eq.s32.totalorder %s220, 0
      %s223 = sadd.s32 %s222, 1
      %s224 = scalar_select %p221, %s222, %s223
      %p227 = pneg %p221
      %p228 = scmp.eq.s32.totalorder %s18, 1
      %p229 = por %p227, %p228
      %p230 = scmp.ne.s32.totalorder %s222, %s225
      %p231 = scmp.eq.s32.totalorder %s18, 0
      %p232 = por %p230, %p231
      %p233 = scmp.ne.s32.totalorder %s222, %s225
      %p234 = scmp.eq.s32.totalorder %s23, 1
      %p235 = por %p233, %p234
      %p236 = scmp.ne.s32.totalorder %s225, %s226
      %p237 = scmp.eq.s32.totalorder %s23, 0
      %p238 = por %p236, %p237
      %p239 = scmp.ne.s32.totalorder %s225, %s226
      %p240 = scmp.eq.s32.totalorder %s24, 1
      %p241 = por %p239, %p240
      %p243 = scmp.ne.s32.totalorder %s226, %s242
      %p244 = scmp.eq.s32.totalorder %s24, 0
      %p245 = por %p243, %p244
      %p246 = scmp.le.s32.totalorder 1, %s18
      %p247 = scmp.lt.s32.totalorder %s18, 3
      %p248 = pnand %p246, %p247
      %p249 = pneg %p248
      // Predicated region
      $region9: #{rnd_forward.1} parent=5 // pred_check
        _
      $region10: #{rnd_forward.1} parent=5 // pred_check_branch
        %251 = sbr.rel (%p248) target = $region12
      $region11: #{rnd_forward.1} parent=5 // pred_region
        %s252 = ssub.s32 %s18, 1
        // Predicated region
        $region13: #{rnd_forward.1} parent=11 // pred_check
          %p253 = pneg %p65
        $region14: #{rnd_forward.1} parent=11 // pred_check_branch
          %255 = sbr.rel (%p253) target = $region16
        $region15: #{rnd_forward.1} parent=11 // pred_region
          %s257 = ssub.s32 8192, 8192
          %258 = vsyncadd [#allocation3], %s257
          %s259 = sshll.u32 [#allocation2], 4
          %s260 = int_to_ptr.vmem [resolvable:$true] %s259
          %265 = dma.hbm_to_vmem [thread:$0]  %s1, 8192, %s260, [#allocation3], 512, 512, 32
        $region16: #{rnd_forward.1} parent=11 // pred_fallthru
          _
        // Predicated region
        $region17: #{rnd_forward.1} parent=11 // pred_check
          %p266 = pneg %p86
        $region18: #{rnd_forward.1} parent=11 // pred_check_branch
          %268 = sbr.rel (%p266) target = $region20
        $region19: #{rnd_forward.1} parent=11 // pred_region
          _
        $region20: #{rnd_forward.1} parent=11 // pred_fallthru
          _
        // Predicated region
        $region21: #{rnd_forward.1} parent=11 // pred_check
          %p269 = pneg %p107
        $region22: #{rnd_forward.1} parent=11 // pred_check_branch
          %271 = sbr.rel (%p269) target = $region24
        $region23: #{rnd_forward.1} parent=11 // pred_region
          %s273 = ssub.s32 16384, 16384
          %274 = vsyncadd [#allocation5], %s273
          %s275 = sshll.u32 [#allocation4], 4
          %s276 = int_to_ptr.vmem [resolvable:$true] %s275
          %281 = dma.hbm_to_vmem [thread:$0]  %s3, 16384, %s276, [#allocation5], 256, 256, 16
        $region24: #{rnd_forward.1} parent=11 // pred_fallthru
          _
        // Predicated region
        $region25: #{rnd_forward.1} parent=11 // pred_check
          %p282 = pneg %p128
        $region26: #{rnd_forward.1} parent=11 // pred_check_branch
          %284 = sbr.rel (%p282) target = $region28
        $region27: #{rnd_forward.1} parent=11 // pred_region
          _
        $region28: #{rnd_forward.1} parent=11 // pred_fallthru
          _
        // Predicated region
        $region29: #{rnd_forward.1} parent=11 // pred_check
          %p285 = pneg %p149
        $region30: #{rnd_forward.1} parent=11 // pred_check_branch
          %287 = sbr.rel (%p285) target = $region32
        $region31: #{rnd_forward.1} parent=11 // pred_region
          %s289 = ssub.s32 16384, 16384
          %290 = vsyncadd [#allocation5], %s289
          %s291 = sshll.u32 [#allocation6], 4
          %s292 = int_to_ptr.vmem [resolvable:$true] %s291
          %297 = dma.hbm_to_vmem [thread:$0]  %s5, 16384, %s292, [#allocation5], 256, 256, 16
        $region32: #{rnd_forward.1} parent=11 // pred_fallthru
          _
        // Predicated region
        $region33: #{rnd_forward.1} parent=11 // pred_check
          %p298 = pneg %p170
        $region34: #{rnd_forward.1} parent=11 // pred_check_branch
          %300 = sbr.rel (%p298) target = $region36
        $region35: #{rnd_forward.1} parent=11 // pred_region
          _
        $region36: #{rnd_forward.1} parent=11 // pred_fallthru
          _
        // Predicated region
        $region37: #{rnd_forward.1} parent=11 // pred_check
          %p301 = pneg %p191
        $region38: #{rnd_forward.1} parent=11 // pred_check_branch
          %303 = sbr.rel (%p301) target = $region40
        $region39: #{rnd_forward.1} parent=11 // pred_region
          %s305 = ssub.s32 8192, 8192
          %306 = vsyncadd [#allocation8], %s305
          %s307 = sshll.u32 [#allocation7], 4
          %s308 = int_to_ptr.vmem [resolvable:$true] %s307
          %313 = dma.hbm_to_vmem [thread:$0]  %s7, 8192, %s308, [#allocation8], 64, 64, 4
        $region40: #{rnd_forward.1} parent=11 // pred_fallthru
          _
        // Predicated region
        $region41: #{rnd_forward.1} parent=11 // pred_check
          %p314 = pneg %p212
        $region42: #{rnd_forward.1} parent=11 // pred_check_branch
          %316 = sbr.rel (%p314) target = $region44
        $region43: #{rnd_forward.1} parent=11 // pred_region
          _
        $region44: #{rnd_forward.1} parent=11 // pred_fallthru
          _
      $region12: #{rnd_forward.1} parent=5 // pred_fallthru
        _
      %p317 = scmp.lt.s32.totalorder %s18, 2
      // Predicated region
      $region45: #{rnd_forward.1} parent=5 // pred_check
        %p318 = pneg %p317
      $region46: #{rnd_forward.1} parent=5 // pred_check_branch
        %320 = sbr.rel (%p318) target = $region48
      $region47: #{rnd_forward.1} parent=5 // pred_region
        // Predicated region
        $region49: #{rnd_forward.1} parent=47 // pred_check
          %p321 = pneg %p38
        $region50: #{rnd_forward.1} parent=47 // pred_check_branch
          %323 = sbr.rel (%p321) target = $region52
        $region51: #{rnd_forward.1} parent=47 // pred_region
          %s324 = smul.u32 2, %s18
          %p325 = scmp.lt.s32.totalorder %s324, 3
          %s326 = scalar_select %p325, %s324, 3
          %s327 = smul.addr %s326, 4
          %s328 = scalar_lea.vmem %s0, %s327
          %s329 = smul.u32 2, %s18
        $region52: #{rnd_forward.1} parent=47 // pred_fallthru
          _
      $region48: #{rnd_forward.1} parent=5 // pred_fallthru
        _
      %p330 = scmp.le.s32.totalorder 1, %s18
      %p331 = scmp.lt.s32.totalorder %s18, 3
      %p332 = pnand %p330, %p331
      %p333 = pneg %p332
      // Predicated region
      $region53: #{rnd_forward.1} parent=5 // pred_check
        _
      $region54: #{rnd_forward.1} parent=5 // pred_check_branch
        %335 = sbr.rel (%p332) target = $region56
      $region55: #{rnd_forward.1} parent=5 // pred_region
        %s336 = ssub.s32 %s18, 1
        // Predicated region
        $region57: #{rnd_forward.1} parent=55 // pred_check
          %p337 = pneg %p65
        $region58: #{rnd_forward.1} parent=55 // pred_check_branch
          %339 = sbr.rel (%p337) target = $region60
        $region59: #{rnd_forward.1} parent=55 // pred_region
          %340 = dma.done [#allocation3], 8192
        $region60: #{rnd_forward.1} parent=55 // pred_fallthru
          _
        // Predicated region
        $region61: #{rnd_forward.1} parent=55 // pred_check
          %p341 = pneg %p107
        $region62: #{rnd_forward.1} parent=55 // pred_check_branch
          %343 = sbr.rel (%p341) target = $region64
        $region63: #{rnd_forward.1} parent=55 // pred_region
          %344 = dma.done [#allocation5], 16384
        $region64: #{rnd_forward.1} parent=55 // pred_fallthru
          _
        // Predicated region
        $region65: #{rnd_forward.1} parent=55 // pred_check
          %p345 = pneg %p149
        $region66: #{rnd_forward.1} parent=55 // pred_check_branch
          %347 = sbr.rel (%p345) target = $region68
        $region67: #{rnd_forward.1} parent=55 // pred_region
          %348 = dma.done [#allocation5], 16384
        $region68: #{rnd_forward.1} parent=55 // pred_fallthru
          _
        // Predicated region
        $region69: #{rnd_forward.1} parent=55 // pred_check
          %p349 = pneg %p191
        $region70: #{rnd_forward.1} parent=55 // pred_check_branch
          %351 = sbr.rel (%p349) target = $region72
        $region71: #{rnd_forward.1} parent=55 // pred_region
          %352 = dma.done [#allocation8], 8192
        $region72: #{rnd_forward.1} parent=55 // pred_fallthru
          _
        %s353 = smul.u32 2, %s23
        %p354 = scmp.lt.s32.totalorder %s353, 3
        %s355 = scalar_select %p354, %s353, 3
        %s356 = smul.addr %s355, 4
        %s357 = scalar_lea.vmem %s0, %s356
        %p358 = pneg %p44
        %p359 = pneg %p41
        %p360 = pneg %p65
        %p361 = pneg %p62
        %p362 = pneg %p86
        %p363 = pneg %p83
        %p364 = pneg %p107
        %p365 = pneg %p104
        %p366 = pneg %p128
        %p367 = pneg %p125
        %p368 = pneg %p149
        %p369 = pneg %p146
        %p370 = pneg %p170
        %p371 = pneg %p167
        %p372 = pneg %p191
        %p373 = pneg %p188
        %p374 = pneg %p212
        %p375 = pneg %p209
        %p376 = pneg %p238
        %p377 = pneg %p235
        %s378 = smul.u32 2, %s23
        %p379 = scmp.lt.s32.totalorder %s378, 3
        %s380 = scalar_select %p379, %s378, 3
        %s381 = smul.addr %s380, 8
        %s382 = scalar_lea.vmem %s9, %s381
        %s383 = smul.u32 2, %s23
        %p384 = scmp.lt.s32.totalorder %s383, 3
        %s385 = scalar_select %p384, %s383, 3
        %s386 = smul.addr %s385, 4
        %s387 = scalar_lea.vmem %s0, %s386
        %s388 = smul.u32 2, %s23
        %s389 = smul.u32 2, %s23
        %p390 = scmp.lt.s32.totalorder %s389, 3
        %s391 = scalar_select %p390, %s389, 3
        %s392 = smul.addr %s391, 8
        %s393 = scalar_lea.vmem %s9, %s392
        %s394 = smul.u32 2, %s23
        %v396 = vld [vmem:[%s387] sm:$0xf]
        %v397 = vld [vmem:[%s387 + $0x4] sm:$0xf]
        %v398 = vld [vmem:[#allocation2] sm:$0xff]
        %v399 = vld [vmem:[#allocation2 + $0x8] sm:$0xff]
        %v400 = vld [vmem:[#allocation2 + $0x10] sm:$0xff]
        %v401 = vld [vmem:[#allocation2 + $0x18] sm:$0xff]
        %v402 = vld [vmem:[#allocation2 + $0x20] sm:$0xff]
        %v403 = vld [vmem:[#allocation2 + $0x28] sm:$0xff]
        %v404 = vld [vmem:[#allocation2 + $0x30] sm:$0xff]
        %v405 = vld [vmem:[#allocation2 + $0x38] sm:$0xff]
        %v406 = vld [vmem:[#allocation2 + $0x40] sm:$0xff]
        %v407 = vld [vmem:[#allocation2 + $0x48] sm:$0xff]
        %v408 = vld [vmem:[#allocation2 + $0x50] sm:$0xff]
        %v409 = vld [vmem:[#allocation2 + $0x58] sm:$0xff]
        %v410 = vld [vmem:[#allocation2 + $0x60] sm:$0xff]
        %v411 = vld [vmem:[#allocation2 + $0x68] sm:$0xff]
        %v412 = vld [vmem:[#allocation2 + $0x70] sm:$0xff]
        %v413 = vld [vmem:[#allocation2 + $0x78] sm:$0xff]
        %v414 = vld [vmem:[#allocation2 + $0x80] sm:$0xff]
        %v415 = vld [vmem:[#allocation2 + $0x88] sm:$0xff]
        %v416 = vld [vmem:[#allocation2 + $0x90] sm:$0xff]
        %v417 = vld [vmem:[#allocation2 + $0x98] sm:$0xff]
        %v418 = vld [vmem:[#allocation2 + $0xa0] sm:$0xff]
        %v419 = vld [vmem:[#allocation2 + $0xa8] sm:$0xff]
        %v420 = vld [vmem:[#allocation2 + $0xb0] sm:$0xff]
        %v421 = vld [vmem:[#allocation2 + $0xb8] sm:$0xff]
        %v422 = vld [vmem:[#allocation2 + $0xc0] sm:$0xff]
        %v423 = vld [vmem:[#allocation2 + $0xc8] sm:$0xff]
        %v424 = vld [vmem:[#allocation2 + $0xd0] sm:$0xff]
        %v425 = vld [vmem:[#allocation2 + $0xd8] sm:$0xff]
        %v426 = vld [vmem:[#allocation2 + $0xe0] sm:$0xff]
        %v427 = vld [vmem:[#allocation2 + $0xe8] sm:$0xff]
        %v428 = vld [vmem:[#allocation2 + $0xf0] sm:$0xff]
        %v429 = vld [vmem:[#allocation2 + $0xf8] sm:$0xff]
        %v430 = vld [vmem:[#allocation2 + $0x100] sm:$0xff]
        %v431 = vld [vmem:[#allocation2 + $0x108] sm:$0xff]
        %v432 = vld [vmem:[#allocation2 + $0x110] sm:$0xff]
        %v433 = vld [vmem:[#allocation2 + $0x118] sm:$0xff]
        %v434 = vld [vmem:[#allocation2 + $0x120] sm:$0xff]
        %v435 = vld [vmem:[#allocation2 + $0x128] sm:$0xff]
        %v436 = vld [vmem:[#allocation2 + $0x130] sm:$0xff]
        %v437 = vld [vmem:[#allocation2 + $0x138] sm:$0xff]
        %v438 = vld [vmem:[#allocation2 + $0x140] sm:$0xff]
        %v439 = vld [vmem:[#allocation2 + $0x148] sm:$0xff]
        %v440 = vld [vmem:[#allocation2 + $0x150] sm:$0xff]
        %v441 = vld [vmem:[#allocation2 + $0x158] sm:$0xff]
        %v442 = vld [vmem:[#allocation2 + $0x160] sm:$0xff]
        %v443 = vld [vmem:[#allocation2 + $0x168] sm:$0xff]
        %v444 = vld [vmem:[#allocation2 + $0x170] sm:$0xff]
        %v445 = vld [vmem:[#allocation2 + $0x178] sm:$0xff]
        %v446 = vld [vmem:[#allocation2 + $0x180] sm:$0xff]
        %v447 = vld [vmem:[#allocation2 + $0x188] sm:$0xff]
        %v448 = vld [vmem:[#allocation2 + $0x190] sm:$0xff]
        %v449 = vld [vmem:[#allocation2 + $0x198] sm:$0xff]
        %v450 = vld [vmem:[#allocation2 + $0x1a0] sm:$0xff]
        %v451 = vld [vmem:[#allocation2 + $0x1a8] sm:$0xff]
        %v452 = vld [vmem:[#allocation2 + $0x1b0] sm:$0xff]
        %v453 = vld [vmem:[#allocation2 + $0x1b8] sm:$0xff]
        %v454 = vld [vmem:[#allocation2 + $0x1c0] sm:$0xff]
        %v455 = vld [vmem:[#allocation2 + $0x1c8] sm:$0xff]
        %v456 = vld [vmem:[#allocation2 + $0x1d0] sm:$0xff]
        %v457 = vld [vmem:[#allocation2 + $0x1d8] sm:$0xff]
        %v458 = vld [vmem:[#allocation2 + $0x1e0] sm:$0xff]
        %v459 = vld [vmem:[#allocation2 + $0x1e8] sm:$0xff]
        %v460 = vld [vmem:[#allocation2 + $0x1f0] sm:$0xff]
        %v461 = vld [vmem:[#allocation2 + $0x1f8] sm:$0xff]
        %v462 = vld [vmem:[%s2] sm:$0xff]
        %v464 = vlaneseq
        %v465 = vshrl.u32 %v464, 7
        %v466 = vsub.s32 0, %v465
        %v467 = vrot.slane %v462, %v466
        %v468 = vlaneseq
        %v469 = vshrl.u32 %v468, 7
        %v470 = vsub.s32 1, %v469
        %v471 = vrot.slane %v462, %v470
        %v472 = vlaneseq
        %v473 = vshrl.u32 %v472, 7
        %v474 = vsub.s32 2, %v473
        %v475 = vrot.slane %v462, %v474
        %v476 = vlaneseq
        %v477 = vshrl.u32 %v476, 7
        %v478 = vsub.s32 3, %v477
        %v479 = vrot.slane %v462, %v478
        %v480 = vlaneseq
        %v481 = vshrl.u32 %v480, 7
        %v482 = vsub.s32 4, %v481
        %v483 = vrot.slane %v462, %v482
        %v484 = vlaneseq
        %v485 = vshrl.u32 %v484, 7
        %v486 = vsub.s32 5, %v485
        %v487 = vrot.slane %v462, %v486
        %v488 = vlaneseq
        %v489 = vshrl.u32 %v488, 7
        %v490 = vsub.s32 6, %v489
        %v491 = vrot.slane %v462, %v490
        %v492 = vlaneseq
        %v493 = vshrl.u32 %v492, 7
        %v494 = vsub.s32 7, %v493
        %v495 = vrot.slane %v462, %v494
        %v506 = vunpack.c.l.b16 %v396
        %v507 = vunpack.c.l.b16 %v397
        %v508 = vpack.c.b16 %v507, %v506
        %v574 = vunpack.c.l.b16 %v398
        %v575 = vunpack.c.h.b16 %v398
        %v576 = vunpack.c.l.b16 %v399
        %v577 = vunpack.c.h.b16 %v399
        %v578 = vunpack.c.l.b16 %v400
        %v579 = vunpack.c.h.b16 %v400
        %v580 = vunpack.c.l.b16 %v401
        %v581 = vunpack.c.h.b16 %v401
        %v582 = vunpack.c.l.b16 %v402
        %v583 = vunpack.c.h.b16 %v402
        %v584 = vunpack.c.l.b16 %v403
        %v585 = vunpack.c.h.b16 %v403
        %v586 = vunpack.c.l.b16 %v404
        %v587 = vunpack.c.h.b16 %v404
        %v588 = vunpack.c.l.b16 %v405
        %v589 = vunpack.c.h.b16 %v405
        %v590 = vunpack.c.l.b16 %v406
        %v591 = vunpack.c.h.b16 %v406
        %v592 = vunpack.c.l.b16 %v407
        %v593 = vunpack.c.h.b16 %v407
        %v594 = vunpack.c.l.b16 %v408
        %v595 = vunpack.c.h.b16 %v408
        %v596 = vunpack.c.l.b16 %v409
        %v597 = vunpack.c.h.b16 %v409
        %v598 = vunpack.c.l.b16 %v410
        %v599 = vunpack.c.h.b16 %v410
        %v600 = vunpack.c.l.b16 %v411
        %v601 = vunpack.c.h.b16 %v411
        %v602 = vunpack.c.l.b16 %v412
        %v603 = vunpack.c.h.b16 %v412
        %v604 = vunpack.c.l.b16 %v413
        %v605 = vunpack.c.h.b16 %v413
        %v606 = vunpack.c.l.b16 %v414
        %v607 = vunpack.c.h.b16 %v414
        %v608 = vunpack.c.l.b16 %v415
        %v609 = vunpack.c.h.b16 %v415
        %v610 = vunpack.c.l.b16 %v416
        %v611 = vunpack.c.h.b16 %v416
        %v612 = vunpack.c.l.b16 %v417
        %v613 = vunpack.c.h.b16 %v417
        %v614 = vunpack.c.l.b16 %v418
        %v615 = vunpack.c.h.b16 %v418
        %v616 = vunpack.c.l.b16 %v419
        %v617 = vunpack.c.h.b16 %v419
        %v618 = vunpack.c.l.b16 %v420
        %v619 = vunpack.c.h.b16 %v420
        %v620 = vunpack.c.l.b16 %v421
        %v621 = vunpack.c.h.b16 %v421
        %v622 = vunpack.c.l.b16 %v422
        %v623 = vunpack.c.h.b16 %v422
        %v624 = vunpack.c.l.b16 %v423
        %v625 = vunpack.c.h.b16 %v423
        %v626 = vunpack.c.l.b16 %v424
        %v627 = vunpack.c.h.b16 %v424
        %v628 = vunpack.c.l.b16 %v425
        %v629 = vunpack.c.h.b16 %v425
        %v630 = vunpack.c.l.b16 %v426
        %v631 = vunpack.c.h.b16 %v426
        %v632 = vunpack.c.l.b16 %v427
        %v633 = vunpack.c.h.b16 %v427
        %v634 = vunpack.c.l.b16 %v428
        %v635 = vunpack.c.h.b16 %v428
        %v636 = vunpack.c.l.b16 %v429
        %v637 = vunpack.c.h.b16 %v429
        %v638 = vunpack.c.l.b16 %v430
        %v639 = vunpack.c.h.b16 %v430
        %v640 = vunpack.c.l.b16 %v431
        %v641 = vunpack.c.h.b16 %v431
        %v642 = vunpack.c.l.b16 %v432
        %v643 = vunpack.c.h.b16 %v432
        %v644 = vunpack.c.l.b16 %v433
        %v645 = vunpack.c.h.b16 %v433
        %v646 = vunpack.c.l.b16 %v434
        %v647 = vunpack.c.h.b16 %v434
        %v648 = vunpack.c.l.b16 %v435
        %v649 = vunpack.c.h.b16 %v435
        %v650 = vunpack.c.l.b16 %v436
        %v651 = vunpack.c.h.b16 %v436
        %v652 = vunpack.c.l.b16 %v437
        %v653 = vunpack.c.h.b16 %v437
        %v654 = vunpack.c.l.b16 %v438
        %v655 = vunpack.c.h.b16 %v438
        %v656 = vunpack.c.l.b16 %v439
        %v657 = vunpack.c.h.b16 %v439
        %v658 = vunpack.c.l.b16 %v440
        %v659 = vunpack.c.h.b16 %v440
        %v660 = vunpack.c.l.b16 %v441
        %v661 = vunpack.c.h.b16 %v441
        %v662 = vunpack.c.l.b16 %v442
        %v663 = vunpack.c.h.b16 %v442
        %v664 = vunpack.c.l.b16 %v443
        %v665 = vunpack.c.h.b16 %v443
        %v666 = vunpack.c.l.b16 %v444
        %v667 = vunpack.c.h.b16 %v444
        %v668 = vunpack.c.l.b16 %v445
        %v669 = vunpack.c.h.b16 %v445
        %v670 = vunpack.c.l.b16 %v446
        %v671 = vunpack.c.h.b16 %v446
        %v672 = vunpack.c.l.b16 %v447
        %v673 = vunpack.c.h.b16 %v447
        %v674 = vunpack.c.l.b16 %v448
        %v675 = vunpack.c.h.b16 %v448
        %v676 = vunpack.c.l.b16 %v449
        %v677 = vunpack.c.h.b16 %v449
        %v678 = vunpack.c.l.b16 %v450
        %v679 = vunpack.c.h.b16 %v450
        %v680 = vunpack.c.l.b16 %v451
        %v681 = vunpack.c.h.b16 %v451
        %v682 = vunpack.c.l.b16 %v452
        %v683 = vunpack.c.h.b16 %v452
        %v684 = vunpack.c.l.b16 %v453
        %v685 = vunpack.c.h.b16 %v453
        %v686 = vunpack.c.l.b16 %v454
        %v687 = vunpack.c.h.b16 %v454
        %v688 = vunpack.c.l.b16 %v455
        %v689 = vunpack.c.h.b16 %v455
        %v690 = vunpack.c.l.b16 %v456
        %v691 = vunpack.c.h.b16 %v456
        %v692 = vunpack.c.l.b16 %v457
        %v693 = vunpack.c.h.b16 %v457
        %v694 = vunpack.c.l.b16 %v458
        %v695 = vunpack.c.h.b16 %v458
        %v696 = vunpack.c.l.b16 %v459
        %v697 = vunpack.c.h.b16 %v459
        %v698 = vunpack.c.l.b16 %v460
        %v699 = vunpack.c.h.b16 %v460
        %v700 = vunpack.c.l.b16 %v461
        %v701 = vunpack.c.h.b16 %v461
        %v702 = vpack.c.b16 %v582, %v574
        %v703 = vpack.c.b16 %v583, %v575
        %v704 = vpack.c.b16 %v584, %v576
        %v705 = vpack.c.b16 %v585, %v577
        %v706 = vpack.c.b16 %v586, %v578
        %v707 = vpack.c.b16 %v587, %v579
        %v708 = vpack.c.b16 %v588, %v580
        %v709 = vpack.c.b16 %v589, %v581
        %v710 = vpack.c.b16 %v598, %v590
        %v711 = vpack.c.b16 %v599, %v591
        %v712 = vpack.c.b16 %v600, %v592
        %v713 = vpack.c.b16 %v601, %v593
        %v714 = vpack.c.b16 %v602, %v594
        %v715 = vpack.c.b16 %v603, %v595
        %v716 = vpack.c.b16 %v604, %v596
        %v717 = vpack.c.b16 %v605, %v597
        %v718 = vpack.c.b16 %v614, %v606
        %v719 = vpack.c.b16 %v615, %v607
        %v720 = vpack.c.b16 %v616, %v608
        %v721 = vpack.c.b16 %v617, %v609
        %v722 = vpack.c.b16 %v618, %v610
        %v723 = vpack.c.b16 %v619, %v611
        %v724 = vpack.c.b16 %v620, %v612
        %v725 = vpack.c.b16 %v621, %v613
        %v726 = vpack.c.b16 %v630, %v622
        %v727 = vpack.c.b16 %v631, %v623
        %v728 = vpack.c.b16 %v632, %v624
        %v729 = vpack.c.b16 %v633, %v625
        %v730 = vpack.c.b16 %v634, %v626
        %v731 = vpack.c.b16 %v635, %v627
        %v732 = vpack.c.b16 %v636, %v628
        %v733 = vpack.c.b16 %v637, %v629
        %v734 = vpack.c.b16 %v646, %v638
        %v735 = vpack.c.b16 %v647, %v639
        %v736 = vpack.c.b16 %v648, %v640
        %v737 = vpack.c.b16 %v649, %v641
        %v738 = vpack.c.b16 %v650, %v642
        %v739 = vpack.c.b16 %v651, %v643
        %v740 = vpack.c.b16 %v652, %v644
        %v741 = vpack.c.b16 %v653, %v645
        %v742 = vpack.c.b16 %v662, %v654
        %v743 = vpack.c.b16 %v663, %v655
        %v744 = vpack.c.b16 %v664, %v656
        %v745 = vpack.c.b16 %v665, %v657
        %v746 = vpack.c.b16 %v666, %v658
        %v747 = vpack.c.b16 %v667, %v659
        %v748 = vpack.c.b16 %v668, %v660
        %v749 = vpack.c.b16 %v669, %v661
        %v750 = vpack.c.b16 %v678, %v670
        %v751 = vpack.c.b16 %v679, %v671
        %v752 = vpack.c.b16 %v680, %v672
        %v753 = vpack.c.b16 %v681, %v673
        %v754 = vpack.c.b16 %v682, %v674
        %v755 = vpack.c.b16 %v683, %v675
        %v756 = vpack.c.b16 %v684, %v676
        %v757 = vpack.c.b16 %v685, %v677
        %v758 = vpack.c.b16 %v694, %v686
        %v759 = vpack.c.b16 %v695, %v687
        %v760 = vpack.c.b16 %v696, %v688
        %v761 = vpack.c.b16 %v697, %v689
        %v762 = vpack.c.b16 %v698, %v690
        %v763 = vpack.c.b16 %v699, %v691
        %v764 = vpack.c.b16 %v700, %v692
        %v765 = vpack.c.b16 %v701, %v693
        %830 = vmatprep.subr.bf16.mxu0 %v703
        %831 = vmatpush1.bf16.msra.mxu0 %v702
        %832 = vmatprep.subr.bf16.mxu0 %v711
        %833 = vmatpush1.bf16.msra.mxu0 %v710
        %834 = vmatprep.subr.bf16.mxu0 %v719
        %835 = vmatpush1.bf16.msra.mxu0 %v718
        %836 = vmatprep.subr.bf16.mxu0 %v727
        %837 = vmatpush1.bf16.msra.mxu0 %v726
        %838 = vmatprep.subr.bf16.mxu0 %v735
        %839 = vmatpush1.bf16.msra.mxu0 %v734
        %840 = vmatprep.subr.bf16.mxu0 %v743
        %841 = vmatpush1.bf16.msra.mxu0 %v742
        %842 = vmatprep.subr.bf16.mxu0 %v751
        %843 = vmatpush1.bf16.msra.mxu0 %v750
        %844 = vmatprep.subr.bf16.mxu0 %v759
        %845 = vmatpush1.bf16.msra.mxu0 %v758
        %846 = vmatprep.subr.bf16.mxu0 0
        %847 = vmatpush1.bf16.msra.mxu0 0
        %848 = vmatprep.subr.bf16.mxu0 0
        %849 = vmatpush1.bf16.msra.mxu0 0
        %850 = vmatprep.subr.bf16.mxu0 0
        %851 = vmatpush1.bf16.msra.mxu0 0
        %852 = vmatprep.subr.bf16.mxu0 0
        %853 = vmatpush1.bf16.msra.mxu0 0
        %854 = vmatprep.subr.bf16.mxu0 0
        %855 = vmatpush1.bf16.msra.mxu0 0
        %856 = vmatprep.subr.bf16.mxu0 0
        %857 = vmatpush1.bf16.msra.mxu0 0
        %858 = vmatprep.subr.bf16.mxu0 0
        %859 = vmatpush1.bf16.msra.mxu0 0
        %860 = vmatprep.subr.bf16.mxu0 0
        %861 = vmatpush1.bf16.msra.mxu0 0
        %862 = vmatprep.mubr.bf16.mxu0 0
        %863 = vmatmul.mubr.bf16.gmra.mrb[0].mxu0 %v508
        %v864 = vpop.f32.mrb[0].mxu0
        %v865 = vadd.f32 %v467, %v864
        %v866 = vpop.f32.mrb[0].mxu0
        %v867 = vadd.f32 %v471, %v866
        %v868 = vpop.f32.mrb[0].mxu0
        %v869 = vadd.f32 %v467, %v868
        %v870 = vpop.f32.mrb[0].mxu0
        %v871 = vadd.f32 %v471, %v870
        %872 = vdwg.mxu0
        %873 = vmatprep.subr.bf16.mxu0 %v705
        %874 = vmatpush1.bf16.msra.mxu0 %v704
        %875 = vmatprep.subr.bf16.mxu0 %v713
        %876 = vmatpush1.bf16.msra.mxu0 %v712
        %877 = vmatprep.subr.bf16.mxu0 %v721
        %878 = vmatpush1.bf16.msra.mxu0 %v720
        %879 = vmatprep.subr.bf16.mxu0 %v729
        %880 = vmatpush1.bf16.msra.mxu0 %v728
        %881 = vmatprep.subr.bf16.mxu0 %v737
        %882 = vmatpush1.bf16.msra.mxu0 %v736
        %883 = vmatprep.subr.bf16.mxu0 %v745
        %884 = vmatpush1.bf16.msra.mxu0 %v744
        %885 = vmatprep.subr.bf16.mxu0 %v753
        %886 = vmatpush1.bf16.msra.mxu0 %v752
        %887 = vmatprep.subr.bf16.mxu0 %v761
        %888 = vmatpush1.bf16.msra.mxu0 %v760
        %889 = vmatprep.subr.bf16.mxu0 0
        %890 = vmatpush1.bf16.msra.mxu0 0
        %891 = vmatprep.subr.bf16.mxu0 0
        %892 = vmatpush1.bf16.msra.mxu0 0
        %893 = vmatprep.subr.bf16.mxu0 0
        %894 = vmatpush1.bf16.msra.mxu0 0
        %895 = vmatprep.subr.bf16.mxu0 0
        %896 = vmatpush1.bf16.msra.mxu0 0
        %897 = vmatprep.subr.bf16.mxu0 0
        %898 = vmatpush1.bf16.msra.mxu0 0
        %899 = vmatprep.subr.bf16.mxu0 0
        %900 = vmatpush1.bf16.msra.mxu0 0
        %901 = vmatprep.subr.bf16.mxu0 0
        %902 = vmatpush1.bf16.msra.mxu0 0
        %903 = vmatprep.subr.bf16.mxu0 0
        %904 = vmatpush1.bf16.msra.mxu0 0
        %905 = vmatprep.mubr.bf16.mxu0 0
        %906 = vmatmul.mubr.bf16.gmra.mrb[0].mxu0 %v508
        %v907 = vpop.f32.mrb[0].mxu0
        %v908 = vadd.f32 %v475, %v907
        %v909 = vpop.f32.mrb[0].mxu0
        %v910 = vadd.f32 %v479, %v909
        %v911 = vpop.f32.mrb[0].mxu0
        %v912 = vadd.f32 %v475, %v911
        %v913 = vpop.f32.mrb[0].mxu0
        %v914 = vadd.f32 %v479, %v913
        %915 = vdwg.mxu0
        %916 = vmatprep.subr.bf16.mxu0 %v707
        %917 = vmatpush1.bf16.msra.mxu0 %v706
        %918 = vmatprep.subr.bf16.mxu0 %v715
        %919 = vmatpush1.bf16.msra.mxu0 %v714
        %920 = vmatprep.subr.bf16.mxu0 %v723
        %921 = vmatpush1.bf16.msra.mxu0 %v722
        %922 = vmatprep.subr.bf16.mxu0 %v731
        %923 = vmatpush1.bf16.msra.mxu0 %v730
        %924 = vmatprep.subr.bf16.mxu0 %v739
        %925 = vmatpush1.bf16.msra.mxu0 %v738
        %926 = vmatprep.subr.bf16.mxu0 %v747
        %927 = vmatpush1.bf16.msra.mxu0 %v746
        %928 = vmatprep.subr.bf16.mxu0 %v755
        %929 = vmatpush1.bf16.msra.mxu0 %v754
        %930 = vmatprep.subr.bf16.mxu0 %v763
        %931 = vmatpush1.bf16.msra.mxu0 %v762
        %932 = vmatprep.subr.bf16.mxu0 0
        %933 = vmatpush1.bf16.msra.mxu0 0
        %934 = vmatprep.subr.bf16.mxu0 0
        %935 = vmatpush1.bf16.msra.mxu0 0
        %936 = vmatprep.subr.bf16.mxu0 0
        %937 = vmatpush1.bf16.msra.mxu0 0
        %938 = vmatprep.subr.bf16.mxu0 0
        %939 = vmatpush1.bf16.msra.mxu0 0
        %940 = vmatprep.subr.bf16.mxu0 0
        %941 = vmatpush1.bf16.msra.mxu0 0
        %942 = vmatprep.subr.bf16.mxu0 0
        %943 = vmatpush1.bf16.msra.mxu0 0
        %944 = vmatprep.subr.bf16.mxu0 0
        %945 = vmatpush1.bf16.msra.mxu0 0
        %946 = vmatprep.subr.bf16.mxu0 0
        %947 = vmatpush1.bf16.msra.mxu0 0
        %948 = vmatprep.mubr.bf16.mxu0 0
        %949 = vmatmul.mubr.bf16.gmra.mrb[0].mxu0 %v508
        %v950 = vpop.f32.mrb[0].mxu0
        %v951 = vadd.f32 %v483, %v950
        %v952 = vpop.f32.mrb[0].mxu0
        %v953 = vadd.f32 %v487, %v952
        %v954 = vpop.f32.mrb[0].mxu0
        %v955 = vadd.f32 %v483, %v954
        %v956 = vpop.f32.mrb[0].mxu0
        %v957 = vadd.f32 %v487, %v956
        %958 = vdwg.mxu0
        %959 = vmatprep.subr.bf16.mxu0 %v709
        %960 = vmatpush1.bf16.msra.mxu0 %v708
        %961 = vmatprep.subr.bf16.mxu0 %v717
        %962 = vmatpush1.bf16.msra.mxu0 %v716
        %963 = vmatprep.subr.bf16.mxu0 %v725
        %964 = vmatpush1.bf16.msra.mxu0 %v724
        %965 = vmatprep.subr.bf16.mxu0 %v733
        %966 = vmatpush1.bf16.msra.mxu0 %v732
        %967 = vmatprep.subr.bf16.mxu0 %v741
        %968 = vmatpush1.bf16.msra.mxu0 %v740
        %969 = vmatprep.subr.bf16.mxu0 %v749
        %970 = vmatpush1.bf16.msra.mxu0 %v748
        %971 = vmatprep.subr.bf16.mxu0 %v757
        %972 = vmatpush1.bf16.msra.mxu0 %v756
        %973 = vmatprep.subr.bf16.mxu0 %v765
        %974 = vmatpush1.bf16.msra.mxu0 %v764
        %975 = vmatprep.subr.bf16.mxu0 0
        %976 = vmatpush1.bf16.msra.mxu0 0
        %977 = vmatprep.subr.bf16.mxu0 0
        %978 = vmatpush1.bf16.msra.mxu0 0
        %979 = vmatprep.subr.bf16.mxu0 0
        %980 = vmatpush1.bf16.msra.mxu0 0
        %981 = vmatprep.subr.bf16.mxu0 0
        %982 = vmatpush1.bf16.msra.mxu0 0
        %983 = vmatprep.subr.bf16.mxu0 0
        %984 = vmatpush1.bf16.msra.mxu0 0
        %985 = vmatprep.subr.bf16.mxu0 0
        %986 = vmatpush1.bf16.msra.mxu0 0
        %987 = vmatprep.subr.bf16.mxu0 0
        %988 = vmatpush1.bf16.msra.mxu0 0
        %989 = vmatprep.subr.bf16.mxu0 0
        %990 = vmatpush1.bf16.msra.mxu0 0
        %991 = vmatprep.mubr.bf16.mxu0 0
        %992 = vmatmul.mubr.bf16.gmra.mrb[0].mxu0 %v508
        %v993 = vpop.f32.mrb[0].mxu0
        %v994 = vadd.f32 %v491, %v993
        %v995 = vpop.f32.mrb[0].mxu0
        %v996 = vadd.f32 %v495, %v995
        %v997 = vpop.f32.mrb[0].mxu0
        %v998 = vadd.f32 %v491, %v997
        %v999 = vpop.f32.mrb[0].mxu0
        %v1000 = vadd.f32 %v495, %v999
        %1001 = vdwg.mxu0
        %v1002 = vmul.f32 %v865, 0.01
        %v1003 = vmul.f32 %v867, 0.01
        %v1004 = vmul.f32 %v908, 0.01
        %v1005 = vmul.f32 %v910, 0.01
        %v1006 = vmul.f32 %v951, 0.01
        %v1007 = vmul.f32 %v953, 0.01
        %v1008 = vmul.f32 %v994, 0.01
        %v1009 = vmul.f32 %v996, 0.01
        %v1010 = vmul.f32 %v869, 0.01
        %v1011 = vmul.f32 %v871, 0.01
        %v1012 = vmul.f32 %v912, 0.01
        %v1013 = vmul.f32 %v914, 0.01
        %v1014 = vmul.f32 %v955, 0.01
        %v1015 = vmul.f32 %v957, 0.01
        %v1016 = vmul.f32 %v998, 0.01
        %v1017 = vmul.f32 %v1000, 0.01
        %v1018 = vmax.f32 %v865, %v1002
        %v1019 = vmax.f32 %v867, %v1003
        %v1020 = vmax.f32 %v908, %v1004
        %v1021 = vmax.f32 %v910, %v1005
        %v1022 = vmax.f32 %v951, %v1006
        %v1023 = vmax.f32 %v953, %v1007
        %v1024 = vmax.f32 %v994, %v1008
        %v1025 = vmax.f32 %v996, %v1009
        %v1026 = vmax.f32 %v869, %v1010
        %v1027 = vmax.f32 %v871, %v1011
        %v1028 = vmax.f32 %v912, %v1012
        %v1029 = vmax.f32 %v914, %v1013
        %v1030 = vmax.f32 %v955, %v1014
        %v1031 = vmax.f32 %v957, %v1015
        %v1032 = vmax.f32 %v998, %v1016
        %v1033 = vmax.f32 %v1000, %v1017
        %v1034 = vpack.c.bf16 %v1026, %v1018
        %v1035 = vpack.c.bf16 %v1027, %v1019
        %v1036 = vpack.c.bf16 %v1028, %v1020
        %v1037 = vpack.c.bf16 %v1029, %v1021
        %v1038 = vpack.c.bf16 %v1030, %v1022
        %v1039 = vpack.c.bf16 %v1031, %v1023
        %v1040 = vpack.c.bf16 %v1032, %v1024
        %v1041 = vpack.c.bf16 %v1033, %v1025
        %v1042 = vld [vmem:[#allocation4] sm:$0xff]
        %v1043 = vld [vmem:[#allocation4 + $0x8] sm:$0xff]
        %v1044 = vld [vmem:[#allocation4 + $0x10] sm:$0xff]
        %v1045 = vld [vmem:[#allocation4 + $0x18] sm:$0xff]
        %v1046 = vld [vmem:[#allocation4 + $0x20] sm:$0xff]
        %v1047 = vld [vmem:[#allocation4 + $0x28] sm:$0xff]
        %v1048 = vld [vmem:[#allocation4 + $0x30] sm:$0xff]
        %v1049 = vld [vmem:[#allocation4 + $0x38] sm:$0xff]
        %v1050 = vld [vmem:[#allocation4 + $0x40] sm:$0xff]
        %v1051 = vld [vmem:[#allocation4 + $0x48] sm:$0xff]
        %v1052 = vld [vmem:[#allocation4 + $0x50] sm:$0xff]
        %v1053 = vld [vmem:[#allocation4 + $0x58] sm:$0xff]
        %v1054 = vld [vmem:[#allocation4 + $0x60] sm:$0xff]
        %v1055 = vld [vmem:[#allocation4 + $0x68] sm:$0xff]
        %v1056 = vld [vmem:[#allocation4 + $0x70] sm:$0xff]
        %v1057 = vld [vmem:[#allocation4 + $0x78] sm:$0xff]
        %v1058 = vld [vmem:[#allocation4 + $0x80] sm:$0xff]
        %v1059 = vld [vmem:[#allocation4 + $0x88] sm:$0xff]
        %v1060 = vld [vmem:[#allocation4 + $0x90] sm:$0xff]
        %v1061 = vld [vmem:[#allocation4 + $0x98] sm:$0xff]
        %v1062 = vld [vmem:[#allocation4 + $0xa0] sm:$0xff]
        %v1063 = vld [vmem:[#allocation4 + $0xa8] sm:$0xff]
        %v1064 = vld [vmem:[#allocation4 + $0xb0] sm:$0xff]
        %v1065 = vld [vmem:[#allocation4 + $0xb8] sm:$0xff]
        %v1066 = vld [vmem:[#allocation4 + $0xc0] sm:$0xff]
        %v1067 = vld [vmem:[#allocation4 + $0xc8] sm:$0xff]
        %v1068 = vld [vmem:[#allocation4 + $0xd0] sm:$0xff]
        %v1069 = vld [vmem:[#allocation4 + $0xd8] sm:$0xff]
        %v1070 = vld [vmem:[#allocation4 + $0xe0] sm:$0xff]
        %v1071 = vld [vmem:[#allocation4 + $0xe8] sm:$0xff]
        %v1072 = vld [vmem:[#allocation4 + $0xf0] sm:$0xff]
        %v1073 = vld [vmem:[#allocation4 + $0xf8] sm:$0xff]
        %v1074 = vld [vmem:[#allocation4 + $0x100] sm:$0xff]
        %v1075 = vld [vmem:[#allocation4 + $0x108] sm:$0xff]
        %v1076 = vld [vmem:[#allocation4 + $0x110] sm:$0xff]
        %v1077 = vld [vmem:[#allocation4 + $0x118] sm:$0xff]
        %v1078 = vld [vmem:[#allocation4 + $0x120] sm:$0xff]
        %v1079 = vld [vmem:[#allocation4 + $0x128] sm:$0xff]
        %v1080 = vld [vmem:[#allocation4 + $0x130] sm:$0xff]
        %v1081 = vld [vmem:[#allocation4 + $0x138] sm:$0xff]
        %v1082 = vld [vmem:[#allocation4 + $0x140] sm:$0xff]
        %v1083 = vld [vmem:[#allocation4 + $0x148] sm:$0xff]
        %v1084 = vld [vmem:[#allocation4 + $0x150] sm:$0xff]
        %v1085 = vld [vmem:[#allocation4 + $0x158] sm:$0xff]
        %v1086 = vld [vmem:[#allocation4 + $0x160] sm:$0xff]
        %v1087 = vld [vmem:[#allocation4 + $0x168] sm:$0xff]
        %v1088 = vld [vmem:[#allocation4 + $0x170] sm:$0xff]
        %v1089 = vld [vmem:[#allocation4 + $0x178] sm:$0xff]
        %v1090 = vld [vmem:[#allocation4 + $0x180] sm:$0xff]
        %v1091 = vld [vmem:[#allocation4 + $0x188] sm:$0xff]
        %v1092 = vld [vmem:[#allocation4 + $0x190] sm:$0xff]
        %v1093 = vld [vmem:[#allocation4 + $0x198] sm:$0xff]
        %v1094 = vld [vmem:[#allocation4 + $0x1a0] sm:$0xff]
        %v1095 = vld [vmem:[#allocation4 + $0x1a8] sm:$0xff]
        %v1096 = vld [vmem:[#allocation4 + $0x1b0] sm:$0xff]
        %v1097 = vld [vmem:[#allocation4 + $0x1b8] sm:$0xff]
        %v1098 = vld [vmem:[#allocation4 + $0x1c0] sm:$0xff]
        %v1099 = vld [vmem:[#allocation4 + $0x1c8] sm:$0xff]
        %v1100 = vld [vmem:[#allocation4 + $0x1d0] sm:$0xff]
        %v1101 = vld [vmem:[#allocation4 + $0x1d8] sm:$0xff]
        %v1102 = vld [vmem:[#allocation4 + $0x1e0] sm:$0xff]
        %v1103 = vld [vmem:[#allocation4 + $0x1e8] sm:$0xff]
        %v1104 = vld [vmem:[#allocation4 + $0x1f0] sm:$0xff]
        %v1105 = vld [vmem:[#allocation4 + $0x1f8] sm:$0xff]
        %v1106 = vld [vmem:[#allocation4 + $0x200] sm:$0xff]
        %v1107 = vld [vmem:[#allocation4 + $0x208] sm:$0xff]
        %v1108 = vld [vmem:[#allocation4 + $0x210] sm:$0xff]
        %v1109 = vld [vmem:[#allocation4 + $0x218] sm:$0xff]
        %v1110 = vld [vmem:[#allocation4 + $0x220] sm:$0xff]
        %v1111 = vld [vmem:[#allocation4 + $0x228] sm:$0xff]
        %v1112 = vld [vmem:[#allocation4 + $0x230] sm:$0xff]
        %v1113 = vld [vmem:[#allocation4 + $0x238] sm:$0xff]
        %v1114 = vld [vmem:[#allocation4 + $0x240] sm:$0xff]
        %v1115 = vld [vmem:[#allocation4 + $0x248] sm:$0xff]
        %v1116 = vld [vmem:[#allocation4 + $0x250] sm:$0xff]
        %v1117 = vld [vmem:[#allocation4 + $0x258] sm:$0xff]
        %v1118 = vld [vmem:[#allocation4 + $0x260] sm:$0xff]
        %v1119 = vld [vmem:[#allocation4 + $0x268] sm:$0xff]
        %v1120 = vld [vmem:[#allocation4 + $0x270] sm:$0xff]
        %v1121 = vld [vmem:[#allocation4 + $0x278] sm:$0xff]
        %v1122 = vld [vmem:[#allocation4 + $0x280] sm:$0xff]
        %v1123 = vld [vmem:[#allocation4 + $0x288] sm:$0xff]
        %v1124 = vld [vmem:[#allocation4 + $0x290] sm:$0xff]
        %v1125 = vld [vmem:[#allocation4 + $0x298] sm:$0xff]
        %v1126 = vld [vmem:[#allocation4 + $0x2a0] sm:$0xff]
        %v1127 = vld [vmem:[#allocation4 + $0x2a8] sm:$0xff]
        %v1128 = vld [vmem:[#allocation4 + $0x2b0] sm:$0xff]
        %v1129 = vld [vmem:[#allocation4 + $0x2b8] sm:$0xff]
        %v1130 = vld [vmem:[#allocation4 + $0x2c0] sm:$0xff]
        %v1131 = vld [vmem:[#allocation4 + $0x2c8] sm:$0xff]
        %v1132 = vld [vmem:[#allocation4 + $0x2d0] sm:$0xff]
        %v1133 = vld [vmem:[#allocation4 + $0x2d8] sm:$0xff]
        %v1134 = vld [vmem:[#allocation4 + $0x2e0] sm:$0xff]
        %v1135 = vld [vmem:[#allocation4 + $0x2e8] sm:$0xff]
        %v1136 = vld [vmem:[#allocation4 + $0x2f0] sm:$0xff]
        %v1137 = vld [vmem:[#allocation4 + $0x2f8] sm:$0xff]
        %v1138 = vld [vmem:[#allocation4 + $0x300] sm:$0xff]
        %v1139 = vld [vmem:[#allocation4 + $0x308] sm:$0xff]
        %v1140 = vld [vmem:[#allocation4 + $0x310] sm:$0xff]
        %v1141 = vld [vmem:[#allocation4 + $0x318] sm:$0xff]
        %v1142 = vld [vmem:[#allocation4 + $0x320] sm:$0xff]
        %v1143 = vld [vmem:[#allocation4 + $0x328] sm:$0xff]
        %v1144 = vld [vmem:[#allocation4 + $0x330] sm:$0xff]
        %v1145 = vld [vmem:[#allocation4 + $0x338] sm:$0xff]
        %v1146 = vld [vmem:[#allocation4 + $0x340] sm:$0xff]
        %v1147 = vld [vmem:[#allocation4 + $0x348] sm:$0xff]
        %v1148 = vld [vmem:[#allocation4 + $0x350] sm:$0xff]
        %v1149 = vld [vmem:[#allocation4 + $0x358] sm:$0xff]
        %v1150 = vld [vmem:[#allocation4 + $0x360] sm:$0xff]
        %v1151 = vld [vmem:[#allocation4 + $0x368] sm:$0xff]
        %v1152 = vld [vmem:[#allocation4 + $0x370] sm:$0xff]
        %v1153 = vld [vmem:[#allocation4 + $0x378] sm:$0xff]
        %v1154 = vld [vmem:[#allocation4 + $0x380] sm:$0xff]
        %v1155 = vld [vmem:[#allocation4 + $0x388] sm:$0xff]
        %v1156 = vld [vmem:[#allocation4 + $0x390] sm:$0xff]
        %v1157 = vld [vmem:[#allocation4 + $0x398] sm:$0xff]
        %v1158 = vld [vmem:[#allocation4 + $0x3a0] sm:$0xff]
        %v1159 = vld [vmem:[#allocation4 + $0x3a8] sm:$0xff]
        %v1160 = vld [vmem:[#allocation4 + $0x3b0] sm:$0xff]
        %v1161 = vld [vmem:[#allocation4 + $0x3b8] sm:$0xff]
        %v1162 = vld [vmem:[#allocation4 + $0x3c0] sm:$0xff]
        %v1163 = vld [vmem:[#allocation4 + $0x3c8] sm:$0xff]
        %v1164 = vld [vmem:[#allocation4 + $0x3d0] sm:$0xff]
        %v1165 = vld [vmem:[#allocation4 + $0x3d8] sm:$0xff]
        %v1166 = vld [vmem:[#allocation4 + $0x3e0] sm:$0xff]
        %v1167 = vld [vmem:[#allocation4 + $0x3e8] sm:$0xff]
        %v1168 = vld [vmem:[#allocation4 + $0x3f0] sm:$0xff]
        %v1169 = vld [vmem:[#allocation4 + $0x3f8] sm:$0xff]
        %v1170 = vld [vmem:[%s4] sm:$0xf]
        %v1172 = vlaneseq
        %v1173 = vshrl.u32 %v1172, 7
        %v1174 = vsub.s32 0, %v1173
        %v1175 = vrot.slane %v1170, %v1174
        %v1176 = vlaneseq
        %v1177 = vshrl.u32 %v1176, 7
        %v1178 = vsub.s32 1, %v1177
        %v1179 = vrot.slane %v1170, %v1178
        %v1180 = vlaneseq
        %v1181 = vshrl.u32 %v1180, 7
        %v1182 = vsub.s32 2, %v1181
        %v1183 = vrot.slane %v1170, %v1182
        %v1184 = vlaneseq
        %v1185 = vshrl.u32 %v1184, 7
        %v1186 = vsub.s32 3, %v1185
        %v1187 = vrot.slane %v1170, %v1186
        %v1320 = vunpack.c.l.b16 %v1042
        %v1321 = vunpack.c.h.b16 %v1042
        %v1322 = vunpack.c.l.b16 %v1043
        %v1323 = vunpack.c.h.b16 %v1043
        %v1324 = vunpack.c.l.b16 %v1044
        %v1325 = vunpack.c.h.b16 %v1044
        %v1326 = vunpack.c.l.b16 %v1045
        %v1327 = vunpack.c.h.b16 %v1045
        %v1328 = vunpack.c.l.b16 %v1046
        %v1329 = vunpack.c.h.b16 %v1046
        %v1330 = vunpack.c.l.b16 %v1047
        %v1331 = vunpack.c.h.b16 %v1047
        %v1332 = vunpack.c.l.b16 %v1048
        %v1333 = vunpack.c.h.b16 %v1048
        %v1334 = vunpack.c.l.b16 %v1049
        %v1335 = vunpack.c.h.b16 %v1049
        %v1336 = vunpack.c.l.b16 %v1050
        %v1337 = vunpack.c.h.b16 %v1050
        %v1338 = vunpack.c.l.b16 %v1051
        %v1339 = vunpack.c.h.b16 %v1051
        %v1340 = vunpack.c.l.b16 %v1052
        %v1341 = vunpack.c.h.b16 %v1052
        %v1342 = vunpack.c.l.b16 %v1053
        %v1343 = vunpack.c.h.b16 %v1053
        %v1344 = vunpack.c.l.b16 %v1054
        %v1345 = vunpack.c.h.b16 %v1054
        %v1346 = vunpack.c.l.b16 %v1055
        %v1347 = vunpack.c.h.b16 %v1055
        %v1348 = vunpack.c.l.b16 %v1056
        %v1349 = vunpack.c.h.b16 %v1056
        %v1350 = vunpack.c.l.b16 %v1057
        %v1351 = vunpack.c.h.b16 %v1057
        %v1352 = vunpack.c.l.b16 %v1058
        %v1353 = vunpack.c.h.b16 %v1058
        %v1354 = vunpack.c.l.b16 %v1059
        %v1355 = vunpack.c.h.b16 %v1059
        %v1356 = vunpack.c.l.b16 %v1060
        %v1357 = vunpack.c.h.b16 %v1060
        %v1358 = vunpack.c.l.b16 %v1061
        %v1359 = vunpack.c.h.b16 %v1061
        %v1360 = vunpack.c.l.b16 %v1062
        %v1361 = vunpack.c.h.b16 %v1062
        %v1362 = vunpack.c.l.b16 %v1063
        %v1363 = vunpack.c.h.b16 %v1063
        %v1364 = vunpack.c.l.b16 %v1064
        %v1365 = vunpack.c.h.b16 %v1064
        %v1366 = vunpack.c.l.b16 %v1065
        %v1367 = vunpack.c.h.b16 %v1065
        %v1368 = vunpack.c.l.b16 %v1066
        %v1369 = vunpack.c.h.b16 %v1066
        %v1370 = vunpack.c.l.b16 %v1067
        %v1371 = vunpack.c.h.b16 %v1067
        %v1372 = vunpack.c.l.b16 %v1068
        %v1373 = vunpack.c.h.b16 %v1068
        %v1374 = vunpack.c.l.b16 %v1069
        %v1375 = vunpack.c.h.b16 %v1069
        %v1376 = vunpack.c.l.b16 %v1070
        %v1377 = vunpack.c.h.b16 %v1070
        %v1378 = vunpack.c.l.b16 %v1071
        %v1379 = vunpack.c.h.b16 %v1071
        %v1380 = vunpack.c.l.b16 %v1072
        %v1381 = vunpack.c.h.b16 %v1072
        %v1382 = vunpack.c.l.b16 %v1073
        %v1383 = vunpack.c.h.b16 %v1073
        %v1384 = vunpack.c.l.b16 %v1074
        %v1385 = vunpack.c.h.b16 %v1074
        %v1386 = vunpack.c.l.b16 %v1075
        %v1387 = vunpack.c.h.b16 %v1075
        %v1388 = vunpack.c.l.b16 %v1076
        %v1389 = vunpack.c.h.b16 %v1076
        %v1390 = vunpack.c.l.b16 %v1077
        %v1391 = vunpack.c.h.b16 %v1077
        %v1392 = vunpack.c.l.b16 %v1078
        %v1393 = vunpack.c.h.b16 %v1078
        %v1394 = vunpack.c.l.b16 %v1079
        %v1395 = vunpack.c.h.b16 %v1079
        %v1396 = vunpack.c.l.b16 %v1080
        %v1397 = vunpack.c.h.b16 %v1080
        %v1398 = vunpack.c.l.b16 %v1081
        %v1399 = vunpack.c.h.b16 %v1081
        %v1400 = vunpack.c.l.b16 %v1082
        %v1401 = vunpack.c.h.b16 %v1082
        %v1402 = vunpack.c.l.b16 %v1083
        %v1403 = vunpack.c.h.b16 %v1083
        %v1404 = vunpack.c.l.b16 %v1084
        %v1405 = vunpack.c.h.b16 %v1084
        %v1406 = vunpack.c.l.b16 %v1085
        %v1407 = vunpack.c.h.b16 %v1085
        %v1408 = vunpack.c.l.b16 %v1086
        %v1409 = vunpack.c.h.b16 %v1086
        %v1410 = vunpack.c.l.b16 %v1087
        %v1411 = vunpack.c.h.b16 %v1087
        %v1412 = vunpack.c.l.b16 %v1088
        %v1413 = vunpack.c.h.b16 %v1088
        %v1414 = vunpack.c.l.b16 %v1089
        %v1415 = vunpack.c.h.b16 %v1089
        %v1416 = vunpack.c.l.b16 %v1090
        %v1417 = vunpack.c.h.b16 %v1090
        %v1418 = vunpack.c.l.b16 %v1091
        %v1419 = vunpack.c.h.b16 %v1091
        %v1420 = vunpack.c.l.b16 %v1092
        %v1421 = vunpack.c.h.b16 %v1092
        %v1422 = vunpack.c.l.b16 %v1093
        %v1423 = vunpack.c.h.b16 %v1093
        %v1424 = vunpack.c.l.b16 %v1094
        %v1425 = vunpack.c.h.b16 %v1094
        %v1426 = vunpack.c.l.b16 %v1095
        %v1427 = vunpack.c.h.b16 %v1095
        %v1428 = vunpack.c.l.b16 %v1096
        %v1429 = vunpack.c.h.b16 %v1096
        %v1430 = vunpack.c.l.b16 %v1097
        %v1431 = vunpack.c.h.b16 %v1097
        %v1432 = vunpack.c.l.b16 %v1098
        %v1433 = vunpack.c.h.b16 %v1098
        %v1434 = vunpack.c.l.b16 %v1099
        %v1435 = vunpack.c.h.b16 %v1099
        %v1436 = vunpack.c.l.b16 %v1100
        %v1437 = vunpack.c.h.b16 %v1100
        %v1438 = vunpack.c.l.b16 %v1101
        %v1439 = vunpack.c.h.b16 %v1101
        %v1440 = vunpack.c.l.b16 %v1102
        %v1441 = vunpack.c.h.b16 %v1102
        %v1442 = vunpack.c.l.b16 %v1103
        %v1443 = vunpack.c.h.b16 %v1103
        %v1444 = vunpack.c.l.b16 %v1104
        %v1445 = vunpack.c.h.b16 %v1104
        %v1446 = vunpack.c.l.b16 %v1105
        %v1447 = vunpack.c.h.b16 %v1105
        %v1448 = vunpack.c.l.b16 %v1106
        %v1449 = vunpack.c.h.b16 %v1106
        %v1450 = vunpack.c.l.b16 %v1107
        %v1451 = vunpack.c.h.b16 %v1107
        %v1452 = vunpack.c.l.b16 %v1108
        %v1453 = vunpack.c.h.b16 %v1108
        %v1454 = vunpack.c.l.b16 %v1109
        %v1455 = vunpack.c.h.b16 %v1109
        %v1456 = vunpack.c.l.b16 %v1110
        %v1457 = vunpack.c.h.b16 %v1110
        %v1458 = vunpack.c.l.b16 %v1111
        %v1459 = vunpack.c.h.b16 %v1111
        %v1460 = vunpack.c.l.b16 %v1112
        %v1461 = vunpack.c.h.b16 %v1112
        %v1462 = vunpack.c.l.b16 %v1113
        %v1463 = vunpack.c.h.b16 %v1113
        %v1464 = vunpack.c.l.b16 %v1114
        %v1465 = vunpack.c.h.b16 %v1114
        %v1466 = vunpack.c.l.b16 %v1115
        %v1467 = vunpack.c.h.b16 %v1115
        %v1468 = vunpack.c.l.b16 %v1116
        %v1469 = vunpack.c.h.b16 %v1116
        %v1470 = vunpack.c.l.b16 %v1117
        %v1471 = vunpack.c.h.b16 %v1117
        %v1472 = vunpack.c.l.b16 %v1118
        %v1473 = vunpack.c.h.b16 %v1118
        %v1474 = vunpack.c.l.b16 %v1119
        %v1475 = vunpack.c.h.b16 %v1119
        %v1476 = vunpack.c.l.b16 %v1120
        %v1477 = vunpack.c.h.b16 %v1120
        %v1478 = vunpack.c.l.b16 %v1121
        %v1479 = vunpack.c.h.b16 %v1121
        %v1480 = vunpack.c.l.b16 %v1122
        %v1481 = vunpack.c.h.b16 %v1122
        %v1482 = vunpack.c.l.b16 %v1123
        %v1483 = vunpack.c.h.b16 %v1123
        %v1484 = vunpack.c.l.b16 %v1124
        %v1485 = vunpack.c.h.b16 %v1124
        %v1486 = vunpack.c.l.b16 %v1125
        %v1487 = vunpack.c.h.b16 %v1125
        %v1488 = vunpack.c.l.b16 %v1126
        %v1489 = vunpack.c.h.b16 %v1126
        %v1490 = vunpack.c.l.b16 %v1127
        %v1491 = vunpack.c.h.b16 %v1127
        %v1492 = vunpack.c.l.b16 %v1128
        %v1493 = vunpack.c.h.b16 %v1128
        %v1494 = vunpack.c.l.b16 %v1129
        %v1495 = vunpack.c.h.b16 %v1129
        %v1496 = vunpack.c.l.b16 %v1130
        %v1497 = vunpack.c.h.b16 %v1130
        %v1498 = vunpack.c.l.b16 %v1131
        %v1499 = vunpack.c.h.b16 %v1131
        %v1500 = vunpack.c.l.b16 %v1132
        %v1501 = vunpack.c.h.b16 %v1132
        %v1502 = vunpack.c.l.b16 %v1133
        %v1503 = vunpack.c.h.b16 %v1133
        %v1504 = vunpack.c.l.b16 %v1134
        %v1505 = vunpack.c.h.b16 %v1134
        %v1506 = vunpack.c.l.b16 %v1135
        %v1507 = vunpack.c.h.b16 %v1135
        %v1508 = vunpack.c.l.b16 %v1136
        %v1509 = vunpack.c.h.b16 %v1136
        %v1510 = vunpack.c.l.b16 %v1137
        %v1511 = vunpack.c.h.b16 %v1137
        %v1512 = vunpack.c.l.b16 %v1138
        %v1513 = vunpack.c.h.b16 %v1138
        %v1514 = vunpack.c.l.b16 %v1139
        %v1515 = vunpack.c.h.b16 %v1139
        %v1516 = vunpack.c.l.b16 %v1140
        %v1517 = vunpack.c.h.b16 %v1140
        %v1518 = vunpack.c.l.b16 %v1141
        %v1519 = vunpack.c.h.b16 %v1141
        %v1520 = vunpack.c.l.b16 %v1142
        %v1521 = vunpack.c.h.b16 %v1142
        %v1522 = vunpack.c.l.b16 %v1143
        %v1523 = vunpack.c.h.b16 %v1143
        %v1524 = vunpack.c.l.b16 %v1144
        %v1525 = vunpack.c.h.b16 %v1144
        %v1526 = vunpack.c.l.b16 %v1145
        %v1527 = vunpack.c.h.b16 %v1145
        %v1528 = vunpack.c.l.b16 %v1146
        %v1529 = vunpack.c.h.b16 %v1146
        %v1530 = vunpack.c.l.b16 %v1147
        %v1531 = vunpack.c.h.b16 %v1147
        %v1532 = vunpack.c.l.b16 %v1148
        %v1533 = vunpack.c.h.b16 %v1148
        %v1534 = vunpack.c.l.b16 %v1149
        %v1535 = vunpack.c.h.b16 %v1149
        %v1536 = vunpack.c.l.b16 %v1150
        %v1537 = vunpack.c.h.b16 %v1150
        %v1538 = vunpack.c.l.b16 %v1151
        %v1539 = vunpack.c.h.b16 %v1151
        %v1540 = vunpack.c.l.b16 %v1152
        %v1541 = vunpack.c.h.b16 %v1152
        %v1542 = vunpack.c.l.b16 %v1153
        %v1543 = vunpack.c.h.b16 %v1153
        %v1544 = vunpack.c.l.b16 %v1154
        %v1545 = vunpack.c.h.b16 %v1154
        %v1546 = vunpack.c.l.b16 %v1155
        %v1547 = vunpack.c.h.b16 %v1155
        %v1548 = vunpack.c.l.b16 %v1156
        %v1549 = vunpack.c.h.b16 %v1156
        %v1550 = vunpack.c.l.b16 %v1157
        %v1551 = vunpack.c.h.b16 %v1157
        %v1552 = vunpack.c.l.b16 %v1158
        %v1553 = vunpack.c.h.b16 %v1158
        %v1554 = vunpack.c.l.b16 %v1159
        %v1555 = vunpack.c.h.b16 %v1159
        %v1556 = vunpack.c.l.b16 %v1160
        %v1557 = vunpack.c.h.b16 %v1160
        %v1558 = vunpack.c.l.b16 %v1161
        %v1559 = vunpack.c.h.b16 %v1161
        %v1560 = vunpack.c.l.b16 %v1162
        %v1561 = vunpack.c.h.b16 %v1162
        %v1562 = vunpack.c.l.b16 %v1163
        %v1563 = vunpack.c.h.b16 %v1163
        %v1564 = vunpack.c.l.b16 %v1164
        %v1565 = vunpack.c.h.b16 %v1164
        %v1566 = vunpack.c.l.b16 %v1165
        %v1567 = vunpack.c.h.b16 %v1165
        %v1568 = vunpack.c.l.b16 %v1166
        %v1569 = vunpack.c.h.b16 %v1166
        %v1570 = vunpack.c.l.b16 %v1167
        %v1571 = vunpack.c.h.b16 %v1167
        %v1572 = vunpack.c.l.b16 %v1168
        %v1573 = vunpack.c.h.b16 %v1168
        %v1574 = vunpack.c.l.b16 %v1169
        %v1575 = vunpack.c.h.b16 %v1169
        %v1576 = vpack.c.b16 %v1324, %v1320
        %v1577 = vpack.c.b16 %v1325, %v1321
        %v1578 = vpack.c.b16 %v1326, %v1322
        %v1579 = vpack.c.b16 %v1327, %v1323
        %v1580 = vpack.c.b16 %v1332, %v1328
        %v1581 = vpack.c.b16 %v1333, %v1329
        %v1582 = vpack.c.b16 %v1334, %v1330
        %v1583 = vpack.c.b16 %v1335, %v1331
        %v1584 = vpack.c.b16 %v1340, %v1336
        %v1585 = vpack.c.b16 %v1341, %v1337
        %v1586 = vpack.c.b16 %v1342, %v1338
        %v1587 = vpack.c.b16 %v1343, %v1339
        %v1588 = vpack.c.b16 %v1348, %v1344
        %v1589 = vpack.c.b16 %v1349, %v1345
        %v1590 = vpack.c.b16 %v1350, %v1346
        %v1591 = vpack.c.b16 %v1351, %v1347
        %v1592 = vpack.c.b16 %v1356, %v1352
        %v1593 = vpack.c.b16 %v1357, %v1353
        %v1594 = vpack.c.b16 %v1358, %v1354
        %v1595 = vpack.c.b16 %v1359, %v1355
        %v1596 = vpack.c.b16 %v1364, %v1360
        %v1597 = vpack.c.b16 %v1365, %v1361
        %v1598 = vpack.c.b16 %v1366, %v1362
        %v1599 = vpack.c.b16 %v1367, %v1363
        %v1600 = vpack.c.b16 %v1372, %v1368
        %v1601 = vpack.c.b16 %v1373, %v1369
        %v1602 = vpack.c.b16 %v1374, %v1370
        %v1603 = vpack.c.b16 %v1375, %v1371
        %v1604 = vpack.c.b16 %v1380, %v1376
        %v1605 = vpack.c.b16 %v1381, %v1377
        %v1606 = vpack.c.b16 %v1382, %v1378
        %v1607 = vpack.c.b16 %v1383, %v1379
        %v1608 = vpack.c.b16 %v1388, %v1384
        %v1609 = vpack.c.b16 %v1389, %v1385
        %v1610 = vpack.c.b16 %v1390, %v1386
        %v1611 = vpack.c.b16 %v1391, %v1387
        %v1612 = vpack.c.b16 %v1396, %v1392
        %v1613 = vpack.c.b16 %v1397, %v1393
        %v1614 = vpack.c.b16 %v1398, %v1394
        %v1615 = vpack.c.b16 %v1399, %v1395
        %v1616 = vpack.c.b16 %v1404, %v1400
        %v1617 = vpack.c.b16 %v1405, %v1401
        %v1618 = vpack.c.b16 %v1406, %v1402
        %v1619 = vpack.c.b16 %v1407, %v1403
        %v1620 = vpack.c.b16 %v1412, %v1408
        %v1621 = vpack.c.b16 %v1413, %v1409
        %v1622 = vpack.c.b16 %v1414, %v1410
        %v1623 = vpack.c.b16 %v1415, %v1411
        %v1624 = vpack.c.b16 %v1420, %v1416
        %v1625 = vpack.c.b16 %v1421, %v1417
        %v1626 = vpack.c.b16 %v1422, %v1418
        %v1627 = vpack.c.b16 %v1423, %v1419
        %v1628 = vpack.c.b16 %v1428, %v1424
        %v1629 = vpack.c.b16 %v1429, %v1425
        %v1630 = vpack.c.b16 %v1430, %v1426
        %v1631 = vpack.c.b16 %v1431, %v1427
        %v1632 = vpack.c.b16 %v1436, %v1432
        %v1633 = vpack.c.b16 %v1437, %v1433
        %v1634 = vpack.c.b16 %v1438, %v1434
        %v1635 = vpack.c.b16 %v1439, %v1435
        %v1636 = vpack.c.b16 %v1444, %v1440
        %v1637 = vpack.c.b16 %v1445, %v1441
        %v1638 = vpack.c.b16 %v1446, %v1442
        %v1639 = vpack.c.b16 %v1447, %v1443
        %v1640 = vpack.c.b16 %v1452, %v1448
        %v1641 = vpack.c.b16 %v1453, %v1449
        %v1642 = vpack.c.b16 %v1454, %v1450
        %v1643 = vpack.c.b16 %v1455, %v1451
        %v1644 = vpack.c.b16 %v1460, %v1456
        %v1645 = vpack.c.b16 %v1461, %v1457
        %v1646 = vpack.c.b16 %v1462, %v1458
        %v1647 = vpack.c.b16 %v1463, %v1459
        %v1648 = vpack.c.b16 %v1468, %v1464
        %v1649 = vpack.c.b16 %v1469, %v1465
        %v1650 = vpack.c.b16 %v1470, %v1466
        %v1651 = vpack.c.b16 %v1471, %v1467
        %v1652 = vpack.c.b16 %v1476, %v1472
        %v1653 = vpack.c.b16 %v1477, %v1473
        %v1654 = vpack.c.b16 %v1478, %v1474
        %v1655 = vpack.c.b16 %v1479, %v1475
        %v1656 = vpack.c.b16 %v1484, %v1480
        %v1657 = vpack.c.b16 %v1485, %v1481
        %v1658 = vpack.c.b16 %v1486, %v1482
        %v1659 = vpack.c.b16 %v1487, %v1483
        %v1660 = vpack.c.b16 %v1492, %v1488
        %v1661 = vpack.c.b16 %v1493, %v1489
        %v1662 = vpack.c.b16 %v1494, %v1490
        %v1663 = vpack.c.b16 %v1495, %v1491
        %v1664 = vpack.c.b16 %v1500, %v1496
        %v1665 = vpack.c.b16 %v1501, %v1497
        %v1666 = vpack.c.b16 %v1502, %v1498
        %v1667 = vpack.c.b16 %v1503, %v1499
        %v1668 = vpack.c.b16 %v1508, %v1504
        %v1669 = vpack.c.b16 %v1509, %v1505
        %v1670 = vpack.c.b16 %v1510, %v1506
        %v1671 = vpack.c.b16 %v1511, %v1507
        %v1672 = vpack.c.b16 %v1516, %v1512
        %v1673 = vpack.c.b16 %v1517, %v1513
        %v1674 = vpack.c.b16 %v1518, %v1514
        %v1675 = vpack.c.b16 %v1519, %v1515
        %v1676 = vpack.c.b16 %v1524, %v1520
        %v1677 = vpack.c.b16 %v1525, %v1521
        %v1678 = vpack.c.b16 %v1526, %v1522
        %v1679 = vpack.c.b16 %v1527, %v1523
        %v1680 = vpack.c.b16 %v1532, %v1528
        %v1681 = vpack.c.b16 %v1533, %v1529
        %v1682 = vpack.c.b16 %v1534, %v1530
        %v1683 = vpack.c.b16 %v1535, %v1531
        %v1684 = vpack.c.b16 %v1540, %v1536
        %v1685 = vpack.c.b16 %v1541, %v1537
        %v1686 = vpack.c.b16 %v1542, %v1538
        %v1687 = vpack.c.b16 %v1543, %v1539
        %v1688 = vpack.c.b16 %v1548, %v1544
        %v1689 = vpack.c.b16 %v1549, %v1545
        %v1690 = vpack.c.b16 %v1550, %v1546
        %v1691 = vpack.c.b16 %v1551, %v1547
        %v1692 = vpack.c.b16 %v1556, %v1552
        %v1693 = vpack.c.b16 %v1557, %v1553
        %v1694 = vpack.c.b16 %v1558, %v1554
        %v1695 = vpack.c.b16 %v1559, %v1555
        %v1696 = vpack.c.b16 %v1564, %v1560
        %v1697 = vpack.c.b16 %v1565, %v1561
        %v1698 = vpack.c.b16 %v1566, %v1562
        %v1699 = vpack.c.b16 %v1567, %v1563
        %v1700 = vpack.c.b16 %v1572, %v1568
        %v1701 = vpack.c.b16 %v1573, %v1569
        %v1702 = vpack.c.b16 %v1574, %v1570
        %v1703 = vpack.c.b16 %v1575, %v1571
        %1832 = vmatprep.subr.bf16.mxu0 %v1577
        %1833 = vmatpush1.bf16.msra.mxu0 %v1576
        %1834 = vmatprep.subr.bf16.mxu0 %v1581
        %1835 = vmatpush1.bf16.msra.mxu0 %v1580
        %1836 = vmatprep.subr.bf16.mxu0 %v1585
        %1837 = vmatpush1.bf16.msra.mxu0 %v1584
        %1838 = vmatprep.subr.bf16.mxu0 %v1589
        %1839 = vmatpush1.bf16.msra.mxu0 %v1588
        %1840 = vmatprep.subr.bf16.mxu0 %v1593
        %1841 = vmatpush1.bf16.msra.mxu0 %v1592
        %1842 = vmatprep.subr.bf16.mxu0 %v1597
        %1843 = vmatpush1.bf16.msra.mxu0 %v1596
        %1844 = vmatprep.subr.bf16.mxu0 %v1601
        %1845 = vmatpush1.bf16.msra.mxu0 %v1600
        %1846 = vmatprep.subr.bf16.mxu0 %v1605
        %1847 = vmatpush1.bf16.msra.mxu0 %v1604
        %1848 = vmatprep.subr.bf16.mxu0 %v1609
        %1849 = vmatpush1.bf16.msra.mxu0 %v1608
        %1850 = vmatprep.subr.bf16.mxu0 %v1613
        %1851 = vmatpush1.bf16.msra.mxu0 %v1612
        %1852 = vmatprep.subr.bf16.mxu0 %v1617
        %1853 = vmatpush1.bf16.msra.mxu0 %v1616
        %1854 = vmatprep.subr.bf16.mxu0 %v1621
        %1855 = vmatpush1.bf16.msra.mxu0 %v1620
        %1856 = vmatprep.subr.bf16.mxu0 %v1625
        %1857 = vmatpush1.bf16.msra.mxu0 %v1624
        %1858 = vmatprep.subr.bf16.mxu0 %v1629
        %1859 = vmatpush1.bf16.msra.mxu0 %v1628
        %1860 = vmatprep.subr.bf16.mxu0 %v1633
        %1861 = vmatpush1.bf16.msra.mxu0 %v1632
        %1862 = vmatprep.subr.bf16.mxu0 %v1637
        %1863 = vmatpush1.bf16.msra.mxu0 %v1636
        %1864 = vmatprep.mubr.bf16.mxu0 %v1035
        %1865 = vmatmul.mubr.bf16.gmra.mrb[0].mxu0 %v1034
        %v1866 = vpop.f32.mrb[0].mxu0
        %v1867 = vadd.f32 %v1175, %v1866
        %v1868 = vpop.f32.mrb[0].mxu0
        %v1869 = vadd.f32 %v1179, %v1868
        %v1870 = vpop.f32.mrb[0].mxu0
        %v1871 = vadd.f32 %v1175, %v1870
        %v1872 = vpop.f32.mrb[0].mxu0
        %v1873 = vadd.f32 %v1179, %v1872
        %1874 = vdwg.mxu0
        %1875 = vmatprep.subr.bf16.mxu0 %v1641
        %1876 = vmatpush1.bf16.msra.mxu0 %v1640
        %1877 = vmatprep.subr.bf16.mxu0 %v1645
        %1878 = vmatpush1.bf16.msra.mxu0 %v1644
        %1879 = vmatprep.subr.bf16.mxu0 %v1649
        %1880 = vmatpush1.bf16.msra.mxu0 %v1648
        %1881 = vmatprep.subr.bf16.mxu0 %v1653
        %1882 = vmatpush1.bf16.msra.mxu0 %v1652
        %1883 = vmatprep.subr.bf16.mxu0 %v1657
        %1884 = vmatpush1.bf16.msra.mxu0 %v1656
        %1885 = vmatprep.subr.bf16.mxu0 %v1661
        %1886 = vmatpush1.bf16.msra.mxu0 %v1660
        %1887 = vmatprep.subr.bf16.mxu0 %v1665
        %1888 = vmatpush1.bf16.msra.mxu0 %v1664
        %1889 = vmatprep.subr.bf16.mxu0 %v1669
        %1890 = vmatpush1.bf16.msra.mxu0 %v1668
        %1891 = vmatprep.subr.bf16.mxu0 %v1673
        %1892 = vmatpush1.bf16.msra.mxu0 %v1672
        %1893 = vmatprep.subr.bf16.mxu0 %v1677
        %1894 = vmatpush1.bf16.msra.mxu0 %v1676
        %1895 = vmatprep.subr.bf16.mxu0 %v1681
        %1896 = vmatpush1.bf16.msra.mxu0 %v1680
        %1897 = vmatprep.subr.bf16.mxu0 %v1685
        %1898 = vmatpush1.bf16.msra.mxu0 %v1684
        %1899 = vmatprep.subr.bf16.mxu0 %v1689
        %1900 = vmatpush1.bf16.msra.mxu0 %v1688
        %1901 = vmatprep.subr.bf16.mxu0 %v1693
        %1902 = vmatpush1.bf16.msra.mxu0 %v1692
        %1903 = vmatprep.subr.bf16.mxu0 %v1697
        %1904 = vmatpush1.bf16.msra.mxu0 %v1696
        %1905 = vmatprep.subr.bf16.mxu0 %v1701
        %1906 = vmatpush1.bf16.msra.mxu0 %v1700
        %1907 = vmatprep.mubr.bf16.mxu0 %v1037
        %1908 = vmatmul.mubr.bf16.gmra.mrb[0].mxu0 %v1036
        %v1909 = vpop.f32.mrb[0].mxu0
        %v1910 = vadd.f32 %v1867, %v1909
        %v1911 = vpop.f32.mrb[0].mxu0
        %v1912 = vadd.f32 %v1869, %v1911
        %v1913 = vpop.f32.mrb[0].mxu0
        %v1914 = vadd.f32 %v1871, %v1913
        %v1915 = vpop.f32.mrb[0].mxu0
        %v1916 = vadd.f32 %v1873, %v1915
        %1917 = vdwg.mxu0
        %1918 = vmatprep.subr.bf16.mxu0 %v1579
        %1919 = vmatpush1.bf16.msra.mxu0 %v1578
        %1920 = vmatprep.subr.bf16.mxu0 %v1583
        %1921 = vmatpush1.bf16.msra.mxu0 %v1582
        %1922 = vmatprep.subr.bf16.mxu0 %v1587
        %1923 = vmatpush1.bf16.msra.mxu0 %v1586
        %1924 = vmatprep.subr.bf16.mxu0 %v1591
        %1925 = vmatpush1.bf16.msra.mxu0 %v1590
        %1926 = vmatprep.subr.bf16.mxu0 %v1595
        %1927 = vmatpush1.bf16.msra.mxu0 %v1594
        %1928 = vmatprep.subr.bf16.mxu0 %v1599
        %1929 = vmatpush1.bf16.msra.mxu0 %v1598
        %1930 = vmatprep.subr.bf16.mxu0 %v1603
        %1931 = vmatpush1.bf16.msra.mxu0 %v1602
        %1932 = vmatprep.subr.bf16.mxu0 %v1607
        %1933 = vmatpush1.bf16.msra.mxu0 %v1606
        %1934 = vmatprep.subr.bf16.mxu0 %v1611
        %1935 = vmatpush1.bf16.msra.mxu0 %v1610
        %1936 = vmatprep.subr.bf16.mxu0 %v1615
        %1937 = vmatpush1.bf16.msra.mxu0 %v1614
        %1938 = vmatprep.subr.bf16.mxu0 %v1619
        %1939 = vmatpush1.bf16.msra.mxu0 %v1618
        %1940 = vmatprep.subr.bf16.mxu0 %v1623
        %1941 = vmatpush1.bf16.msra.mxu0 %v1622
        %1942 = vmatprep.subr.bf16.mxu0 %v1627
        %1943 = vmatpush1.bf16.msra.mxu0 %v1626
        %1944 = vmatprep.subr.bf16.mxu0 %v1631
        %1945 = vmatpush1.bf16.msra.mxu0 %v1630
        %1946 = vmatprep.subr.bf16.mxu0 %v1635
        %1947 = vmatpush1.bf16.msra.mxu0 %v1634
        %1948 = vmatprep.subr.bf16.mxu0 %v1639
        %1949 = vmatpush1.bf16.msra.mxu0 %v1638
        %1950 = vmatprep.mubr.bf16.mxu0 %v1035
        %1951 = vmatmul.mubr.bf16.gmra.mrb[0].mxu0 %v1034
        %v1952 = vpop.f32.mrb[0].mxu0
        %v1953 = vadd.f32 %v1183, %v1952
        %v1954 = vpop.f32.mrb[0].mxu0
        %v1955 = vadd.f32 %v1187, %v1954
        %v1956 = vpop.f32.mrb[0].mxu0
        %v1957 = vadd.f32 %v1183, %v1956
        %v1958 = vpop.f32.mrb[0].mxu0
        %v1959 = vadd.f32 %v1187, %v1958
        %1960 = vdwg.mxu0
        %1961 = vmatprep.subr.bf16.mxu0 %v1643
        %1962 = vmatpush1.bf16.msra.mxu0 %v1642
        %1963 = vmatprep.subr.bf16.mxu0 %v1647
        %1964 = vmatpush1.bf16.msra.mxu0 %v1646
        %1965 = vmatprep.subr.bf16.mxu0 %v1651
        %1966 = vmatpush1.bf16.msra.mxu0 %v1650
        %1967 = vmatprep.subr.bf16.mxu0 %v1655
        %1968 = vmatpush1.bf16.msra.mxu0 %v1654
        %1969 = vmatprep.subr.bf16.mxu0 %v1659
        %1970 = vmatpush1.bf16.msra.mxu0 %v1658
        %1971 = vmatprep.subr.bf16.mxu0 %v1663
        %1972 = vmatpush1.bf16.msra.mxu0 %v1662
        %1973 = vmatprep.subr.bf16.mxu0 %v1667
        %1974 = vmatpush1.bf16.msra.mxu0 %v1666
        %1975 = vmatprep.subr.bf16.mxu0 %v1671
        %1976 = vmatpush1.bf16.msra.mxu0 %v1670
        %1977 = vmatprep.subr.bf16.mxu0 %v1675
        %1978 = vmatpush1.bf16.msra.mxu0 %v1674
        %1979 = vmatprep.subr.bf16.mxu0 %v1679
        %1980 = vmatpush1.bf16.msra.mxu0 %v1678
        %1981 = vmatprep.subr.bf16.mxu0 %v1683
        %1982 = vmatpush1.bf16.msra.mxu0 %v1682
        %1983 = vmatprep.subr.bf16.mxu0 %v1687
        %1984 = vmatpush1.bf16.msra.mxu0 %v1686
        %1985 = vmatprep.subr.bf16.mxu0 %v1691
        %1986 = vmatpush1.bf16.msra.mxu0 %v1690
        %1987 = vmatprep.subr.bf16.mxu0 %v1695
        %1988 = vmatpush1.bf16.msra.mxu0 %v1694
        %1989 = vmatprep.subr.bf16.mxu0 %v1699
        %1990 = vmatpush1.bf16.msra.mxu0 %v1698
        %1991 = vmatprep.subr.bf16.mxu0 %v1703
        %1992 = vmatpush1.bf16.msra.mxu0 %v1702
        %1993 = vmatprep.mubr.bf16.mxu0 %v1037
        %1994 = vmatmul.mubr.bf16.gmra.mrb[0].mxu0 %v1036
        %v1995 = vpop.f32.mrb[0].mxu0
        %v1996 = vadd.f32 %v1953, %v1995
        %v1997 = vpop.f32.mrb[0].mxu0
        %v1998 = vadd.f32 %v1955, %v1997
        %v1999 = vpop.f32.mrb[0].mxu0
        %v2000 = vadd.f32 %v1957, %v1999
        %v2001 = vpop.f32.mrb[0].mxu0
        %v2002 = vadd.f32 %v1959, %v2001
        %2003 = vdwg.mxu0
        %v2004 = vmul.f32 %v1910, 0.01
        %v2005 = vmul.f32 %v1912, 0.01
        %v2006 = vmul.f32 %v1996, 0.01
        %v2007 = vmul.f32 %v1998, 0.01
        %v2008 = vmul.f32 %v1914, 0.01
        %v2009 = vmul.f32 %v1916, 0.01
        %v2010 = vmul.f32 %v2000, 0.01
        %v2011 = vmul.f32 %v2002, 0.01
        %v2012 = vmax.f32 %v1910, %v2004
        %v2013 = vmax.f32 %v1912, %v2005
        %v2014 = vmax.f32 %v1996, %v2006
        %v2015 = vmax.f32 %v1998, %v2007
        %v2016 = vmax.f32 %v1914, %v2008
        %v2017 = vmax.f32 %v1916, %v2009
        %v2018 = vmax.f32 %v2000, %v2010
        %v2019 = vmax.f32 %v2002, %v2011
        %v2020 = vpack.c.bf16 %v2016, %v2012
        %v2021 = vpack.c.bf16 %v2017, %v2013
        %v2022 = vpack.c.bf16 %v2018, %v2014
        %v2023 = vpack.c.bf16 %v2019, %v2015
        %v2024 = vld [vmem:[#allocation6] sm:$0xff]
        %v2025 = vld [vmem:[#allocation6 + $0x8] sm:$0xff]
        %v2026 = vld [vmem:[#allocation6 + $0x10] sm:$0xff]
        %v2027 = vld [vmem:[#allocation6 + $0x18] sm:$0xff]
        %v2028 = vld [vmem:[#allocation6 + $0x20] sm:$0xff]
        %v2029 = vld [vmem:[#allocation6 + $0x28] sm:$0xff]
        %v2030 = vld [vmem:[#allocation6 + $0x30] sm:$0xff]
        %v2031 = vld [vmem:[#allocation6 + $0x38] sm:$0xff]
        %v2032 = vld [vmem:[#allocation6 + $0x40] sm:$0xff]
        %v2033 = vld [vmem:[#allocation6 + $0x48] sm:$0xff]
        %v2034 = vld [vmem:[#allocation6 + $0x50] sm:$0xff]
        %v2035 = vld [vmem:[#allocation6 + $0x58] sm:$0xff]
        %v2036 = vld [vmem:[#allocation6 + $0x60] sm:$0xff]
        %v2037 = vld [vmem:[#allocation6 + $0x68] sm:$0xff]
        %v2038 = vld [vmem:[#allocation6 + $0x70] sm:$0xff]
        %v2039 = vld [vmem:[#allocation6 + $0x78] sm:$0xff]
        %v2040 = vld [vmem:[#allocation6 + $0x80] sm:$0xff]
        %v2041 = vld [vmem:[#allocation6 + $0x88] sm:$0xff]
        %v2042 = vld [vmem:[#allocation6 + $0x90] sm:$0xff]
        %v2043 = vld [vmem:[#allocation6 + $0x98] sm:$0xff]
        %v2044 = vld [vmem:[#allocation6 + $0xa0] sm:$0xff]
        %v2045 = vld [vmem:[#allocation6 + $0xa8] sm:$0xff]
        %v2046 = vld [vmem:[#allocation6 + $0xb0] sm:$0xff]
        %v2047 = vld [vmem:[#allocation6 + $0xb8] sm:$0xff]
        %v2048 = vld [vmem:[#allocation6 + $0xc0] sm:$0xff]
        %v2049 = vld [vmem:[#allocation6 + $0xc8] sm:$0xff]
        %v2050 = vld [vmem:[#allocation6 + $0xd0] sm:$0xff]
        %v2051 = vld [vmem:[#allocation6 + $0xd8] sm:$0xff]
        %v2052 = vld [vmem:[#allocation6 + $0xe0] sm:$0xff]
        %v2053 = vld [vmem:[#allocation6 + $0xe8] sm:$0xff]
        %v2054 = vld [vmem:[#allocation6 + $0xf0] sm:$0xff]
        %v2055 = vld [vmem:[#allocation6 + $0xf8] sm:$0xff]
        %v2056 = vld [vmem:[#allocation6 + $0x100] sm:$0xff]
        %v2057 = vld [vmem:[#allocation6 + $0x108] sm:$0xff]
        %v2058 = vld [vmem:[#allocation6 + $0x110] sm:$0xff]
        %v2059 = vld [vmem:[#allocation6 + $0x118] sm:$0xff]
        %v2060 = vld [vmem:[#allocation6 + $0x120] sm:$0xff]
        %v2061 = vld [vmem:[#allocation6 + $0x128] sm:$0xff]
        %v2062 = vld [vmem:[#allocation6 + $0x130] sm:$0xff]
        %v2063 = vld [vmem:[#allocation6 + $0x138] sm:$0xff]
        %v2064 = vld [vmem:[#allocation6 + $0x140] sm:$0xff]
        %v2065 = vld [vmem:[#allocation6 + $0x148] sm:$0xff]
        %v2066 = vld [vmem:[#allocation6 + $0x150] sm:$0xff]
        %v2067 = vld [vmem:[#allocation6 + $0x158] sm:$0xff]
        %v2068 = vld [vmem:[#allocation6 + $0x160] sm:$0xff]
        %v2069 = vld [vmem:[#allocation6 + $0x168] sm:$0xff]
        %v2070 = vld [vmem:[#allocation6 + $0x170] sm:$0xff]
        %v2071 = vld [vmem:[#allocation6 + $0x178] sm:$0xff]
        %v2072 = vld [vmem:[#allocation6 + $0x180] sm:$0xff]
        %v2073 = vld [vmem:[#allocation6 + $0x188] sm:$0xff]
        %v2074 = vld [vmem:[#allocation6 + $0x190] sm:$0xff]
        %v2075 = vld [vmem:[#allocation6 + $0x198] sm:$0xff]
        %v2076 = vld [vmem:[#allocation6 + $0x1a0] sm:$0xff]
        %v2077 = vld [vmem:[#allocation6 + $0x1a8] sm:$0xff]
        %v2078 = vld [vmem:[#allocation6 + $0x1b0] sm:$0xff]
        %v2079 = vld [vmem:[#allocation6 + $0x1b8] sm:$0xff]
        %v2080 = vld [vmem:[#allocation6 + $0x1c0] sm:$0xff]
        %v2081 = vld [vmem:[#allocation6 + $0x1c8] sm:$0xff]
        %v2082 = vld [vmem:[#allocation6 + $0x1d0] sm:$0xff]
        %v2083 = vld [vmem:[#allocation6 + $0x1d8] sm:$0xff]
        %v2084 = vld [vmem:[#allocation6 + $0x1e0] sm:$0xff]
        %v2085 = vld [vmem:[#allocation6 + $0x1e8] sm:$0xff]
        %v2086 = vld [vmem:[#allocation6 + $0x1f0] sm:$0xff]
        %v2087 = vld [vmem:[#allocation6 + $0x1f8] sm:$0xff]
        %v2088 = vld [vmem:[#allocation6 + $0x200] sm:$0xff]
        %v2089 = vld [vmem:[#allocation6 + $0x208] sm:$0xff]
        %v2090 = vld [vmem:[#allocation6 + $0x210] sm:$0xff]
        %v2091 = vld [vmem:[#allocation6 + $0x218] sm:$0xff]
        %v2092 = vld [vmem:[#allocation6 + $0x220] sm:$0xff]
        %v2093 = vld [vmem:[#allocation6 + $0x228] sm:$0xff]
        %v2094 = vld [vmem:[#allocation6 + $0x230] sm:$0xff]
        %v2095 = vld [vmem:[#allocation6 + $0x238] sm:$0xff]
        %v2096 = vld [vmem:[#allocation6 + $0x240] sm:$0xff]
        %v2097 = vld [vmem:[#allocation6 + $0x248] sm:$0xff]
        %v2098 = vld [vmem:[#allocation6 + $0x250] sm:$0xff]
        %v2099 = vld [vmem:[#allocation6 + $0x258] sm:$0xff]
        %v2100 = vld [vmem:[#allocation6 + $0x260] sm:$0xff]
        %v2101 = vld [vmem:[#allocation6 + $0x268] sm:$0xff]
        %v2102 = vld [vmem:[#allocation6 + $0x270] sm:$0xff]
        %v2103 = vld [vmem:[#allocation6 + $0x278] sm:$0xff]
        %v2104 = vld [vmem:[#allocation6 + $0x280] sm:$0xff]
        %v2105 = vld [vmem:[#allocation6 + $0x288] sm:$0xff]
        %v2106 = vld [vmem:[#allocation6 + $0x290] sm:$0xff]
        %v2107 = vld [vmem:[#allocation6 + $0x298] sm:$0xff]
        %v2108 = vld [vmem:[#allocation6 + $0x2a0] sm:$0xff]
        %v2109 = vld [vmem:[#allocation6 + $0x2a8] sm:$0xff]
        %v2110 = vld [vmem:[#allocation6 + $0x2b0] sm:$0xff]
        %v2111 = vld [vmem:[#allocation6 + $0x2b8] sm:$0xff]
        %v2112 = vld [vmem:[#allocation6 + $0x2c0] sm:$0xff]
        %v2113 = vld [vmem:[#allocation6 + $0x2c8] sm:$0xff]
        %v2114 = vld [vmem:[#allocation6 + $0x2d0] sm:$0xff]
        %v2115 = vld [vmem:[#allocation6 + $0x2d8] sm:$0xff]
        %v2116 = vld [vmem:[#allocation6 + $0x2e0] sm:$0xff]
        %v2117 = vld [vmem:[#allocation6 + $0x2e8] sm:$0xff]
        %v2118 = vld [vmem:[#allocation6 + $0x2f0] sm:$0xff]
        %v2119 = vld [vmem:[#allocation6 + $0x2f8] sm:$0xff]
        %v2120 = vld [vmem:[#allocation6 + $0x300] sm:$0xff]
        %v2121 = vld [vmem:[#allocation6 + $0x308] sm:$0xff]
        %v2122 = vld [vmem:[#allocation6 + $0x310] sm:$0xff]
        %v2123 = vld [vmem:[#allocation6 + $0x318] sm:$0xff]
        %v2124 = vld [vmem:[#allocation6 + $0x320] sm:$0xff]
        %v2125 = vld [vmem:[#allocation6 + $0x328] sm:$0xff]
        %v2126 = vld [vmem:[#allocation6 + $0x330] sm:$0xff]
        %v2127 = vld [vmem:[#allocation6 + $0x338] sm:$0xff]
        %v2128 = vld [vmem:[#allocation6 + $0x340] sm:$0xff]
        %v2129 = vld [vmem:[#allocation6 + $0x348] sm:$0xff]
        %v2130 = vld [vmem:[#allocation6 + $0x350] sm:$0xff]
        %v2131 = vld [vmem:[#allocation6 + $0x358] sm:$0xff]
        %v2132 = vld [vmem:[#allocation6 + $0x360] sm:$0xff]
        %v2133 = vld [vmem:[#allocation6 + $0x368] sm:$0xff]
        %v2134 = vld [vmem:[#allocation6 + $0x370] sm:$0xff]
        %v2135 = vld [vmem:[#allocation6 + $0x378] sm:$0xff]
        %v2136 = vld [vmem:[#allocation6 + $0x380] sm:$0xff]
        %v2137 = vld [vmem:[#allocation6 + $0x388] sm:$0xff]
        %v2138 = vld [vmem:[#allocation6 + $0x390] sm:$0xff]
        %v2139 = vld [vmem:[#allocation6 + $0x398] sm:$0xff]
        %v2140 = vld [vmem:[#allocation6 + $0x3a0] sm:$0xff]
        %v2141 = vld [vmem:[#allocation6 + $0x3a8] sm:$0xff]
        %v2142 = vld [vmem:[#allocation6 + $0x3b0] sm:$0xff]
        %v2143 = vld [vmem:[#allocation6 + $0x3b8] sm:$0xff]
        %v2144 = vld [vmem:[#allocation6 + $0x3c0] sm:$0xff]
        %v2145 = vld [vmem:[#allocation6 + $0x3c8] sm:$0xff]
        %v2146 = vld [vmem:[#allocation6 + $0x3d0] sm:$0xff]
        %v2147 = vld [vmem:[#allocation6 + $0x3d8] sm:$0xff]
        %v2148 = vld [vmem:[#allocation6 + $0x3e0] sm:$0xff]
        %v2149 = vld [vmem:[#allocation6 + $0x3e8] sm:$0xff]
        %v2150 = vld [vmem:[#allocation6 + $0x3f0] sm:$0xff]
        %v2151 = vld [vmem:[#allocation6 + $0x3f8] sm:$0xff]
        %v2152 = vld [vmem:[%s6] sm:$0xf]
        %v2154 = vlaneseq
        %v2155 = vshrl.u32 %v2154, 7
        %v2156 = vsub.s32 0, %v2155
        %v2157 = vrot.slane %v2152, %v2156
        %v2158 = vlaneseq
        %v2159 = vshrl.u32 %v2158, 7
        %v2160 = vsub.s32 1, %v2159
        %v2161 = vrot.slane %v2152, %v2160
        %v2162 = vlaneseq
        %v2163 = vshrl.u32 %v2162, 7
        %v2164 = vsub.s32 2, %v2163
        %v2165 = vrot.slane %v2152, %v2164
        %v2166 = vlaneseq
        %v2167 = vshrl.u32 %v2166, 7
        %v2168 = vsub.s32 3, %v2167
        %v2169 = vrot.slane %v2152, %v2168
        %v2302 = vunpack.c.l.b16 %v2024
        %v2303 = vunpack.c.h.b16 %v2024
        %v2304 = vunpack.c.l.b16 %v2025
        %v2305 = vunpack.c.h.b16 %v2025
        %v2306 = vunpack.c.l.b16 %v2026
        %v2307 = vunpack.c.h.b16 %v2026
        %v2308 = vunpack.c.l.b16 %v2027
        %v2309 = vunpack.c.h.b16 %v2027
        %v2310 = vunpack.c.l.b16 %v2028
        %v2311 = vunpack.c.h.b16 %v2028
        %v2312 = vunpack.c.l.b16 %v2029
        %v2313 = vunpack.c.h.b16 %v2029
        %v2314 = vunpack.c.l.b16 %v2030
        %v2315 = vunpack.c.h.b16 %v2030
        %v2316 = vunpack.c.l.b16 %v2031
        %v2317 = vunpack.c.h.b16 %v2031
        %v2318 = vunpack.c.l.b16 %v2032
        %v2319 = vunpack.c.h.b16 %v2032
        %v2320 = vunpack.c.l.b16 %v2033
        %v2321 = vunpack.c.h.b16 %v2033
        %v2322 = vunpack.c.l.b16 %v2034
        %v2323 = vunpack.c.h.b16 %v2034
        %v2324 = vunpack.c.l.b16 %v2035
        %v2325 = vunpack.c.h.b16 %v2035
        %v2326 = vunpack.c.l.b16 %v2036
        %v2327 = vunpack.c.h.b16 %v2036
        %v2328 = vunpack.c.l.b16 %v2037
        %v2329 = vunpack.c.h.b16 %v2037
        %v2330 = vunpack.c.l.b16 %v2038
        %v2331 = vunpack.c.h.b16 %v2038
        %v2332 = vunpack.c.l.b16 %v2039
        %v2333 = vunpack.c.h.b16 %v2039
        %v2334 = vunpack.c.l.b16 %v2040
        %v2335 = vunpack.c.h.b16 %v2040
        %v2336 = vunpack.c.l.b16 %v2041
        %v2337 = vunpack.c.h.b16 %v2041
        %v2338 = vunpack.c.l.b16 %v2042
        %v2339 = vunpack.c.h.b16 %v2042
        %v2340 = vunpack.c.l.b16 %v2043
        %v2341 = vunpack.c.h.b16 %v2043
        %v2342 = vunpack.c.l.b16 %v2044
        %v2343 = vunpack.c.h.b16 %v2044
        %v2344 = vunpack.c.l.b16 %v2045
        %v2345 = vunpack.c.h.b16 %v2045
        %v2346 = vunpack.c.l.b16 %v2046
        %v2347 = vunpack.c.h.b16 %v2046
        %v2348 = vunpack.c.l.b16 %v2047
        %v2349 = vunpack.c.h.b16 %v2047
        %v2350 = vunpack.c.l.b16 %v2048
        %v2351 = vunpack.c.h.b16 %v2048
        %v2352 = vunpack.c.l.b16 %v2049
        %v2353 = vunpack.c.h.b16 %v2049
        %v2354 = vunpack.c.l.b16 %v2050
        %v2355 = vunpack.c.h.b16 %v2050
        %v2356 = vunpack.c.l.b16 %v2051
        %v2357 = vunpack.c.h.b16 %v2051
        %v2358 = vunpack.c.l.b16 %v2052
        %v2359 = vunpack.c.h.b16 %v2052
        %v2360 = vunpack.c.l.b16 %v2053
        %v2361 = vunpack.c.h.b16 %v2053
        %v2362 = vunpack.c.l.b16 %v2054
        %v2363 = vunpack.c.h.b16 %v2054
        %v2364 = vunpack.c.l.b16 %v2055
        %v2365 = vunpack.c.h.b16 %v2055
        %v2366 = vunpack.c.l.b16 %v2056
        %v2367 = vunpack.c.h.b16 %v2056
        %v2368 = vunpack.c.l.b16 %v2057
        %v2369 = vunpack.c.h.b16 %v2057
        %v2370 = vunpack.c.l.b16 %v2058
        %v2371 = vunpack.c.h.b16 %v2058
        %v2372 = vunpack.c.l.b16 %v2059
        %v2373 = vunpack.c.h.b16 %v2059
        %v2374 = vunpack.c.l.b16 %v2060
        %v2375 = vunpack.c.h.b16 %v2060
        %v2376 = vunpack.c.l.b16 %v2061
        %v2377 = vunpack.c.h.b16 %v2061
        %v2378 = vunpack.c.l.b16 %v2062
        %v2379 = vunpack.c.h.b16 %v2062
        %v2380 = vunpack.c.l.b16 %v2063
        %v2381 = vunpack.c.h.b16 %v2063
        %v2382 = vunpack.c.l.b16 %v2064
        %v2383 = vunpack.c.h.b16 %v2064
        %v2384 = vunpack.c.l.b16 %v2065
        %v2385 = vunpack.c.h.b16 %v2065
        %v2386 = vunpack.c.l.b16 %v2066
        %v2387 = vunpack.c.h.b16 %v2066
        %v2388 = vunpack.c.l.b16 %v2067
        %v2389 = vunpack.c.h.b16 %v2067
        %v2390 = vunpack.c.l.b16 %v2068
        %v2391 = vunpack.c.h.b16 %v2068
        %v2392 = vunpack.c.l.b16 %v2069
        %v2393 = vunpack.c.h.b16 %v2069
        %v2394 = vunpack.c.l.b16 %v2070
        %v2395 = vunpack.c.h.b16 %v2070
        %v2396 = vunpack.c.l.b16 %v2071
        %v2397 = vunpack.c.h.b16 %v2071
        %v2398 = vunpack.c.l.b16 %v2072
        %v2399 = vunpack.c.h.b16 %v2072
        %v2400 = vunpack.c.l.b16 %v2073
        %v2401 = vunpack.c.h.b16 %v2073
        %v2402 = vunpack.c.l.b16 %v2074
        %v2403 = vunpack.c.h.b16 %v2074
        %v2404 = vunpack.c.l.b16 %v2075
        %v2405 = vunpack.c.h.b16 %v2075
        %v2406 = vunpack.c.l.b16 %v2076
        %v2407 = vunpack.c.h.b16 %v2076
        %v2408 = vunpack.c.l.b16 %v2077
        %v2409 = vunpack.c.h.b16 %v2077
        %v2410 = vunpack.c.l.b16 %v2078
        %v2411 = vunpack.c.h.b16 %v2078
        %v2412 = vunpack.c.l.b16 %v2079
        %v2413 = vunpack.c.h.b16 %v2079
        %v2414 = vunpack.c.l.b16 %v2080
        %v2415 = vunpack.c.h.b16 %v2080
        %v2416 = vunpack.c.l.b16 %v2081
        %v2417 = vunpack.c.h.b16 %v2081
        %v2418 = vunpack.c.l.b16 %v2082
        %v2419 = vunpack.c.h.b16 %v2082
        %v2420 = vunpack.c.l.b16 %v2083
        %v2421 = vunpack.c.h.b16 %v2083
        %v2422 = vunpack.c.l.b16 %v2084
        %v2423 = vunpack.c.h.b16 %v2084
        %v2424 = vunpack.c.l.b16 %v2085
        %v2425 = vunpack.c.h.b16 %v2085
        %v2426 = vunpack.c.l.b16 %v2086
        %v2427 = vunpack.c.h.b16 %v2086
        %v2428 = vunpack.c.l.b16 %v2087
        %v2429 = vunpack.c.h.b16 %v2087
        %v2430 = vunpack.c.l.b16 %v2088
        %v2431 = vunpack.c.h.b16 %v2088
        %v2432 = vunpack.c.l.b16 %v2089
        %v2433 = vunpack.c.h.b16 %v2089
        %v2434 = vunpack.c.l.b16 %v2090
        %v2435 = vunpack.c.h.b16 %v2090
        %v2436 = vunpack.c.l.b16 %v2091
        %v2437 = vunpack.c.h.b16 %v2091
        %v2438 = vunpack.c.l.b16 %v2092
        %v2439 = vunpack.c.h.b16 %v2092
        %v2440 = vunpack.c.l.b16 %v2093
        %v2441 = vunpack.c.h.b16 %v2093
        %v2442 = vunpack.c.l.b16 %v2094
        %v2443 = vunpack.c.h.b16 %v2094
        %v2444 = vunpack.c.l.b16 %v2095
        %v2445 = vunpack.c.h.b16 %v2095
        %v2446 = vunpack.c.l.b16 %v2096
        %v2447 = vunpack.c.h.b16 %v2096
        %v2448 = vunpack.c.l.b16 %v2097
        %v2449 = vunpack.c.h.b16 %v2097
        %v2450 = vunpack.c.l.b16 %v2098
        %v2451 = vunpack.c.h.b16 %v2098
        %v2452 = vunpack.c.l.b16 %v2099
        %v2453 = vunpack.c.h.b16 %v2099
        %v2454 = vunpack.c.l.b16 %v2100
        %v2455 = vunpack.c.h.b16 %v2100
        %v2456 = vunpack.c.l.b16 %v2101
        %v2457 = vunpack.c.h.b16 %v2101
        %v2458 = vunpack.c.l.b16 %v2102
        %v2459 = vunpack.c.h.b16 %v2102
        %v2460 = vunpack.c.l.b16 %v2103
        %v2461 = vunpack.c.h.b16 %v2103
        %v2462 = vunpack.c.l.b16 %v2104
        %v2463 = vunpack.c.h.b16 %v2104
        %v2464 = vunpack.c.l.b16 %v2105
        %v2465 = vunpack.c.h.b16 %v2105
        %v2466 = vunpack.c.l.b16 %v2106
        %v2467 = vunpack.c.h.b16 %v2106
        %v2468 = vunpack.c.l.b16 %v2107
        %v2469 = vunpack.c.h.b16 %v2107
        %v2470 = vunpack.c.l.b16 %v2108
        %v2471 = vunpack.c.h.b16 %v2108
        %v2472 = vunpack.c.l.b16 %v2109
        %v2473 = vunpack.c.h.b16 %v2109
        %v2474 = vunpack.c.l.b16 %v2110
        %v2475 = vunpack.c.h.b16 %v2110
        %v2476 = vunpack.c.l.b16 %v2111
        %v2477 = vunpack.c.h.b16 %v2111
        %v2478 = vunpack.c.l.b16 %v2112
        %v2479 = vunpack.c.h.b16 %v2112
        %v2480 = vunpack.c.l.b16 %v2113
        %v2481 = vunpack.c.h.b16 %v2113
        %v2482 = vunpack.c.l.b16 %v2114
        %v2483 = vunpack.c.h.b16 %v2114
        %v2484 = vunpack.c.l.b16 %v2115
        %v2485 = vunpack.c.h.b16 %v2115
        %v2486 = vunpack.c.l.b16 %v2116
        %v2487 = vunpack.c.h.b16 %v2116
        %v2488 = vunpack.c.l.b16 %v2117
        %v2489 = vunpack.c.h.b16 %v2117
        %v2490 = vunpack.c.l.b16 %v2118
        %v2491 = vunpack.c.h.b16 %v2118
        %v2492 = vunpack.c.l.b16 %v2119
        %v2493 = vunpack.c.h.b16 %v2119
        %v2494 = vunpack.c.l.b16 %v2120
        %v2495 = vunpack.c.h.b16 %v2120
        %v2496 = vunpack.c.l.b16 %v2121
        %v2497 = vunpack.c.h.b16 %v2121
        %v2498 = vunpack.c.l.b16 %v2122
        %v2499 = vunpack.c.h.b16 %v2122
        %v2500 = vunpack.c.l.b16 %v2123
        %v2501 = vunpack.c.h.b16 %v2123
        %v2502 = vunpack.c.l.b16 %v2124
        %v2503 = vunpack.c.h.b16 %v2124
        %v2504 = vunpack.c.l.b16 %v2125
        %v2505 = vunpack.c.h.b16 %v2125
        %v2506 = vunpack.c.l.b16 %v2126
        %v2507 = vunpack.c.h.b16 %v2126
        %v2508 = vunpack.c.l.b16 %v2127
        %v2509 = vunpack.c.h.b16 %v2127
        %v2510 = vunpack.c.l.b16 %v2128
        %v2511 = vunpack.c.h.b16 %v2128
        %v2512 = vunpack.c.l.b16 %v2129
        %v2513 = vunpack.c.h.b16 %v2129
        %v2514 = vunpack.c.l.b16 %v2130
        %v2515 = vunpack.c.h.b16 %v2130
        %v2516 = vunpack.c.l.b16 %v2131
        %v2517 = vunpack.c.h.b16 %v2131
        %v2518 = vunpack.c.l.b16 %v2132
        %v2519 = vunpack.c.h.b16 %v2132
        %v2520 = vunpack.c.l.b16 %v2133
        %v2521 = vunpack.c.h.b16 %v2133
        %v2522 = vunpack.c.l.b16 %v2134
        %v2523 = vunpack.c.h.b16 %v2134
        %v2524 = vunpack.c.l.b16 %v2135
        %v2525 = vunpack.c.h.b16 %v2135
        %v2526 = vunpack.c.l.b16 %v2136
        %v2527 = vunpack.c.h.b16 %v2136
        %v2528 = vunpack.c.l.b16 %v2137
        %v2529 = vunpack.c.h.b16 %v2137
        %v2530 = vunpack.c.l.b16 %v2138
        %v2531 = vunpack.c.h.b16 %v2138
        %v2532 = vunpack.c.l.b16 %v2139
        %v2533 = vunpack.c.h.b16 %v2139
        %v2534 = vunpack.c.l.b16 %v2140
        %v2535 = vunpack.c.h.b16 %v2140
        %v2536 = vunpack.c.l.b16 %v2141
        %v2537 = vunpack.c.h.b16 %v2141
        %v2538 = vunpack.c.l.b16 %v2142
        %v2539 = vunpack.c.h.b16 %v2142
        %v2540 = vunpack.c.l.b16 %v2143
        %v2541 = vunpack.c.h.b16 %v2143
        %v2542 = vunpack.c.l.b16 %v2144
        %v2543 = vunpack.c.h.b16 %v2144
        %v2544 = vunpack.c.l.b16 %v2145
        %v2545 = vunpack.c.h.b16 %v2145
        %v2546 = vunpack.c.l.b16 %v2146
        %v2547 = vunpack.c.h.b16 %v2146
        %v2548 = vunpack.c.l.b16 %v2147
        %v2549 = vunpack.c.h.b16 %v2147
        %v2550 = vunpack.c.l.b16 %v2148
        %v2551 = vunpack.c.h.b16 %v2148
        %v2552 = vunpack.c.l.b16 %v2149
        %v2553 = vunpack.c.h.b16 %v2149
        %v2554 = vunpack.c.l.b16 %v2150
        %v2555 = vunpack.c.h.b16 %v2150
        %v2556 = vunpack.c.l.b16 %v2151
        %v2557 = vunpack.c.h.b16 %v2151
        %v2558 = vpack.c.b16 %v2306, %v2302
        %v2559 = vpack.c.b16 %v2307, %v2303
        %v2560 = vpack.c.b16 %v2308, %v2304
        %v2561 = vpack.c.b16 %v2309, %v2305
        %v2562 = vpack.c.b16 %v2314, %v2310
        %v2563 = vpack.c.b16 %v2315, %v2311
        %v2564 = vpack.c.b16 %v2316, %v2312
        %v2565 = vpack.c.b16 %v2317, %v2313
        %v2566 = vpack.c.b16 %v2322, %v2318
        %v2567 = vpack.c.b16 %v2323, %v2319
        %v2568 = vpack.c.b16 %v2324, %v2320
        %v2569 = vpack.c.b16 %v2325, %v2321
        %v2570 = vpack.c.b16 %v2330, %v2326
        %v2571 = vpack.c.b16 %v2331, %v2327
        %v2572 = vpack.c.b16 %v2332, %v2328
        %v2573 = vpack.c.b16 %v2333, %v2329
        %v2574 = vpack.c.b16 %v2338, %v2334
        %v2575 = vpack.c.b16 %v2339, %v2335
        %v2576 = vpack.c.b16 %v2340, %v2336
        %v2577 = vpack.c.b16 %v2341, %v2337
        %v2578 = vpack.c.b16 %v2346, %v2342
        %v2579 = vpack.c.b16 %v2347, %v2343
        %v2580 = vpack.c.b16 %v2348, %v2344
        %v2581 = vpack.c.b16 %v2349, %v2345
        %v2582 = vpack.c.b16 %v2354, %v2350
        %v2583 = vpack.c.b16 %v2355, %v2351
        %v2584 = vpack.c.b16 %v2356, %v2352
        %v2585 = vpack.c.b16 %v2357, %v2353
        %v2586 = vpack.c.b16 %v2362, %v2358
        %v2587 = vpack.c.b16 %v2363, %v2359
        %v2588 = vpack.c.b16 %v2364, %v2360
        %v2589 = vpack.c.b16 %v2365, %v2361
        %v2590 = vpack.c.b16 %v2370, %v2366
        %v2591 = vpack.c.b16 %v2371, %v2367
        %v2592 = vpack.c.b16 %v2372, %v2368
        %v2593 = vpack.c.b16 %v2373, %v2369
        %v2594 = vpack.c.b16 %v2378, %v2374
        %v2595 = vpack.c.b16 %v2379, %v2375
        %v2596 = vpack.c.b16 %v2380, %v2376
        %v2597 = vpack.c.b16 %v2381, %v2377
        %v2598 = vpack.c.b16 %v2386, %v2382
        %v2599 = vpack.c.b16 %v2387, %v2383
        %v2600 = vpack.c.b16 %v2388, %v2384
        %v2601 = vpack.c.b16 %v2389, %v2385
        %v2602 = vpack.c.b16 %v2394, %v2390
        %v2603 = vpack.c.b16 %v2395, %v2391
        %v2604 = vpack.c.b16 %v2396, %v2392
        %v2605 = vpack.c.b16 %v2397, %v2393
        %v2606 = vpack.c.b16 %v2402, %v2398
        %v2607 = vpack.c.b16 %v2403, %v2399
        %v2608 = vpack.c.b16 %v2404, %v2400
        %v2609 = vpack.c.b16 %v2405, %v2401
        %v2610 = vpack.c.b16 %v2410, %v2406
        %v2611 = vpack.c.b16 %v2411, %v2407
        %v2612 = vpack.c.b16 %v2412, %v2408
        %v2613 = vpack.c.b16 %v2413, %v2409
        %v2614 = vpack.c.b16 %v2418, %v2414
        %v2615 = vpack.c.b16 %v2419, %v2415
        %v2616 = vpack.c.b16 %v2420, %v2416
        %v2617 = vpack.c.b16 %v2421, %v2417
        %v2618 = vpack.c.b16 %v2426, %v2422
        %v2619 = vpack.c.b16 %v2427, %v2423
        %v2620 = vpack.c.b16 %v2428, %v2424
        %v2621 = vpack.c.b16 %v2429, %v2425
        %v2622 = vpack.c.b16 %v2434, %v2430
        %v2623 = vpack.c.b16 %v2435, %v2431
        %v2624 = vpack.c.b16 %v2436, %v2432
        %v2625 = vpack.c.b16 %v2437, %v2433
        %v2626 = vpack.c.b16 %v2442, %v2438
        %v2627 = vpack.c.b16 %v2443, %v2439
        %v2628 = vpack.c.b16 %v2444, %v2440
        %v2629 = vpack.c.b16 %v2445, %v2441
        %v2630 = vpack.c.b16 %v2450, %v2446
        %v2631 = vpack.c.b16 %v2451, %v2447
        %v2632 = vpack.c.b16 %v2452, %v2448
        %v2633 = vpack.c.b16 %v2453, %v2449
        %v2634 = vpack.c.b16 %v2458, %v2454
        %v2635 = vpack.c.b16 %v2459, %v2455
        %v2636 = vpack.c.b16 %v2460, %v2456
        %v2637 = vpack.c.b16 %v2461, %v2457
        %v2638 = vpack.c.b16 %v2466, %v2462
        %v2639 = vpack.c.b16 %v2467, %v2463
        %v2640 = vpack.c.b16 %v2468, %v2464
        %v2641 = vpack.c.b16 %v2469, %v2465
        %v2642 = vpack.c.b16 %v2474, %v2470
        %v2643 = vpack.c.b16 %v2475, %v2471
        %v2644 = vpack.c.b16 %v2476, %v2472
        %v2645 = vpack.c.b16 %v2477, %v2473
        %v2646 = vpack.c.b16 %v2482, %v2478
        %v2647 = vpack.c.b16 %v2483, %v2479
        %v2648 = vpack.c.b16 %v2484, %v2480
        %v2649 = vpack.c.b16 %v2485, %v2481
        %v2650 = vpack.c.b16 %v2490, %v2486
        %v2651 = vpack.c.b16 %v2491, %v2487
        %v2652 = vpack.c.b16 %v2492, %v2488
        %v2653 = vpack.c.b16 %v2493, %v2489
        %v2654 = vpack.c.b16 %v2498, %v2494
        %v2655 = vpack.c.b16 %v2499, %v2495
        %v2656 = vpack.c.b16 %v2500, %v2496
        %v2657 = vpack.c.b16 %v2501, %v2497
        %v2658 = vpack.c.b16 %v2506, %v2502
        %v2659 = vpack.c.b16 %v2507, %v2503
        %v2660 = vpack.c.b16 %v2508, %v2504
        %v2661 = vpack.c.b16 %v2509, %v2505
        %v2662 = vpack.c.b16 %v2514, %v2510
        %v2663 = vpack.c.b16 %v2515, %v2511
        %v2664 = vpack.c.b16 %v2516, %v2512
        %v2665 = vpack.c.b16 %v2517, %v2513
        %v2666 = vpack.c.b16 %v2522, %v2518
        %v2667 = vpack.c.b16 %v2523, %v2519
        %v2668 = vpack.c.b16 %v2524, %v2520
        %v2669 = vpack.c.b16 %v2525, %v2521
        %v2670 = vpack.c.b16 %v2530, %v2526
        %v2671 = vpack.c.b16 %v2531, %v2527
        %v2672 = vpack.c.b16 %v2532, %v2528
        %v2673 = vpack.c.b16 %v2533, %v2529
        %v2674 = vpack.c.b16 %v2538, %v2534
        %v2675 = vpack.c.b16 %v2539, %v2535
        %v2676 = vpack.c.b16 %v2540, %v2536
        %v2677 = vpack.c.b16 %v2541, %v2537
        %v2678 = vpack.c.b16 %v2546, %v2542
        %v2679 = vpack.c.b16 %v2547, %v2543
        %v2680 = vpack.c.b16 %v2548, %v2544
        %v2681 = vpack.c.b16 %v2549, %v2545
        %v2682 = vpack.c.b16 %v2554, %v2550
        %v2683 = vpack.c.b16 %v2555, %v2551
        %v2684 = vpack.c.b16 %v2556, %v2552
        %v2685 = vpack.c.b16 %v2557, %v2553
        %2814 = vmatprep.subr.bf16.mxu0 %v2559
        %2815 = vmatpush1.bf16.msra.mxu0 %v2558
        %2816 = vmatprep.subr.bf16.mxu0 %v2563
        %2817 = vmatpush1.bf16.msra.mxu0 %v2562
        %2818 = vmatprep.subr.bf16.mxu0 %v2567
        %2819 = vmatpush1.bf16.msra.mxu0 %v2566
        %2820 = vmatprep.subr.bf16.mxu0 %v2571
        %2821 = vmatpush1.bf16.msra.mxu0 %v2570
        %2822 = vmatprep.subr.bf16.mxu0 %v2575
        %2823 = vmatpush1.bf16.msra.mxu0 %v2574
        %2824 = vmatprep.subr.bf16.mxu0 %v2579
        %2825 = vmatpush1.bf16.msra.mxu0 %v2578
        %2826 = vmatprep.subr.bf16.mxu0 %v2583
        %2827 = vmatpush1.bf16.msra.mxu0 %v2582
        %2828 = vmatprep.subr.bf16.mxu0 %v2587
        %2829 = vmatpush1.bf16.msra.mxu0 %v2586
        %2830 = vmatprep.subr.bf16.mxu0 %v2591
        %2831 = vmatpush1.bf16.msra.mxu0 %v2590
        %2832 = vmatprep.subr.bf16.mxu0 %v2595
        %2833 = vmatpush1.bf16.msra.mxu0 %v2594
        %2834 = vmatprep.subr.bf16.mxu0 %v2599
        %2835 = vmatpush1.bf16.msra.mxu0 %v2598
        %2836 = vmatprep.subr.bf16.mxu0 %v2603
        %2837 = vmatpush1.bf16.msra.mxu0 %v2602
        %2838 = vmatprep.subr.bf16.mxu0 %v2607
        %2839 = vmatpush1.bf16.msra.mxu0 %v2606
        %2840 = vmatprep.subr.bf16.mxu0 %v2611
        %2841 = vmatpush1.bf16.msra.mxu0 %v2610
        %2842 = vmatprep.subr.bf16.mxu0 %v2615
        %2843 = vmatpush1.bf16.msra.mxu0 %v2614
        %2844 = vmatprep.subr.bf16.mxu0 %v2619
        %2845 = vmatpush1.bf16.msra.mxu0 %v2618
        %2846 = vmatprep.mubr.bf16.mxu0 %v1039
        %2847 = vmatmul.mubr.bf16.gmra.mrb[0].mxu0 %v1038
        %v2848 = vpop.f32.mrb[0].mxu0
        %v2849 = vadd.f32 %v2157, %v2848
        %v2850 = vpop.f32.mrb[0].mxu0
        %v2851 = vadd.f32 %v2161, %v2850
        %v2852 = vpop.f32.mrb[0].mxu0
        %v2853 = vadd.f32 %v2157, %v2852
        %v2854 = vpop.f32.mrb[0].mxu0
        %v2855 = vadd.f32 %v2161, %v2854
        %2856 = vdwg.mxu0
        %2857 = vmatprep.subr.bf16.mxu0 %v2623
        %2858 = vmatpush1.bf16.msra.mxu0 %v2622
        %2859 = vmatprep.subr.bf16.mxu0 %v2627
        %2860 = vmatpush1.bf16.msra.mxu0 %v2626
        %2861 = vmatprep.subr.bf16.mxu0 %v2631
        %2862 = vmatpush1.bf16.msra.mxu0 %v2630
        %2863 = vmatprep.subr.bf16.mxu0 %v2635
        %2864 = vmatpush1.bf16.msra.mxu0 %v2634
        %2865 = vmatprep.subr.bf16.mxu0 %v2639
        %2866 = vmatpush1.bf16.msra.mxu0 %v2638
        %2867 = vmatprep.subr.bf16.mxu0 %v2643
        %2868 = vmatpush1.bf16.msra.mxu0 %v2642
        %2869 = vmatprep.subr.bf16.mxu0 %v2647
        %2870 = vmatpush1.bf16.msra.mxu0 %v2646
        %2871 = vmatprep.subr.bf16.mxu0 %v2651
        %2872 = vmatpush1.bf16.msra.mxu0 %v2650
        %2873 = vmatprep.subr.bf16.mxu0 %v2655
        %2874 = vmatpush1.bf16.msra.mxu0 %v2654
        %2875 = vmatprep.subr.bf16.mxu0 %v2659
        %2876 = vmatpush1.bf16.msra.mxu0 %v2658
        %2877 = vmatprep.subr.bf16.mxu0 %v2663
        %2878 = vmatpush1.bf16.msra.mxu0 %v2662
        %2879 = vmatprep.subr.bf16.mxu0 %v2667
        %2880 = vmatpush1.bf16.msra.mxu0 %v2666
        %2881 = vmatprep.subr.bf16.mxu0 %v2671
        %2882 = vmatpush1.bf16.msra.mxu0 %v2670
        %2883 = vmatprep.subr.bf16.mxu0 %v2675
        %2884 = vmatpush1.bf16.msra.mxu0 %v2674
        %2885 = vmatprep.subr.bf16.mxu0 %v2679
        %2886 = vmatpush1.bf16.msra.mxu0 %v2678
        %2887 = vmatprep.subr.bf16.mxu0 %v2683
        %2888 = vmatpush1.bf16.msra.mxu0 %v2682
        %2889 = vmatprep.mubr.bf16.mxu0 %v1041
        %2890 = vmatmul.mubr.bf16.gmra.mrb[0].mxu0 %v1040
        %v2891 = vpop.f32.mrb[0].mxu0
        %v2892 = vadd.f32 %v2849, %v2891
        %v2893 = vpop.f32.mrb[0].mxu0
        %v2894 = vadd.f32 %v2851, %v2893
        %v2895 = vpop.f32.mrb[0].mxu0
        %v2896 = vadd.f32 %v2853, %v2895
        %v2897 = vpop.f32.mrb[0].mxu0
        %v2898 = vadd.f32 %v2855, %v2897
        %2899 = vdwg.mxu0
        %2900 = vmatprep.subr.bf16.mxu0 %v2561
        %2901 = vmatpush1.bf16.msra.mxu0 %v2560
        %2902 = vmatprep.subr.bf16.mxu0 %v2565
        %2903 = vmatpush1.bf16.msra.mxu0 %v2564
        %2904 = vmatprep.subr.bf16.mxu0 %v2569
        %2905 = vmatpush1.bf16.msra.mxu0 %v2568
        %2906 = vmatprep.subr.bf16.mxu0 %v2573
        %2907 = vmatpush1.bf16.msra.mxu0 %v2572
        %2908 = vmatprep.subr.bf16.mxu0 %v2577
        %2909 = vmatpush1.bf16.msra.mxu0 %v2576
        %2910 = vmatprep.subr.bf16.mxu0 %v2581
        %2911 = vmatpush1.bf16.msra.mxu0 %v2580
        %2912 = vmatprep.subr.bf16.mxu0 %v2585
        %2913 = vmatpush1.bf16.msra.mxu0 %v2584
        %2914 = vmatprep.subr.bf16.mxu0 %v2589
        %2915 = vmatpush1.bf16.msra.mxu0 %v2588
        %2916 = vmatprep.subr.bf16.mxu0 %v2593
        %2917 = vmatpush1.bf16.msra.mxu0 %v2592
        %2918 = vmatprep.subr.bf16.mxu0 %v2597
        %2919 = vmatpush1.bf16.msra.mxu0 %v2596
        %2920 = vmatprep.subr.bf16.mxu0 %v2601
        %2921 = vmatpush1.bf16.msra.mxu0 %v2600
        %2922 = vmatprep.subr.bf16.mxu0 %v2605
        %2923 = vmatpush1.bf16.msra.mxu0 %v2604
        %2924 = vmatprep.subr.bf16.mxu0 %v2609
        %2925 = vmatpush1.bf16.msra.mxu0 %v2608
        %2926 = vmatprep.subr.bf16.mxu0 %v2613
        %2927 = vmatpush1.bf16.msra.mxu0 %v2612
        %2928 = vmatprep.subr.bf16.mxu0 %v2617
        %2929 = vmatpush1.bf16.msra.mxu0 %v2616
        %2930 = vmatprep.subr.bf16.mxu0 %v2621
        %2931 = vmatpush1.bf16.msra.mxu0 %v2620
        %2932 = vmatprep.mubr.bf16.mxu0 %v1039
        %2933 = vmatmul.mubr.bf16.gmra.mrb[0].mxu0 %v1038
        %v2934 = vpop.f32.mrb[0].mxu0
        %v2935 = vadd.f32 %v2165, %v2934
        %v2936 = vpop.f32.mrb[0].mxu0
        %v2937 = vadd.f32 %v2169, %v2936
        %v2938 = vpop.f32.mrb[0].mxu0
        %v2939 = vadd.f32 %v2165, %v2938
        %v2940 = vpop.f32.mrb[0].mxu0
        %v2941 = vadd.f32 %v2169, %v2940
        %2942 = vdwg.mxu0
        %2943 = vmatprep.subr.bf16.mxu0 %v2625
        %2944 = vmatpush1.bf16.msra.mxu0 %v2624
        %2945 = vmatprep.subr.bf16.mxu0 %v2629
        %2946 = vmatpush1.bf16.msra.mxu0 %v2628
        %2947 = vmatprep.subr.bf16.mxu0 %v2633
        %2948 = vmatpush1.bf16.msra.mxu0 %v2632
        %2949 = vmatprep.subr.bf16.mxu0 %v2637
        %2950 = vmatpush1.bf16.msra.mxu0 %v2636
        %2951 = vmatprep.subr.bf16.mxu0 %v2641
        %2952 = vmatpush1.bf16.msra.mxu0 %v2640
        %2953 = vmatprep.subr.bf16.mxu0 %v2645
        %2954 = vmatpush1.bf16.msra.mxu0 %v2644
        %2955 = vmatprep.subr.bf16.mxu0 %v2649
        %2956 = vmatpush1.bf16.msra.mxu0 %v2648
        %2957 = vmatprep.subr.bf16.mxu0 %v2653
        %2958 = vmatpush1.bf16.msra.mxu0 %v2652
        %2959 = vmatprep.subr.bf16.mxu0 %v2657
        %2960 = vmatpush1.bf16.msra.mxu0 %v2656
        %2961 = vmatprep.subr.bf16.mxu0 %v2661
        %2962 = vmatpush1.bf16.msra.mxu0 %v2660
        %2963 = vmatprep.subr.bf16.mxu0 %v2665
        %2964 = vmatpush1.bf16.msra.mxu0 %v2664
        %2965 = vmatprep.subr.bf16.mxu0 %v2669
        %2966 = vmatpush1.bf16.msra.mxu0 %v2668
        %2967 = vmatprep.subr.bf16.mxu0 %v2673
        %2968 = vmatpush1.bf16.msra.mxu0 %v2672
        %2969 = vmatprep.subr.bf16.mxu0 %v2677
        %2970 = vmatpush1.bf16.msra.mxu0 %v2676
        %2971 = vmatprep.subr.bf16.mxu0 %v2681
        %2972 = vmatpush1.bf16.msra.mxu0 %v2680
        %2973 = vmatprep.subr.bf16.mxu0 %v2685
        %2974 = vmatpush1.bf16.msra.mxu0 %v2684
        %2975 = vmatprep.mubr.bf16.mxu0 %v1041
        %2976 = vmatmul.mubr.bf16.gmra.mrb[0].mxu0 %v1040
        %v2977 = vpop.f32.mrb[0].mxu0
        %v2978 = vadd.f32 %v2935, %v2977
        %v2979 = vpop.f32.mrb[0].mxu0
        %v2980 = vadd.f32 %v2937, %v2979
        %v2981 = vpop.f32.mrb[0].mxu0
        %v2982 = vadd.f32 %v2939, %v2981
        %v2983 = vpop.f32.mrb[0].mxu0
        %v2984 = vadd.f32 %v2941, %v2983
        %2985 = vdwg.mxu0
        %v2986 = vmul.f32 %v2892, 0.01
        %v2987 = vmul.f32 %v2894, 0.01
        %v2988 = vmul.f32 %v2978, 0.01
        %v2989 = vmul.f32 %v2980, 0.01
        %v2990 = vmul.f32 %v2896, 0.01
        %v2991 = vmul.f32 %v2898, 0.01
        %v2992 = vmul.f32 %v2982, 0.01
        %v2993 = vmul.f32 %v2984, 0.01
        %v2994 = vmax.f32 %v2892, %v2986
        %v2995 = vmax.f32 %v2894, %v2987
        %v2996 = vmax.f32 %v2978, %v2988
        %v2997 = vmax.f32 %v2980, %v2989
        %v2998 = vmax.f32 %v2896, %v2990
        %v2999 = vmax.f32 %v2898, %v2991
        %v3000 = vmax.f32 %v2982, %v2992
        %v3001 = vmax.f32 %v2984, %v2993
        %v3002 = vpack.c.bf16 %v2998, %v2994
        %v3003 = vpack.c.bf16 %v2999, %v2995
        %v3004 = vpack.c.bf16 %v3000, %v2996
        %v3005 = vpack.c.bf16 %v3001, %v2997
        %v3006 = vld [vmem:[#allocation7] sm:$0xf]
        %v3007 = vld [vmem:[#allocation7 + $0x4] sm:$0xf]
        %v3008 = vld [vmem:[#allocation7 + $0x8] sm:$0xf]
        %v3009 = vld [vmem:[#allocation7 + $0xc] sm:$0xf]
        %v3010 = vld [vmem:[#allocation7 + $0x10] sm:$0xf]
        %v3011 = vld [vmem:[#allocation7 + $0x14] sm:$0xf]
        %v3012 = vld [vmem:[#allocation7 + $0x18] sm:$0xf]
        %v3013 = vld [vmem:[#allocation7 + $0x1c] sm:$0xf]
        %v3014 = vld [vmem:[#allocation7 + $0x20] sm:$0xf]
        %v3015 = vld [vmem:[#allocation7 + $0x24] sm:$0xf]
        %v3016 = vld [vmem:[#allocation7 + $0x28] sm:$0xf]
        %v3017 = vld [vmem:[#allocation7 + $0x2c] sm:$0xf]
        %v3018 = vld [vmem:[#allocation7 + $0x30] sm:$0xf]
        %v3019 = vld [vmem:[#allocation7 + $0x34] sm:$0xf]
        %v3020 = vld [vmem:[#allocation7 + $0x38] sm:$0xf]
        %v3021 = vld [vmem:[#allocation7 + $0x3c] sm:$0xf]
        %v3022 = vld [vmem:[#allocation7 + $0x40] sm:$0xf]
        %v3023 = vld [vmem:[#allocation7 + $0x44] sm:$0xf]
        %v3024 = vld [vmem:[#allocation7 + $0x48] sm:$0xf]
        %v3025 = vld [vmem:[#allocation7 + $0x4c] sm:$0xf]
        %v3026 = vld [vmem:[#allocation7 + $0x50] sm:$0xf]
        %v3027 = vld [vmem:[#allocation7 + $0x54] sm:$0xf]
        %v3028 = vld [vmem:[#allocation7 + $0x58] sm:$0xf]
        %v3029 = vld [vmem:[#allocation7 + $0x5c] sm:$0xf]
        %v3030 = vld [vmem:[#allocation7 + $0x60] sm:$0xf]
        %v3031 = vld [vmem:[#allocation7 + $0x64] sm:$0xf]
        %v3032 = vld [vmem:[#allocation7 + $0x68] sm:$0xf]
        %v3033 = vld [vmem:[#allocation7 + $0x6c] sm:$0xf]
        %v3034 = vld [vmem:[#allocation7 + $0x70] sm:$0xf]
        %v3035 = vld [vmem:[#allocation7 + $0x74] sm:$0xf]
        %v3036 = vld [vmem:[#allocation7 + $0x78] sm:$0xf]
        %v3037 = vld [vmem:[#allocation7 + $0x7c] sm:$0xf]
        %v3038 = vld [vmem:[#allocation7 + $0x80] sm:$0xf]
        %v3039 = vld [vmem:[#allocation7 + $0x84] sm:$0xf]
        %v3040 = vld [vmem:[#allocation7 + $0x88] sm:$0xf]
        %v3041 = vld [vmem:[#allocation7 + $0x8c] sm:$0xf]
        %v3042 = vld [vmem:[#allocation7 + $0x90] sm:$0xf]
        %v3043 = vld [vmem:[#allocation7 + $0x94] sm:$0xf]
        %v3044 = vld [vmem:[#allocation7 + $0x98] sm:$0xf]
        %v3045 = vld [vmem:[#allocation7 + $0x9c] sm:$0xf]
        %v3046 = vld [vmem:[#allocation7 + $0xa0] sm:$0xf]
        %v3047 = vld [vmem:[#allocation7 + $0xa4] sm:$0xf]
        %v3048 = vld [vmem:[#allocation7 + $0xa8] sm:$0xf]
        %v3049 = vld [vmem:[#allocation7 + $0xac] sm:$0xf]
        %v3050 = vld [vmem:[#allocation7 + $0xb0] sm:$0xf]
        %v3051 = vld [vmem:[#allocation7 + $0xb4] sm:$0xf]
        %v3052 = vld [vmem:[#allocation7 + $0xb8] sm:$0xf]
        %v3053 = vld [vmem:[#allocation7 + $0xbc] sm:$0xf]
        %v3054 = vld [vmem:[#allocation7 + $0xc0] sm:$0xf]
        %v3055 = vld [vmem:[#allocation7 + $0xc4] sm:$0xf]
        %v3056 = vld [vmem:[#allocation7 + $0xc8] sm:$0xf]
        %v3057 = vld [vmem:[#allocation7 + $0xcc] sm:$0xf]
        %v3058 = vld [vmem:[#allocation7 + $0xd0] sm:$0xf]
        %v3059 = vld [vmem:[#allocation7 + $0xd4] sm:$0xf]
        %v3060 = vld [vmem:[#allocation7 + $0xd8] sm:$0xf]
        %v3061 = vld [vmem:[#allocation7 + $0xdc] sm:$0xf]
        %v3062 = vld [vmem:[#allocation7 + $0xe0] sm:$0xf]
        %v3063 = vld [vmem:[#allocation7 + $0xe4] sm:$0xf]
        %v3064 = vld [vmem:[#allocation7 + $0xe8] sm:$0xf]
        %v3065 = vld [vmem:[#allocation7 + $0xec] sm:$0xf]
        %v3066 = vld [vmem:[#allocation7 + $0xf0] sm:$0xf]
        %v3067 = vld [vmem:[#allocation7 + $0xf4] sm:$0xf]
        %v3068 = vld [vmem:[#allocation7 + $0xf8] sm:$0xf]
        %v3069 = vld [vmem:[#allocation7 + $0xfc] sm:$0xf]
        %v3070 = vld [vmem:[#allocation7 + $0x100] sm:$0xf]
        %v3071 = vld [vmem:[#allocation7 + $0x104] sm:$0xf]
        %v3072 = vld [vmem:[#allocation7 + $0x108] sm:$0xf]
        %v3073 = vld [vmem:[#allocation7 + $0x10c] sm:$0xf]
        %v3074 = vld [vmem:[#allocation7 + $0x110] sm:$0xf]
        %v3075 = vld [vmem:[#allocation7 + $0x114] sm:$0xf]
        %v3076 = vld [vmem:[#allocation7 + $0x118] sm:$0xf]
        %v3077 = vld [vmem:[#allocation7 + $0x11c] sm:$0xf]
        %v3078 = vld [vmem:[#allocation7 + $0x120] sm:$0xf]
        %v3079 = vld [vmem:[#allocation7 + $0x124] sm:$0xf]
        %v3080 = vld [vmem:[#allocation7 + $0x128] sm:$0xf]
        %v3081 = vld [vmem:[#allocation7 + $0x12c] sm:$0xf]
        %v3082 = vld [vmem:[#allocation7 + $0x130] sm:$0xf]
        %v3083 = vld [vmem:[#allocation7 + $0x134] sm:$0xf]
        %v3084 = vld [vmem:[#allocation7 + $0x138] sm:$0xf]
        %v3085 = vld [vmem:[#allocation7 + $0x13c] sm:$0xf]
        %v3086 = vld [vmem:[#allocation7 + $0x140] sm:$0xf]
        %v3087 = vld [vmem:[#allocation7 + $0x144] sm:$0xf]
        %v3088 = vld [vmem:[#allocation7 + $0x148] sm:$0xf]
        %v3089 = vld [vmem:[#allocation7 + $0x14c] sm:$0xf]
        %v3090 = vld [vmem:[#allocation7 + $0x150] sm:$0xf]
        %v3091 = vld [vmem:[#allocation7 + $0x154] sm:$0xf]
        %v3092 = vld [vmem:[#allocation7 + $0x158] sm:$0xf]
        %v3093 = vld [vmem:[#allocation7 + $0x15c] sm:$0xf]
        %v3094 = vld [vmem:[#allocation7 + $0x160] sm:$0xf]
        %v3095 = vld [vmem:[#allocation7 + $0x164] sm:$0xf]
        %v3096 = vld [vmem:[#allocation7 + $0x168] sm:$0xf]
        %v3097 = vld [vmem:[#allocation7 + $0x16c] sm:$0xf]
        %v3098 = vld [vmem:[#allocation7 + $0x170] sm:$0xf]
        %v3099 = vld [vmem:[#allocation7 + $0x174] sm:$0xf]
        %v3100 = vld [vmem:[#allocation7 + $0x178] sm:$0xf]
        %v3101 = vld [vmem:[#allocation7 + $0x17c] sm:$0xf]
        %v3102 = vld [vmem:[#allocation7 + $0x180] sm:$0xf]
        %v3103 = vld [vmem:[#allocation7 + $0x184] sm:$0xf]
        %v3104 = vld [vmem:[#allocation7 + $0x188] sm:$0xf]
        %v3105 = vld [vmem:[#allocation7 + $0x18c] sm:$0xf]
        %v3106 = vld [vmem:[#allocation7 + $0x190] sm:$0xf]
        %v3107 = vld [vmem:[#allocation7 + $0x194] sm:$0xf]
        %v3108 = vld [vmem:[#allocation7 + $0x198] sm:$0xf]
        %v3109 = vld [vmem:[#allocation7 + $0x19c] sm:$0xf]
        %v3110 = vld [vmem:[#allocation7 + $0x1a0] sm:$0xf]
        %v3111 = vld [vmem:[#allocation7 + $0x1a4] sm:$0xf]
        %v3112 = vld [vmem:[#allocation7 + $0x1a8] sm:$0xf]
        %v3113 = vld [vmem:[#allocation7 + $0x1ac] sm:$0xf]
        %v3114 = vld [vmem:[#allocation7 + $0x1b0] sm:$0xf]
        %v3115 = vld [vmem:[#allocation7 + $0x1b4] sm:$0xf]
        %v3116 = vld [vmem:[#allocation7 + $0x1b8] sm:$0xf]
        %v3117 = vld [vmem:[#allocation7 + $0x1bc] sm:$0xf]
        %v3118 = vld [vmem:[#allocation7 + $0x1c0] sm:$0xf]
        %v3119 = vld [vmem:[#allocation7 + $0x1c4] sm:$0xf]
        %v3120 = vld [vmem:[#allocation7 + $0x1c8] sm:$0xf]
        %v3121 = vld [vmem:[#allocation7 + $0x1cc] sm:$0xf]
        %v3122 = vld [vmem:[#allocation7 + $0x1d0] sm:$0xf]
        %v3123 = vld [vmem:[#allocation7 + $0x1d4] sm:$0xf]
        %v3124 = vld [vmem:[#allocation7 + $0x1d8] sm:$0xf]
        %v3125 = vld [vmem:[#allocation7 + $0x1dc] sm:$0xf]
        %v3126 = vld [vmem:[#allocation7 + $0x1e0] sm:$0xf]
        %v3127 = vld [vmem:[#allocation7 + $0x1e4] sm:$0xf]
        %v3128 = vld [vmem:[#allocation7 + $0x1e8] sm:$0xf]
        %v3129 = vld [vmem:[#allocation7 + $0x1ec] sm:$0xf]
        %v3130 = vld [vmem:[#allocation7 + $0x1f0] sm:$0xf]
        %v3131 = vld [vmem:[#allocation7 + $0x1f4] sm:$0xf]
        %v3132 = vld [vmem:[#allocation7 + $0x1f8] sm:$0xf]
        %v3133 = vld [vmem:[#allocation7 + $0x1fc] sm:$0xf]
        %v3134 = vld [vmem:[%s8] sm:$0x1]
        %v3136 = vlaneseq
        %v3137 = vshrl.u32 %v3136, 7
        %v3138 = vsub.s32 0, %v3137
        %v3139 = vrot.slane %v3134, %v3138
        %v3269 = vunpack.c.l.b16 %v3006
        %v3270 = vunpack.c.l.b16 %v3007
        %v3271 = vunpack.c.l.b16 %v3008
        %v3272 = vunpack.c.l.b16 %v3009
        %v3273 = vunpack.c.l.b16 %v3010
        %v3274 = vunpack.c.l.b16 %v3011
        %v3275 = vunpack.c.l.b16 %v3012
        %v3276 = vunpack.c.l.b16 %v3013
        %v3277 = vunpack.c.l.b16 %v3014
        %v3278 = vunpack.c.l.b16 %v3015
        %v3279 = vunpack.c.l.b16 %v3016
        %v3280 = vunpack.c.l.b16 %v3017
        %v3281 = vunpack.c.l.b16 %v3018
        %v3282 = vunpack.c.l.b16 %v3019
        %v3283 = vunpack.c.l.b16 %v3020
        %v3284 = vunpack.c.l.b16 %v3021
        %v3285 = vunpack.c.l.b16 %v3022
        %v3286 = vunpack.c.l.b16 %v3023
        %v3287 = vunpack.c.l.b16 %v3024
        %v3288 = vunpack.c.l.b16 %v3025
        %v3289 = vunpack.c.l.b16 %v3026
        %v3290 = vunpack.c.l.b16 %v3027
        %v3291 = vunpack.c.l.b16 %v3028
        %v3292 = vunpack.c.l.b16 %v3029
        %v3293 = vunpack.c.l.b16 %v3030
        %v3294 = vunpack.c.l.b16 %v3031
        %v3295 = vunpack.c.l.b16 %v3032
        %v3296 = vunpack.c.l.b16 %v3033
        %v3297 = vunpack.c.l.b16 %v3034
        %v3298 = vunpack.c.l.b16 %v3035
        %v3299 = vunpack.c.l.b16 %v3036
        %v3300 = vunpack.c.l.b16 %v3037
        %v3301 = vunpack.c.l.b16 %v3038
        %v3302 = vunpack.c.l.b16 %v3039
        %v3303 = vunpack.c.l.b16 %v3040
        %v3304 = vunpack.c.l.b16 %v3041
        %v3305 = vunpack.c.l.b16 %v3042
        %v3306 = vunpack.c.l.b16 %v3043
        %v3307 = vunpack.c.l.b16 %v3044
        %v3308 = vunpack.c.l.b16 %v3045
        %v3309 = vunpack.c.l.b16 %v3046
        %v3310 = vunpack.c.l.b16 %v3047
        %v3311 = vunpack.c.l.b16 %v3048
        %v3312 = vunpack.c.l.b16 %v3049
        %v3313 = vunpack.c.l.b16 %v3050
        %v3314 = vunpack.c.l.b16 %v3051
        %v3315 = vunpack.c.l.b16 %v3052
        %v3316 = vunpack.c.l.b16 %v3053
        %v3317 = vunpack.c.l.b16 %v3054
        %v3318 = vunpack.c.l.b16 %v3055
        %v3319 = vunpack.c.l.b16 %v3056
        %v3320 = vunpack.c.l.b16 %v3057
        %v3321 = vunpack.c.l.b16 %v3058
        %v3322 = vunpack.c.l.b16 %v3059
        %v3323 = vunpack.c.l.b16 %v3060
        %v3324 = vunpack.c.l.b16 %v3061
        %v3325 = vunpack.c.l.b16 %v3062
        %v3326 = vunpack.c.l.b16 %v3063
        %v3327 = vunpack.c.l.b16 %v3064
        %v3328 = vunpack.c.l.b16 %v3065
        %v3329 = vunpack.c.l.b16 %v3066
        %v3330 = vunpack.c.l.b16 %v3067
        %v3331 = vunpack.c.l.b16 %v3068
        %v3332 = vunpack.c.l.b16 %v3069
        %v3333 = vunpack.c.l.b16 %v3070
        %v3334 = vunpack.c.l.b16 %v3071
        %v3335 = vunpack.c.l.b16 %v3072
        %v3336 = vunpack.c.l.b16 %v3073
        %v3337 = vunpack.c.l.b16 %v3074
        %v3338 = vunpack.c.l.b16 %v3075
        %v3339 = vunpack.c.l.b16 %v3076
        %v3340 = vunpack.c.l.b16 %v3077
        %v3341 = vunpack.c.l.b16 %v3078
        %v3342 = vunpack.c.l.b16 %v3079
        %v3343 = vunpack.c.l.b16 %v3080
        %v3344 = vunpack.c.l.b16 %v3081
        %v3345 = vunpack.c.l.b16 %v3082
        %v3346 = vunpack.c.l.b16 %v3083
        %v3347 = vunpack.c.l.b16 %v3084
        %v3348 = vunpack.c.l.b16 %v3085
        %v3349 = vunpack.c.l.b16 %v3086
        %v3350 = vunpack.c.l.b16 %v3087
        %v3351 = vunpack.c.l.b16 %v3088
        %v3352 = vunpack.c.l.b16 %v3089
        %v3353 = vunpack.c.l.b16 %v3090
        %v3354 = vunpack.c.l.b16 %v3091
        %v3355 = vunpack.c.l.b16 %v3092
        %v3356 = vunpack.c.l.b16 %v3093
        %v3357 = vunpack.c.l.b16 %v3094
        %v3358 = vunpack.c.l.b16 %v3095
        %v3359 = vunpack.c.l.b16 %v3096
        %v3360 = vunpack.c.l.b16 %v3097
        %v3361 = vunpack.c.l.b16 %v3098
        %v3362 = vunpack.c.l.b16 %v3099
        %v3363 = vunpack.c.l.b16 %v3100
        %v3364 = vunpack.c.l.b16 %v3101
        %v3365 = vunpack.c.l.b16 %v3102
        %v3366 = vunpack.c.l.b16 %v3103
        %v3367 = vunpack.c.l.b16 %v3104
        %v3368 = vunpack.c.l.b16 %v3105
        %v3369 = vunpack.c.l.b16 %v3106
        %v3370 = vunpack.c.l.b16 %v3107
        %v3371 = vunpack.c.l.b16 %v3108
        %v3372 = vunpack.c.l.b16 %v3109
        %v3373 = vunpack.c.l.b16 %v3110
        %v3374 = vunpack.c.l.b16 %v3111
        %v3375 = vunpack.c.l.b16 %v3112
        %v3376 = vunpack.c.l.b16 %v3113
        %v3377 = vunpack.c.l.b16 %v3114
        %v3378 = vunpack.c.l.b16 %v3115
        %v3379 = vunpack.c.l.b16 %v3116
        %v3380 = vunpack.c.l.b16 %v3117
        %v3381 = vunpack.c.l.b16 %v3118
        %v3382 = vunpack.c.l.b16 %v3119
        %v3383 = vunpack.c.l.b16 %v3120
        %v3384 = vunpack.c.l.b16 %v3121
        %v3385 = vunpack.c.l.b16 %v3122
        %v3386 = vunpack.c.l.b16 %v3123
        %v3387 = vunpack.c.l.b16 %v3124
        %v3388 = vunpack.c.l.b16 %v3125
        %v3389 = vunpack.c.l.b16 %v3126
        %v3390 = vunpack.c.l.b16 %v3127
        %v3391 = vunpack.c.l.b16 %v3128
        %v3392 = vunpack.c.l.b16 %v3129
        %v3393 = vunpack.c.l.b16 %v3130
        %v3394 = vunpack.c.l.b16 %v3131
        %v3395 = vunpack.c.l.b16 %v3132
        %v3396 = vunpack.c.l.b16 %v3133
        %v3397 = vpack.c.b16 %v3270, %v3269
        %v3398 = vpack.c.b16 %v3272, %v3271
        %v3399 = vpack.c.b16 %v3274, %v3273
        %v3400 = vpack.c.b16 %v3276, %v3275
        %v3401 = vpack.c.b16 %v3278, %v3277
        %v3402 = vpack.c.b16 %v3280, %v3279
        %v3403 = vpack.c.b16 %v3282, %v3281
        %v3404 = vpack.c.b16 %v3284, %v3283
        %v3405 = vpack.c.b16 %v3286, %v3285
        %v3406 = vpack.c.b16 %v3288, %v3287
        %v3407 = vpack.c.b16 %v3290, %v3289
        %v3408 = vpack.c.b16 %v3292, %v3291
        %v3409 = vpack.c.b16 %v3294, %v3293
        %v3410 = vpack.c.b16 %v3296, %v3295
        %v3411 = vpack.c.b16 %v3298, %v3297
        %v3412 = vpack.c.b16 %v3300, %v3299
        %v3413 = vpack.c.b16 %v3302, %v3301
        %v3414 = vpack.c.b16 %v3304, %v3303
        %v3415 = vpack.c.b16 %v3306, %v3305
        %v3416 = vpack.c.b16 %v3308, %v3307
        %v3417 = vpack.c.b16 %v3310, %v3309
        %v3418 = vpack.c.b16 %v3312, %v3311
        %v3419 = vpack.c.b16 %v3314, %v3313
        %v3420 = vpack.c.b16 %v3316, %v3315
        %v3421 = vpack.c.b16 %v3318, %v3317
        %v3422 = vpack.c.b16 %v3320, %v3319
        %v3423 = vpack.c.b16 %v3322, %v3321
        %v3424 = vpack.c.b16 %v3324, %v3323
        %v3425 = vpack.c.b16 %v3326, %v3325
        %v3426 = vpack.c.b16 %v3328, %v3327
        %v3427 = vpack.c.b16 %v3330, %v3329
        %v3428 = vpack.c.b16 %v3332, %v3331
        %v3429 = vpack.c.b16 %v3334, %v3333
        %v3430 = vpack.c.b16 %v3336, %v3335
        %v3431 = vpack.c.b16 %v3338, %v3337
        %v3432 = vpack.c.b16 %v3340, %v3339
        %v3433 = vpack.c.b16 %v3342, %v3341
        %v3434 = vpack.c.b16 %v3344, %v3343
        %v3435 = vpack.c.b16 %v3346, %v3345
        %v3436 = vpack.c.b16 %v3348, %v3347
        %v3437 = vpack.c.b16 %v3350, %v3349
        %v3438 = vpack.c.b16 %v3352, %v3351
        %v3439 = vpack.c.b16 %v3354, %v3353
        %v3440 = vpack.c.b16 %v3356, %v3355
        %v3441 = vpack.c.b16 %v3358, %v3357
        %v3442 = vpack.c.b16 %v3360, %v3359
        %v3443 = vpack.c.b16 %v3362, %v3361
        %v3444 = vpack.c.b16 %v3364, %v3363
        %v3445 = vpack.c.b16 %v3366, %v3365
        %v3446 = vpack.c.b16 %v3368, %v3367
        %v3447 = vpack.c.b16 %v3370, %v3369
        %v3448 = vpack.c.b16 %v3372, %v3371
        %v3449 = vpack.c.b16 %v3374, %v3373
        %v3450 = vpack.c.b16 %v3376, %v3375
        %v3451 = vpack.c.b16 %v3378, %v3377
        %v3452 = vpack.c.b16 %v3380, %v3379
        %v3453 = vpack.c.b16 %v3382, %v3381
        %v3454 = vpack.c.b16 %v3384, %v3383
        %v3455 = vpack.c.b16 %v3386, %v3385
        %v3456 = vpack.c.b16 %v3388, %v3387
        %v3457 = vpack.c.b16 %v3390, %v3389
        %v3458 = vpack.c.b16 %v3392, %v3391
        %v3459 = vpack.c.b16 %v3394, %v3393
        %v3460 = vpack.c.b16 %v3396, %v3395
        %3525 = vmatprep.subr.bf16.mxu0 0
        %3526 = vmatpush1.bf16.msra.mxu0 %v3397
        %3527 = vmatprep.subr.bf16.mxu0 0
        %3528 = vmatpush1.bf16.msra.mxu0 %v3398
        %3529 = vmatprep.subr.bf16.mxu0 0
        %3530 = vmatpush1.bf16.msra.mxu0 %v3399
        %3531 = vmatprep.subr.bf16.mxu0 0
        %3532 = vmatpush1.bf16.msra.mxu0 %v3400
        %3533 = vmatprep.subr.bf16.mxu0 0
        %3534 = vmatpush1.bf16.msra.mxu0 %v3401
        %3535 = vmatprep.subr.bf16.mxu0 0
        %3536 = vmatpush1.bf16.msra.mxu0 %v3402
        %3537 = vmatprep.subr.bf16.mxu0 0
        %3538 = vmatpush1.bf16.msra.mxu0 %v3403
        %3539 = vmatprep.subr.bf16.mxu0 0
        %3540 = vmatpush1.bf16.msra.mxu0 %v3404
        %3541 = vmatprep.subr.bf16.mxu0 0
        %3542 = vmatpush1.bf16.msra.mxu0 %v3405
        %3543 = vmatprep.subr.bf16.mxu0 0
        %3544 = vmatpush1.bf16.msra.mxu0 %v3406
        %3545 = vmatprep.subr.bf16.mxu0 0
        %3546 = vmatpush1.bf16.msra.mxu0 %v3407
        %3547 = vmatprep.subr.bf16.mxu0 0
        %3548 = vmatpush1.bf16.msra.mxu0 %v3408
        %3549 = vmatprep.subr.bf16.mxu0 0
        %3550 = vmatpush1.bf16.msra.mxu0 %v3409
        %3551 = vmatprep.subr.bf16.mxu0 0
        %3552 = vmatpush1.bf16.msra.mxu0 %v3410
        %3553 = vmatprep.subr.bf16.mxu0 0
        %3554 = vmatpush1.bf16.msra.mxu0 %v3411
        %3555 = vmatprep.subr.bf16.mxu0 0
        %3556 = vmatpush1.bf16.msra.mxu0 %v3412
        %3557 = vmatprep.mubr.bf16.mxu0 %v2021
        %3558 = vmatmul.mubr.bf16.gmra.mrb[0].mxu0 %v2020
        %v3559 = vpop.f32.mrb[0].mxu0
        %v3560 = vadd.f32 %v3139, %v3559
        %v3561 = vpop.f32.mrb[0].mxu0
        %v3562 = vpop.f32.mrb[0].mxu0
        %v3563 = vadd.f32 %v3139, %v3562
        %v3564 = vpop.f32.mrb[0].mxu0
        %3565 = vdwg.mxu0
        %3566 = vmatprep.subr.bf16.mxu0 0
        %3567 = vmatpush1.bf16.msra.mxu0 %v3413
        %3568 = vmatprep.subr.bf16.mxu0 0
        %3569 = vmatpush1.bf16.msra.mxu0 %v3414
        %3570 = vmatprep.subr.bf16.mxu0 0
        %3571 = vmatpush1.bf16.msra.mxu0 %v3415
        %3572 = vmatprep.subr.bf16.mxu0 0
        %3573 = vmatpush1.bf16.msra.mxu0 %v3416
        %3574 = vmatprep.subr.bf16.mxu0 0
        %3575 = vmatpush1.bf16.msra.mxu0 %v3417
        %3576 = vmatprep.subr.bf16.mxu0 0
        %3577 = vmatpush1.bf16.msra.mxu0 %v3418
        %3578 = vmatprep.subr.bf16.mxu0 0
        %3579 = vmatpush1.bf16.msra.mxu0 %v3419
        %3580 = vmatprep.subr.bf16.mxu0 0
        %3581 = vmatpush1.bf16.msra.mxu0 %v3420
        %3582 = vmatprep.subr.bf16.mxu0 0
        %3583 = vmatpush1.bf16.msra.mxu0 %v3421
        %3584 = vmatprep.subr.bf16.mxu0 0
        %3585 = vmatpush1.bf16.msra.mxu0 %v3422
        %3586 = vmatprep.subr.bf16.mxu0 0
        %3587 = vmatpush1.bf16.msra.mxu0 %v3423
        %3588 = vmatprep.subr.bf16.mxu0 0
        %3589 = vmatpush1.bf16.msra.mxu0 %v3424
        %3590 = vmatprep.subr.bf16.mxu0 0
        %3591 = vmatpush1.bf16.msra.mxu0 %v3425
        %3592 = vmatprep.subr.bf16.mxu0 0
        %3593 = vmatpush1.bf16.msra.mxu0 %v3426
        %3594 = vmatprep.subr.bf16.mxu0 0
        %3595 = vmatpush1.bf16.msra.mxu0 %v3427
        %3596 = vmatprep.subr.bf16.mxu0 0
        %3597 = vmatpush1.bf16.msra.mxu0 %v3428
        %3598 = vmatprep.mubr.bf16.mxu0 %v2023
        %3599 = vmatmul.mubr.bf16.gmra.mrb[0].mxu0 %v2022
        %v3600 = vpop.f32.mrb[0].mxu0
        %v3601 = vadd.f32 %v3560, %v3600
        %v3602 = vpop.f32.mrb[0].mxu0
        %v3603 = vpop.f32.mrb[0].mxu0
        %v3604 = vadd.f32 %v3563, %v3603
        %v3605 = vpop.f32.mrb[0].mxu0
        %3606 = vdwg.mxu0
        %3607 = vmatprep.subr.bf16.mxu0 0
        %3608 = vmatpush1.bf16.msra.mxu0 %v3429
        %3609 = vmatprep.subr.bf16.mxu0 0
        %3610 = vmatpush1.bf16.msra.mxu0 %v3430
        %3611 = vmatprep.subr.bf16.mxu0 0
        %3612 = vmatpush1.bf16.msra.mxu0 %v3431
        %3613 = vmatprep.subr.bf16.mxu0 0
        %3614 = vmatpush1.bf16.msra.mxu0 %v3432
        %3615 = vmatprep.subr.bf16.mxu0 0
        %3616 = vmatpush1.bf16.msra.mxu0 %v3433
        %3617 = vmatprep.subr.bf16.mxu0 0
        %3618 = vmatpush1.bf16.msra.mxu0 %v3434
        %3619 = vmatprep.subr.bf16.mxu0 0
        %3620 = vmatpush1.bf16.msra.mxu0 %v3435
        %3621 = vmatprep.subr.bf16.mxu0 0
        %3622 = vmatpush1.bf16.msra.mxu0 %v3436
        %3623 = vmatprep.subr.bf16.mxu0 0
        %3624 = vmatpush1.bf16.msra.mxu0 %v3437
        %3625 = vmatprep.subr.bf16.mxu0 0
        %3626 = vmatpush1.bf16.msra.mxu0 %v3438
        %3627 = vmatprep.subr.bf16.mxu0 0
        %3628 = vmatpush1.bf16.msra.mxu0 %v3439
        %3629 = vmatprep.subr.bf16.mxu0 0
        %3630 = vmatpush1.bf16.msra.mxu0 %v3440
        %3631 = vmatprep.subr.bf16.mxu0 0
        %3632 = vmatpush1.bf16.msra.mxu0 %v3441
        %3633 = vmatprep.subr.bf16.mxu0 0
        %3634 = vmatpush1.bf16.msra.mxu0 %v3442
        %3635 = vmatprep.subr.bf16.mxu0 0
        %3636 = vmatpush1.bf16.msra.mxu0 %v3443
        %3637 = vmatprep.subr.bf16.mxu0 0
        %3638 = vmatpush1.bf16.msra.mxu0 %v3444
        %3639 = vmatprep.mubr.bf16.mxu0 %v3003
        %3640 = vmatmul.mubr.bf16.gmra.mrb[0].mxu0 %v3002
        %v3641 = vpop.f32.mrb[0].mxu0
        %v3642 = vadd.f32 %v3601, %v3641
        %v3643 = vpop.f32.mrb[0].mxu0
        %v3644 = vpop.f32.mrb[0].mxu0
        %v3645 = vadd.f32 %v3604, %v3644
        %v3646 = vpop.f32.mrb[0].mxu0
        %3647 = vdwg.mxu0
        %3648 = vmatprep.subr.bf16.mxu0 0
        %3649 = vmatpush1.bf16.msra.mxu0 %v3445
        %3650 = vmatprep.subr.bf16.mxu0 0
        %3651 = vmatpush1.bf16.msra.mxu0 %v3446
        %3652 = vmatprep.subr.bf16.mxu0 0
        %3653 = vmatpush1.bf16.msra.mxu0 %v3447
        %3654 = vmatprep.subr.bf16.mxu0 0
        %3655 = vmatpush1.bf16.msra.mxu0 %v3448
        %3656 = vmatprep.subr.bf16.mxu0 0
        %3657 = vmatpush1.bf16.msra.mxu0 %v3449
        %3658 = vmatprep.subr.bf16.mxu0 0
        %3659 = vmatpush1.bf16.msra.mxu0 %v3450
        %3660 = vmatprep.subr.bf16.mxu0 0
        %3661 = vmatpush1.bf16.msra.mxu0 %v3451
        %3662 = vmatprep.subr.bf16.mxu0 0
        %3663 = vmatpush1.bf16.msra.mxu0 %v3452
        %3664 = vmatprep.subr.bf16.mxu0 0
        %3665 = vmatpush1.bf16.msra.mxu0 %v3453
        %3666 = vmatprep.subr.bf16.mxu0 0
        %3667 = vmatpush1.bf16.msra.mxu0 %v3454
        %3668 = vmatprep.subr.bf16.mxu0 0
        %3669 = vmatpush1.bf16.msra.mxu0 %v3455
        %3670 = vmatprep.subr.bf16.mxu0 0
        %3671 = vmatpush1.bf16.msra.mxu0 %v3456
        %3672 = vmatprep.subr.bf16.mxu0 0
        %3673 = vmatpush1.bf16.msra.mxu0 %v3457
        %3674 = vmatprep.subr.bf16.mxu0 0
        %3675 = vmatpush1.bf16.msra.mxu0 %v3458
        %3676 = vmatprep.subr.bf16.mxu0 0
        %3677 = vmatpush1.bf16.msra.mxu0 %v3459
        %3678 = vmatprep.subr.bf16.mxu0 0
        %3679 = vmatpush1.bf16.msra.mxu0 %v3460
        %3680 = vmatprep.mubr.bf16.mxu0 %v3005
        %3681 = vmatmul.mubr.bf16.gmra.mrb[0].mxu0 %v3004
        %v3682 = vpop.f32.mrb[0].mxu0
        %v3683 = vadd.f32 %v3642, %v3682
        %v3684 = vpop.f32.mrb[0].mxu0
        %v3685 = vpop.f32.mrb[0].mxu0
        %v3686 = vadd.f32 %v3645, %v3685
        %v3687 = vpop.f32.mrb[0].mxu0
        %3688 = vdwg.mxu0
        %3689 = vst [vmem:[%s393] sm:$0xff] %v3683
        %3690 = vst [vmem:[%s393 + $0x8] sm:$0xff] %v3686
        %s3691 = smul.u32 2, %s23
        %p3692 = scmp.lt.s32.totalorder %s3691, 3
        %s3693 = scalar_select %p3692, %s3691, 3
        %s3694 = smul.addr %s3693, 8
        %s3695 = scalar_lea.vmem %s9, %s3694
        // Predicated region
        $region73: #{rnd_forward.1} parent=55 // pred_check
          %p3696 = pneg %p235
        $region74: #{rnd_forward.1} parent=55 // pred_check_branch
          %3698 = sbr.rel (%p3696) target = $region76
        $region75: #{rnd_forward.1} parent=55 // pred_region
          %s3699 = smul.u32 2, %s23
        $region76: #{rnd_forward.1} parent=55 // pred_fallthru
          _
      $region56: #{rnd_forward.1} parent=5 // pred_fallthru
        _
      %p3700 = scmp.le.s32.totalorder 2, %s18
      // Predicated region
      $region77: #{rnd_forward.1} parent=5 // pred_check
        %p3701 = pneg %p3700
      $region78: #{rnd_forward.1} parent=5 // pred_check_branch
        %3703 = sbr.rel (%p3701) target = $region80
      $region79: #{rnd_forward.1} parent=5 // pred_region
        %s3704 = ssub.s32 %s18, 2
        // Predicated region
        $region81: #{rnd_forward.1} parent=79 // pred_check
          %p3705 = pneg %p241
        $region82: #{rnd_forward.1} parent=79 // pred_check_branch
          %3707 = sbr.rel (%p3705) target = $region84
        $region83: #{rnd_forward.1} parent=79 // pred_region
          %s3708 = smul.u32 2, %s24
          %p3709 = scmp.lt.s32.totalorder %s3708, 3
          %s3710 = scalar_select %p3709, %s3708, 3
          %s3711 = smul.addr %s3710, 8
          %s3712 = scalar_lea.vmem %s9, %s3711
        $region84: #{rnd_forward.1} parent=79 // pred_fallthru
          _
      $region80: #{rnd_forward.1} parent=5 // pred_fallthru
        _
    $region6: #{rnd_forward.1} parent=1 // loop_footer
      %s22 = sadd.s32 1, %s18
    $region7: #{rnd_forward.1} parent=1 // loop_footer_branch
      %17 = sbr.rel target = $region3
    $region8: #{rnd_forward.1} parent=1 // loop_exit
      _
    %3713 = vsyncpa [#allocation3], 1
    %s3714 = scalar_lea.sflag [#allocation3], 1
    %3715 = vsyncpa %s3714, 1
    %3716 = vsyncpa [#allocation5], 1
    %3717 = vsyncpa [#allocation8], 1

</llo_original>
